<compile_context>
chip_gen: v6e
topology: v6e:2x2x1
jax: 0.10.0
libtpu: 0.0.40
codegen_flags: <defaults>
</compile_context>

<pallas_src>
import jax
import jax.numpy as jnp
from jax.experimental import pallas as pl
from jax.experimental.pallas import tpu as pltpu

# ----- hyperparameters (consistent with the module's __init__) -----
N = 8          # nodes per graph/timestep sample
NBR = 4        # max neighbors per node
D_V = 8        # d_v ; d_h = d_s = d_v
D_E = 8        # d_e
D_T = 8        # d_t  (time2vec width)
D_M = 8        # d_m
K_HEADS = 2    # k
L_LAYERS = 2   # l

D_H = D_V
D_S = D_V
D_RM_V = D_S + 1 + D_V          # 17
D_RM_E = 2 * D_S + 1 + D_E      # 25
H1V = D_RM_V // 2               # 8
H1E = D_RM_E // 2               # 12
D_Q = D_H + D_T                 # 16
D_C = D_H + D_T + D_E           # 24

B_TOTAL = 32   # batched timesteps / graphs


# --------------------------------------------------------------------------
# The single fused kernel (transposed / lane-major: activations are [d, R]).
# --------------------------------------------------------------------------
def tgn_fused_kernel(vT_ref, eT_ref, tT_ref, GmT_ref, maskR_ref,
                     W1v_ref, b1v_ref, W2v_ref, b2v_ref,
                     W1e_ref, b1e_ref, W2e_ref, b2e_ref,
                     Wih_ref, bih_ref, bhh_ref,
                     Wt_ref, bt_ref,
                     Wq_ref, bq_ref, Wkvhe_ref, Wkvphi_ref, bkv_ref,
                     Wlin_ref, blin_ref,
                     out_ref):
    f32 = jnp.float32
    R = vT_ref.shape[1]                # rows of this tile, on the LANE axis
    KH = K_HEADS * D_H

    v = vT_ref[...]                    # [D_V, R]
    e = eT_ref[...]                    # [D_E, NBR*R]   slot-major on lanes
    t = tT_ref[...]                    # [1, R]
    GmT = GmT_ref[...]                 # [R, NBR*R]     one-hot gather (h @ GmT = h[nbr])
    maskR = maskR_ref[...]             # [NBR, R]       1 = real neighbor slot

    # ---- node-wise message MLP (zero-memory / t0 columns already folded out)
    h1v = jnp.maximum(jnp.dot(W1v_ref[...], v, preferred_element_type=f32)
                      + b1v_ref[...], 0.0)                                   # [H1V, R]
    m_v = jnp.dot(W2v_ref[...], h1v, preferred_element_type=f32) + b2v_ref[...]  # [D_M, R]

    # ---- interaction message MLP over all NBR*R slots at once
    h1e = jnp.maximum(jnp.dot(W1e_ref[...], e, preferred_element_type=f32)
                      + b1e_ref[...], 0.0)                                   # [H1E, NBR*R]
    m_e = jnp.dot(W2e_ref[...], h1e, preferred_element_type=f32) + b2e_ref[...]  # [D_M, NBR*R]

    # ---- masked mean over (1 node-wise msg + valid edge msgs); lane-tile-aligned slices
    m_sum = m_v
    for s in range(NBR):
        m_sum = m_sum + m_e[:, s * R:(s + 1) * R] * maskR[s:s + 1, :]
    cnt = 1.0 + jnp.sum(maskR, axis=0, keepdims=True)                        # [1, R]
    am = m_sum / cnt                                                         # [D_M, R]

    # ---- GRUCell(d_m, d_s), gate order r | z | n ; S == 0 so gh == bhh, S_next = (1-z)*n
    gi = jnp.dot(Wih_ref[...], am, preferred_element_type=f32) + bih_ref[...]  # [3*D_S, R]
    bhh = bhh_ref[...]                                                         # [3*D_S, 1]
    r = jax.nn.sigmoid(gi[0:D_S] + bhh[0:D_S])
    z = jax.nn.sigmoid(gi[D_S:2 * D_S] + bhh[D_S:2 * D_S])
    ng = jnp.tanh(gi[2 * D_S:3 * D_S] + r * bhh[2 * D_S:3 * D_S])
    S_next = (1.0 - z) * ng                                                    # [D_S, R]

    # ---- time2vec: phi(t - t_j = t) = cos(Wt * t + bt), computed once (VPU + EUP)
    phi_t = jnp.cos(Wt_ref[...] * t + bt_ref[...])                             # [D_T, R]

    h = S_next + v                                                             # [D_H, R]
    inv_norm = 1.0 / (float(D_H) ** 0.5)
    neg = (maskR - 1.0) * 1e9          # 0 for real slots, -1e9 for padded slots; [NBR, R]
    # NOTE: a node with zero valid neighbors would fall back to a uniform softmax over
    # padded slots (latent concern from the review); build_graph never produces one.

    def head_reduce(x):                # [K*D_H, R] -> [K, R] : sum over D_H per head
        return jnp.concatenate(
            [jnp.sum(x[hh * D_H:(hh + 1) * D_H, :], axis=0, keepdims=True)
             for hh in range(K_HEADS)], axis=0)

    # ---- L layers of multi-head temporal graph attention
    for l in range(L_LAYERS):
        # Q projection: phi(0) already folded into bq_eff
        Qa = jnp.dot(Wq_ref[l], h, preferred_element_type=f32) + bq_ref[l]     # [KH, R]

        # neighbor gather (lane-dense output) + joint K/V projection over [h_j ; e]
        hj = jnp.dot(h, GmT, preferred_element_type=f32)                       # [D_H, NBR*R]
        che = jnp.concatenate([hj, e], axis=0)                                 # [D_H+D_E, NBR*R]
        KV = jnp.dot(Wkvhe_ref[l], che, preferred_element_type=f32)            # [2*KH, NBR*R]
        KVp = jnp.dot(Wkvphi_ref[l], phi_t, preferred_element_type=f32) + bkv_ref[l]  # [2*KH, R]
        Kb, Vb = KV[:KH], KV[KH:]
        Kp, Vp = KVp[:KH], KVp[KH:]

        # scores: q.k_s = q.Kb_s + q.(Kp) ; both heads at once as [K, R] blocks
        qk_const = head_reduce(Qa * Kp)                                        # [K, R]
        sc = []
        for s in range(NBR):
            sc_s = (head_reduce(Qa * Kb[:, s * R:(s + 1) * R]) + qk_const) * inv_norm \
                   + neg[s:s + 1, :]
            sc.append(sc_s)                                                    # [K, R]

        m = sc[0]
        for s in range(1, NBR):
            m = jnp.maximum(m, sc[s])
        w = [jnp.exp(sc[s] - m) for s in range(NBR)]
        den = w[0]
        for s in range(1, NBR):
            den = den + w[s]
        inv_den = 1.0 / den                                                    # [K, R]

        # weighted value sum; the slot-independent (phi_t + bias) V term adds once
        # because the attention weights sum to one.
        Y = Vp                                                                 # [KH, R]
        for s in range(NBR):
            a_s = w[s] * inv_den                                               # [K, R]
            a_rep = jnp.broadcast_to(a_s[:, None, :],
                                     (K_HEADS, D_H, R)).reshape(KH, R)
            Y = Y + a_rep * Vb[:, s * R:(s + 1) * R]

        h = jnp.dot(Wlin_ref[l], Y, preferred_element_type=f32) + blin_ref[l]  # [D_H, R]

    out_ref[...] = h                   # lane-dense [D_H, R] store


# --------------------------------------------------------------------------
# Host-side, one-time weight preparation: transpose, constant-fold S=0 / t0=0,
# fold phi(0) into the Q bias, stack K/V projections.
# --------------------------------------------------------------------------
def prepare_kernel_params(p):
    # node MLP: rm_v = [S(8), t0(1), v(8)] ; S = 0, t0 = 0 -> keep only the v rows
    W1v_T = p['W1v'][D_S + 1:, :].T            # [H1V, D_V]
    b1v_c = p['b1v'].T                         # [H1V, 1]
    W2v_T = p['W2v'].T                         # [D_M, H1V]
    b2v_c = p['b2v'].T
    # interaction MLP: rm_e = [S_i(8), S_j(8), t0(1), e(8)] -> keep only the e rows
    W1e_T = p['W1e'][2 * D_S + 1:, :].T        # [H1E, D_E]
    b1e_c = p['b1e'].T
    W2e_T = p['W2e'].T
    b2e_c = p['b2e'].T
    # GRU: gh = S @ Whh + bhh == bhh, so Whh is dropped entirely
    Wih_T = p['Wih'].T                         # [3*D_S, D_M]
    bih_c = p['bih'].T
    bhh_c = p['bhh'].T
    # time2vec
    Wt_c = p['Wt'].T                           # [D_T, 1]
    bt_c = p['bt'].T                           # [D_T, 1]
    phi0 = jnp.cos(p['bt'])                    # phi(0) = cos(0 * Wt + bt), [1, D_T]

    Wq_hT, bq_eff, Wkv_heT, Wkv_phiT, bkv_c, Wlin_T, blin_c = [], [], [], [], [], [], []
    for l in range(L_LAYERS):
        Wq, bq = p['Wq'][l], p['bq'][l]        # [D_Q, K*D_H], [1, K*D_H]
        Wq_hT.append(Wq[:D_H, :].T)                                   # [K*D_H, D_H]
        bq_eff.append((phi0 @ Wq[D_H:, :] + bq).T)                    # [K*D_H, 1]
        Wk, Wv = p['Wk'][l], p['Wv'][l]        # [D_C, K*D_H]  rows: h_j | phi_t | e
        Wk_heT = jnp.concatenate([Wk[:D_H, :].T, Wk[D_H + D_T:, :].T], axis=1)
        Wv_heT = jnp.concatenate([Wv[:D_H, :].T, Wv[D_H + D_T:, :].T], axis=1)
        Wkv_heT.append(jnp.concatenate([Wk_heT, Wv_heT], axis=0))     # [2K*D_H, D_H+D_E]
        Wkv_phiT.append(jnp.concatenate([Wk[D_H:D_H + D_T, :].T,
                                         Wv[D_H:D_H + D_T, :].T], axis=0))  # [2K*D_H, D_T]
        bkv_c.append(jnp.concatenate([p['bk'][l].T, p['bv'][l].T], axis=0))  # [2K*D_H, 1]
        Wlin_T.append(p['Wlin'][l].T)                                 # [D_H, K*D_H]
        blin_c.append(p['blin'][l].T)                                 # [D_H, 1]

    st = lambda xs: jnp.stack(xs, axis=0)
    return [W1v_T, b1v_c, W2v_T, b2v_c,
            W1e_T, b1e_c, W2e_T, b2e_c,
            Wih_T, bih_c, bhh_c,
            Wt_c, bt_c,
            st(Wq_hT), st(bq_eff), st(Wkv_heT), st(Wkv_phiT), st(bkv_c),
            st(Wlin_T), st(blin_c)]


def _pick_tb(B):
    # Single-TC chips (v5e / v6e): one big grid step (R = 256) to amortize per-step
    # overhead.  Dual-TC / megacore chips (v7x, v5p, v4): keep an even parallel grid.
    try:
        kind = jax.devices()[0].device_kind.lower()
    except Exception:
        kind = ""
    dual_tc = any(tag in kind for tag in ("v7", "7x", "v5p", "v4"))
    tb = 16 if dual_tc else 32
    while B % tb != 0 and tb > 1:
        tb //= 2
    return tb


# --------------------------------------------------------------------------
# Wrapper: host-side layout prep + one pallas_call over the (possibly 1-step) grid
# --------------------------------------------------------------------------
def tgn_forward_pallas(v_b, e_b, t_b, nbr_idx, nbr_mask, params, tb=None):
    f32 = jnp.float32
    B = v_b.shape[0]
    if tb is None:
        tb = _pick_tb(B)
    assert B % tb == 0
    G = B // tb
    R = tb * N

    # feature-major (lane = batch-row) layouts
    vT = jnp.transpose(v_b, (2, 0, 1)).reshape(D_V, B * N)                       # [D_V, B*N]
    tT = jnp.repeat(t_b.astype(f32), N).reshape(1, B * N)                        # [1,  B*N]
    eT = jnp.transpose(e_b.reshape(G, tb, N, NBR, D_E),
                       (4, 0, 3, 1, 2)).reshape(D_E, G * NBR * R)                # [D_E, G*NBR*R]
    maskR = jnp.tile(nbr_mask.T[:, None, :], (1, tb, 1)).reshape(NBR, R)         # [NBR, R]
    eyeN = jnp.eye(N, dtype=f32)
    eyeTB = jnp.eye(tb, dtype=f32)
    Gm = jnp.concatenate([jnp.kron(eyeTB, eyeN[nbr_idx[:, s]]) for s in range(NBR)],
                         axis=0)                                                 # [NBR*R, R]
    GmT = Gm.T                                                                   # [R, NBR*R]

    weights = prepare_kernel_params(params)

    def _resident(shape):
        n = len(shape)
        return pl.BlockSpec(shape, lambda g, n=n: (0,) * n)

    in_specs = [
        pl.BlockSpec((D_V, R), lambda g: (0, g)),          # vT
        pl.BlockSpec((D_E, NBR * R), lambda g: (0, g)),    # eT (slot-major within step)
        pl.BlockSpec((1, R), lambda g: (0, g)),            # tT
        _resident(GmT.shape),                              # gather matrix (VMEM-resident)
        _resident(maskR.shape),                            # neighbor validity mask
    ] + [_resident(w.shape) for w in weights]

    out = pl.pallas_call(
        tgn_fused_kernel,
        out_shape=jax.ShapeDtypeStruct((D_H, B * N), f32),
        grid=(G,),
        in_specs=in_specs,
        out_specs=pl.BlockSpec((D_H, R), lambda g: (0, g)),   # lane-dense output slab
        compiler_params=pltpu.CompilerParams(dimension_semantics=("parallel",)),
    )(vT, eT, tT, GmT, maskR, *weights)
    return jnp.transpose(out).reshape(B, N, D_H)


# --------------------------------------------------------------------------
# Parameters / graph (deterministic, synthetic)
# --------------------------------------------------------------------------
def init_params(key):
    keys = iter(jax.random.split(key, 32))

    def p(shape):
        return jax.random.normal(next(keys), shape, jnp.float32) * 0.1

    return {
        # MessageFunction (node-wise): Linear(d_rm_v, d_rm_v//2) -> ReLU -> Linear(., d_m)
        'W1v': p((D_RM_V, H1V)), 'b1v': p((1, H1V)),
        'W2v': p((H1V, D_M)),    'b2v': p((1, D_M)),
        # MessageFunction (interaction)
        'W1e': p((D_RM_E, H1E)), 'b1e': p((1, H1E)),
        'W2e': p((H1E, D_M)),    'b2e': p((1, D_M)),
        # MemoryUpdater GRUCell(d_m, d_s)
        'Wih': p((D_M, 3 * D_S)), 'bih': p((1, 3 * D_S)),
        'Whh': p((D_S, 3 * D_S)), 'bhh': p((1, 3 * D_S)),
        # time2vec Linear(1, d_t)
        'Wt': p((1, D_T)), 'bt': p((1, D_T)),
        # attention layers: heads stacked on the output axis, layers on a leading axis
        'Wq': p((L_LAYERS, D_Q, K_HEADS * D_H)), 'bq': p((L_LAYERS, 1, K_HEADS * D_H)),
        'Wk': p((L_LAYERS, D_C, K_HEADS * D_H)), 'bk': p((L_LAYERS, 1, K_HEADS * D_H)),
        'Wv': p((L_LAYERS, D_C, K_HEADS * D_H)), 'bv': p((L_LAYERS, 1, K_HEADS * D_H)),
        'Wlin': p((L_LAYERS, K_HEADS * D_H, D_H)), 'blin': p((L_LAYERS, 1, D_H)),
    }


def build_graph(key, B):
    kv, ke = jax.random.split(key)
    nbr_idx, nbr_mask = [], []
    for i in range(N):
        nbrs = [(i + 1) % N]
        if i % 2 == 0:
            nbrs += [(i + 2) % N, (i + 3) % N]
        deg = len(nbrs)
        nbr_idx.append(nbrs + [0] * (NBR - deg))
        nbr_mask.append([1.0] * deg + [0.0] * (NBR - deg))
    nbr_idx = jnp.array(nbr_idx, jnp.int32)                     # [N, NBR]
    nbr_mask = jnp.array(nbr_mask, jnp.float32)                 # [N, NBR]
    v_b = jax.random.normal(kv, (B, N, D_V), jnp.float32)
    e_b = jax.random.normal(ke, (B, N, NBR, D_E), jnp.float32) * nbr_mask[None, :, :, None]
    t_b = jnp.linspace(0.5, 2.0, B).astype(jnp.float32)         # per-sample forward(t)
    return v_b, e_b, t_b, nbr_idx, nbr_mask


# --------------------------------------------------------------------------
# Pure-JAX reference (same math, untransposed / unfolded) for correctness
# --------------------------------------------------------------------------
def tgn_ref_single(t, v, e_feat, nbr_idx, nbr_mask, p):
    f32 = jnp.float32
    S = jnp.zeros((N, D_S), f32)
    rm_v = jnp.concatenate([S, jnp.zeros((N, 1), f32), v], -1)
    m_v = jnp.maximum(rm_v @ p['W1v'] + p['b1v'], 0.0) @ p['W2v'] + p['b2v']
    S_i = jnp.broadcast_to(S[:, None, :], (N, NBR, D_S))
    rm_e = jnp.concatenate([S_i, S[nbr_idx], jnp.zeros((N, NBR, 1), f32), e_feat], -1)
    m_e = jnp.maximum(rm_e @ p['W1e'] + p['b1e'], 0.0) @ p['W2e'] + p['b2e']
    am = (m_v + jnp.sum(m_e * nbr_mask[:, :, None], axis=1)) / (
        1.0 + jnp.sum(nbr_mask, axis=-1, keepdims=True))
    gi = am @ p['Wih'] + p['bih']
    gh = S @ p['Whh'] + p['bhh']
    r = jax.nn.sigmoid(gi[:, :D_S] + gh[:, :D_S])
    z = jax.nn.sigmoid(gi[:, D_S:2 * D_S] + gh[:, D_S:2 * D_S])
    ng = jnp.tanh(gi[:, 2 * D_S:] + r * gh[:, 2 * D_S:])
    S_next = (1.0 - z) * ng + z * S
    phi0 = jnp.cos(jnp.zeros((1, 1), f32) @ p['Wt'] + p['bt'])
    phi_t = jnp.cos(t.reshape(1, 1).astype(f32) @ p['Wt'] + p['bt'])
    h = S_next + v
    neg = (nbr_mask - 1.0) * 1e9
    inv_norm = 1.0 / (float(D_H) ** 0.5)
    for l in range(L_LAYERS):
        Q_in = jnp.concatenate([h, jnp.broadcast_to(phi0, (N, D_T))], -1)
        C = jnp.concatenate([h[nbr_idx],
                             jnp.broadcast_to(phi_t[:, None, :], (N, NBR, D_T)),
                             e_feat], -1)
        Qa = Q_in @ p['Wq'][l] + p['bq'][l]
        Ka = C @ p['Wk'][l] + p['bk'][l]
        Va = C @ p['Wv'][l] + p['bv'][l]
        heads = []
        for hh in range(K_HEADS):
            lo, hi = hh * D_H, (hh + 1) * D_H
            sc = jnp.einsum('nd,nsd->ns', Qa[:, lo:hi], Ka[:, :, lo:hi]) * inv_norm + neg
            A = jax.nn.softmax(sc, axis=-1)
            heads.append(jnp.einsum('ns,nsd->nd', A, Va[:, :, lo:hi]))
        h = jnp.concatenate(heads, -1) @ p['Wlin'][l] + p['blin'][l]
    return h


if __name__ == "__main__":
    key = jax.random.PRNGKey(0)
    kp, kg = jax.random.split(key)
    params = init_params(kp)
    v_b, e_b, t_b, nbr_idx, nbr_mask = build_graph(kg, B_TOTAL)

    fwd = jax.jit(tgn_forward_pallas)
    h = fwd(v_b, e_b, t_b, nbr_idx, nbr_mask, params)
    h = jax.block_until_ready(h)

    ref_fn = jax.vmap(lambda t, v, e: tgn_ref_single(t, v, e, nbr_idx, nbr_mask, params))
    h_ref = ref_fn(t_b, v_b, e_b)

    assert h.shape == (B_TOTAL, N, D_H)
    assert bool(jnp.all(jnp.isfinite(h)))
    err = float(jnp.max(jnp.abs(h - h_ref)))
    assert bool(jnp.allclose(h, h_ref, atol=1e-3, rtol=1e-3)), err
    print("KERNEL_OK")
</pallas_src>

<mosaic_0001>
module attributes {stable_mosaic.version = 11 : i64} {
  func.func @tgn_fused_kernel(%arg0: i32, %arg1: memref<8x256xf32, #tpu.memory_space<vmem>>, %arg2: memref<8x1024xf32, #tpu.memory_space<vmem>>, %arg3: memref<1x256xf32, #tpu.memory_space<vmem>>, %arg4: memref<256x1024xf32, #tpu.memory_space<vmem>>, %arg5: memref<4x256xf32, #tpu.memory_space<vmem>>, %arg6: memref<8x8xf32, #tpu.memory_space<vmem>>, %arg7: memref<8x1xf32, #tpu.memory_space<vmem>>, %arg8: memref<8x8xf32, #tpu.memory_space<vmem>>, %arg9: memref<8x1xf32, #tpu.memory_space<vmem>>, %arg10: memref<12x8xf32, #tpu.memory_space<vmem>>, %arg11: memref<12x1xf32, #tpu.memory_space<vmem>>, %arg12: memref<8x12xf32, #tpu.memory_space<vmem>>, %arg13: memref<8x1xf32, #tpu.memory_space<vmem>>, %arg14: memref<24x8xf32, #tpu.memory_space<vmem>>, %arg15: memref<24x1xf32, #tpu.memory_space<vmem>>, %arg16: memref<24x1xf32, #tpu.memory_space<vmem>>, %arg17: memref<8x1xf32, #tpu.memory_space<vmem>>, %arg18: memref<8x1xf32, #tpu.memory_space<vmem>>, %arg19: memref<2x16x8xf32, #tpu.memory_space<vmem>>, %arg20: memref<2x16x1xf32, #tpu.memory_space<vmem>>, %arg21: memref<2x32x16xf32, #tpu.memory_space<vmem>>, %arg22: memref<2x32x8xf32, #tpu.memory_space<vmem>>, %arg23: memref<2x32x1xf32, #tpu.memory_space<vmem>>, %arg24: memref<2x8x16xf32, #tpu.memory_space<vmem>>, %arg25: memref<2x8x1xf32, #tpu.memory_space<vmem>>, %arg26: memref<8x256xf32, #tpu.memory_space<vmem>>) attributes {dimension_semantics = [#tpu.dimension_semantics<parallel>], iteration_bounds = array<i64: 1>, scalar_prefetch = 0 : i64, scratch_operands = 0 : i64, tpu.core_type = #tpu.core_type<tc>, window_params = [{transform_indices = @transform_0, window_bounds = array<i64: 8, 256>}, {transform_indices = @transform_1, window_bounds = array<i64: 8, 1024>}, {transform_indices = @transform_2, window_bounds = array<i64: 1, 256>}, {pipeline_mode = #tpu.pipeline_mode<synchronous>, transform_indices = @transform_3, window_bounds = array<i64: 256, 1024>}, {pipeline_mode = #tpu.pipeline_mode<synchronous>, transform_indices = @transform_4, window_bounds = array<i64: 4, 256>}, {pipeline_mode = #tpu.pipeline_mode<synchronous>, transform_indices = @transform_5, window_bounds = array<i64: 8, 8>}, {pipeline_mode = #tpu.pipeline_mode<synchronous>, transform_indices = @transform_6, window_bounds = array<i64: 8, 1>}, {pipeline_mode = #tpu.pipeline_mode<synchronous>, transform_indices = @transform_7, window_bounds = array<i64: 8, 8>}, {pipeline_mode = #tpu.pipeline_mode<synchronous>, transform_indices = @transform_8, window_bounds = array<i64: 8, 1>}, {pipeline_mode = #tpu.pipeline_mode<synchronous>, transform_indices = @transform_9, window_bounds = array<i64: 12, 8>}, {pipeline_mode = #tpu.pipeline_mode<synchronous>, transform_indices = @transform_10, window_bounds = array<i64: 12, 1>}, {pipeline_mode = #tpu.pipeline_mode<synchronous>, transform_indices = @transform_11, window_bounds = array<i64: 8, 12>}, {pipeline_mode = #tpu.pipeline_mode<synchronous>, transform_indices = @transform_12, window_bounds = array<i64: 8, 1>}, {pipeline_mode = #tpu.pipeline_mode<synchronous>, transform_indices = @transform_13, window_bounds = array<i64: 24, 8>}, {pipeline_mode = #tpu.pipeline_mode<synchronous>, transform_indices = @transform_14, window_bounds = array<i64: 24, 1>}, {pipeline_mode = #tpu.pipeline_mode<synchronous>, transform_indices = @transform_15, window_bounds = array<i64: 24, 1>}, {pipeline_mode = #tpu.pipeline_mode<synchronous>, transform_indices = @transform_16, window_bounds = array<i64: 8, 1>}, {pipeline_mode = #tpu.pipeline_mode<synchronous>, transform_indices = @transform_17, window_bounds = array<i64: 8, 1>}, {pipeline_mode = #tpu.pipeline_mode<synchronous>, transform_indices = @transform_18, window_bounds = array<i64: 2, 16, 8>}, {pipeline_mode = #tpu.pipeline_mode<synchronous>, transform_indices = @transform_19, window_bounds = array<i64: 2, 16, 1>}, {pipeline_mode = #tpu.pipeline_mode<synchronous>, transform_indices = @transform_20, window_bounds = array<i64: 2, 32, 16>}, {pipeline_mode = #tpu.pipeline_mode<synchronous>, transform_indices = @transform_21, window_bounds = array<i64: 2, 32, 8>}, {pipeline_mode = #tpu.pipeline_mode<synchronous>, transform_indices = @transform_22, window_bounds = array<i64: 2, 32, 1>}, {pipeline_mode = #tpu.pipeline_mode<synchronous>, transform_indices = @transform_23, window_bounds = array<i64: 2, 8, 16>}, {pipeline_mode = #tpu.pipeline_mode<synchronous>, transform_indices = @transform_24, window_bounds = array<i64: 2, 8, 1>}, {transform_indices = @transform_25, window_bounds = array<i64: 8, 256>}]} {
    %c0 = arith.constant 0 : index
    %c0_0 = arith.constant 0 : index
    %0 = vector.load %arg1[%c0, %c0_0] : memref<8x256xf32, #tpu.memory_space<vmem>>, vector<8x256xf32>
    %c0_1 = arith.constant 0 : index
    %c0_2 = arith.constant 0 : index
    %1 = vector.load %arg2[%c0_1, %c0_2] : memref<8x1024xf32, #tpu.memory_space<vmem>>, vector<8x1024xf32>
    %c0_3 = arith.constant 0 : index
    %c0_4 = arith.constant 0 : index
    %2 = vector.load %arg3[%c0_3, %c0_4] : memref<1x256xf32, #tpu.memory_space<vmem>>, vector<1x256xf32>
    %c0_5 = arith.constant 0 : index
    %c0_6 = arith.constant 0 : index
    %3 = vector.load %arg4[%c0_5, %c0_6] : memref<256x1024xf32, #tpu.memory_space<vmem>>, vector<256x1024xf32>
    %c0_7 = arith.constant 0 : index
    %c0_8 = arith.constant 0 : index
    %4 = vector.load %arg5[%c0_7, %c0_8] : memref<4x256xf32, #tpu.memory_space<vmem>>, vector<4x256xf32>
    %c0_9 = arith.constant 0 : index
    %c0_10 = arith.constant 0 : index
    %5 = vector.load %arg6[%c0_9, %c0_10] : memref<8x8xf32, #tpu.memory_space<vmem>>, vector<8x8xf32>
    %cst = arith.constant dense<0.000000e+00> : vector<8x256xf32>
    %6 = tpu.matmul %5, %0, %cst {dimension_numbers = #tpu.dot_dimension_numbers<[1], [0], [0], [1], [0, 0, 1, 1], [], []>} : vector<8x8xf32>, vector<8x256xf32>, vector<8x256xf32> -> vector<8x256xf32>
    %c0_11 = arith.constant 0 : index
    %c0_12 = arith.constant 0 : index
    %7 = vector.load %arg7[%c0_11, %c0_12] : memref<8x1xf32, #tpu.memory_space<vmem>>, vector<8x1xf32>
    %8 = vector.broadcast %7 : vector<8x1xf32> to vector<8x256xf32>
    %9 = arith.addf %6, %8 : vector<8x256xf32>
    %cst_13 = arith.constant 0.000000e+00 : f32
    %10 = vector.broadcast %cst_13 : f32 to vector<8x256xf32>
    %11 = arith.maximumf %9, %10 : vector<8x256xf32>
    %c0_14 = arith.constant 0 : index
    %c0_15 = arith.constant 0 : index
    %12 = vector.load %arg8[%c0_14, %c0_15] : memref<8x8xf32, #tpu.memory_space<vmem>>, vector<8x8xf32>
    %cst_16 = arith.constant dense<0.000000e+00> : vector<8x256xf32>
    %13 = tpu.matmul %12, %11, %cst_16 {dimension_numbers = #tpu.dot_dimension_numbers<[1], [0], [0], [1], [0, 0, 1, 1], [], []>} : vector<8x8xf32>, vector<8x256xf32>, vector<8x256xf32> -> vector<8x256xf32>
    %c0_17 = arith.constant 0 : index
    %c0_18 = arith.constant 0 : index
    %14 = vector.load %arg9[%c0_17, %c0_18] : memref<8x1xf32, #tpu.memory_space<vmem>>, vector<8x1xf32>
    %15 = vector.broadcast %14 : vector<8x1xf32> to vector<8x256xf32>
    %16 = arith.addf %13, %15 : vector<8x256xf32>
    %c0_19 = arith.constant 0 : index
    %c0_20 = arith.constant 0 : index
    %17 = vector.load %arg10[%c0_19, %c0_20] : memref<12x8xf32, #tpu.memory_space<vmem>>, vector<12x8xf32>
    %cst_21 = arith.constant dense<0.000000e+00> : vector<12x1024xf32>
    %18 = tpu.matmul %17, %1, %cst_21 {dimension_numbers = #tpu.dot_dimension_numbers<[1], [0], [0], [1], [0, 0, 1, 1], [], []>} : vector<12x8xf32>, vector<8x1024xf32>, vector<12x1024xf32> -> vector<12x1024xf32>
    %c0_22 = arith.constant 0 : index
    %c0_23 = arith.constant 0 : index
    %19 = vector.load %arg11[%c0_22, %c0_23] : memref<12x1xf32, #tpu.memory_space<vmem>>, vector<12x1xf32>
    %20 = vector.broadcast %19 : vector<12x1xf32> to vector<12x1024xf32>
    %21 = arith.addf %18, %20 : vector<12x1024xf32>
    %cst_24 = arith.constant 0.000000e+00 : f32
    %22 = vector.broadcast %cst_24 : f32 to vector<12x1024xf32>
    %23 = arith.maximumf %21, %22 : vector<12x1024xf32>
    %c0_25 = arith.constant 0 : index
    %c0_26 = arith.constant 0 : index
    %24 = vector.load %arg12[%c0_25, %c0_26] : memref<8x12xf32, #tpu.memory_space<vmem>>, vector<8x12xf32>
    %cst_27 = arith.constant dense<0.000000e+00> : vector<8x1024xf32>
    %25 = tpu.matmul %24, %23, %cst_27 {dimension_numbers = #tpu.dot_dimension_numbers<[1], [0], [0], [1], [0, 0, 1, 1], [], []>} : vector<8x12xf32>, vector<12x1024xf32>, vector<8x1024xf32> -> vector<8x1024xf32>
    %c0_28 = arith.constant 0 : index
    %c0_29 = arith.constant 0 : index
    %26 = vector.load %arg13[%c0_28, %c0_29] : memref<8x1xf32, #tpu.memory_space<vmem>>, vector<8x1xf32>
    %27 = vector.broadcast %26 : vector<8x1xf32> to vector<8x1024xf32>
    %28 = arith.addf %25, %27 : vector<8x1024xf32>
    %29 = vector.extract_strided_slice %28 {offsets = [0, 0], sizes = [8, 256], strides = [1, 1]} : vector<8x1024xf32> to vector<8x256xf32>
    %30 = vector.extract_strided_slice %4 {offsets = [0, 0], sizes = [1, 256], strides = [1, 1]} : vector<4x256xf32> to vector<1x256xf32>
    %31 = vector.broadcast %30 : vector<1x256xf32> to vector<8x256xf32>
    %32 = arith.mulf %29, %31 : vector<8x256xf32>
    %33 = arith.addf %16, %32 : vector<8x256xf32>
    %34 = vector.extract_strided_slice %28 {offsets = [0, 256], sizes = [8, 256], strides = [1, 1]} : vector<8x1024xf32> to vector<8x256xf32>
    %35 = vector.extract_strided_slice %4 {offsets = [1, 0], sizes = [1, 256], strides = [1, 1]} : vector<4x256xf32> to vector<1x256xf32>
    %36 = vector.broadcast %35 : vector<1x256xf32> to vector<8x256xf32>
    %37 = arith.mulf %34, %36 : vector<8x256xf32>
    %38 = arith.addf %33, %37 : vector<8x256xf32>
    %39 = vector.extract_strided_slice %28 {offsets = [0, 512], sizes = [8, 256], strides = [1, 1]} : vector<8x1024xf32> to vector<8x256xf32>
    %40 = vector.extract_strided_slice %4 {offsets = [2, 0], sizes = [1, 256], strides = [1, 1]} : vector<4x256xf32> to vector<1x256xf32>
    %41 = vector.broadcast %40 : vector<1x256xf32> to vector<8x256xf32>
    %42 = arith.mulf %39, %41 : vector<8x256xf32>
    %43 = arith.addf %38, %42 : vector<8x256xf32>
    %44 = vector.extract_strided_slice %28 {offsets = [0, 768], sizes = [8, 256], strides = [1, 1]} : vector<8x1024xf32> to vector<8x256xf32>
    %45 = vector.extract_strided_slice %4 {offsets = [3, 0], sizes = [1, 256], strides = [1, 1]} : vector<4x256xf32> to vector<1x256xf32>
    %46 = vector.broadcast %45 : vector<1x256xf32> to vector<8x256xf32>
    %47 = arith.mulf %44, %46 : vector<8x256xf32>
    %48 = arith.addf %43, %47 : vector<8x256xf32>
    %cst_30 = arith.constant dense<0.000000e+00> : vector<256xf32>
    %49 = vector.multi_reduction <add>, %4, %cst_30 [0] : vector<4x256xf32> to vector<256xf32>
    %50 = vector.shape_cast %49 : vector<256xf32> to vector<1x256xf32>
    %cst_31 = arith.constant 1.000000e+00 : f32
    %51 = vector.broadcast %cst_31 : f32 to vector<1x256xf32>
    %52 = arith.addf %51, %50 : vector<1x256xf32>
    %53 = vector.broadcast %52 : vector<1x256xf32> to vector<8x256xf32>
    %54 = arith.divf %48, %53 : vector<8x256xf32>
    %c0_32 = arith.constant 0 : index
    %c0_33 = arith.constant 0 : index
    %55 = vector.load %arg14[%c0_32, %c0_33] : memref<24x8xf32, #tpu.memory_space<vmem>>, vector<24x8xf32>
    %cst_34 = arith.constant dense<0.000000e+00> : vector<24x256xf32>
    %56 = tpu.matmul %55, %54, %cst_34 {dimension_numbers = #tpu.dot_dimension_numbers<[1], [0], [0], [1], [0, 0, 1, 1], [], []>} : vector<24x8xf32>, vector<8x256xf32>, vector<24x256xf32> -> vector<24x256xf32>
    %c0_35 = arith.constant 0 : index
    %c0_36 = arith.constant 0 : index
    %57 = vector.load %arg15[%c0_35, %c0_36] : memref<24x1xf32, #tpu.memory_space<vmem>>, vector<24x1xf32>
    %58 = vector.broadcast %57 : vector<24x1xf32> to vector<24x256xf32>
    %59 = arith.addf %56, %58 : vector<24x256xf32>
    %c0_37 = arith.constant 0 : index
    %c0_38 = arith.constant 0 : index
    %60 = vector.load %arg16[%c0_37, %c0_38] : memref<24x1xf32, #tpu.memory_space<vmem>>, vector<24x1xf32>
    %61 = vector.extract_strided_slice %59 {offsets = [0, 0], sizes = [8, 256], strides = [1, 1]} : vector<24x256xf32> to vector<8x256xf32>
    %62 = vector.extract_strided_slice %60 {offsets = [0, 0], sizes = [8, 1], strides = [1, 1]} : vector<24x1xf32> to vector<8x1xf32>
    %63 = vector.broadcast %62 : vector<8x1xf32> to vector<8x256xf32>
    %64 = arith.addf %61, %63 : vector<8x256xf32>
    %65 = arith.negf %64 : vector<8x256xf32>
    %66 = math.exp %65 : vector<8x256xf32>
    %cst_39 = arith.constant 1.000000e+00 : f32
    %67 = vector.broadcast %cst_39 : f32 to vector<8x256xf32>
    %68 = arith.addf %67, %66 : vector<8x256xf32>
    %69 = arith.divf %67, %68 : vector<8x256xf32>
    %70 = vector.extract_strided_slice %59 {offsets = [8, 0], sizes = [8, 256], strides = [1, 1]} : vector<24x256xf32> to vector<8x256xf32>
    %71 = vector.extract_strided_slice %60 {offsets = [8, 0], sizes = [8, 1], strides = [1, 1]} : vector<24x1xf32> to vector<8x1xf32>
    %72 = vector.broadcast %71 : vector<8x1xf32> to vector<8x256xf32>
    %73 = arith.addf %70, %72 : vector<8x256xf32>
    %74 = arith.negf %73 : vector<8x256xf32>
    %75 = math.exp %74 : vector<8x256xf32>
    %cst_40 = arith.constant 1.000000e+00 : f32
    %76 = vector.broadcast %cst_40 : f32 to vector<8x256xf32>
    %77 = arith.addf %76, %75 : vector<8x256xf32>
    %78 = arith.divf %76, %77 : vector<8x256xf32>
    %79 = vector.extract_strided_slice %59 {offsets = [16, 0], sizes = [8, 256], strides = [1, 1]} : vector<24x256xf32> to vector<8x256xf32>
    %80 = vector.extract_strided_slice %60 {offsets = [16, 0], sizes = [8, 1], strides = [1, 1]} : vector<24x1xf32> to vector<8x1xf32>
    %81 = vector.broadcast %80 : vector<8x1xf32> to vector<8x256xf32>
    %82 = arith.mulf %69, %81 : vector<8x256xf32>
    %83 = arith.addf %79, %82 : vector<8x256xf32>
    %84 = math.tanh %83 : vector<8x256xf32>
    %cst_41 = arith.constant 1.000000e+00 : f32
    %85 = vector.broadcast %cst_41 : f32 to vector<8x256xf32>
    %86 = arith.subf %85, %78 : vector<8x256xf32>
    %87 = arith.mulf %86, %84 : vector<8x256xf32>
    %c0_42 = arith.constant 0 : index
    %c0_43 = arith.constant 0 : index
    %88 = vector.load %arg17[%c0_42, %c0_43] : memref<8x1xf32, #tpu.memory_space<vmem>>, vector<8x1xf32>
    %89 = vector.broadcast %88 : vector<8x1xf32> to vector<8x256xf32>
    %90 = vector.broadcast %2 : vector<1x256xf32> to vector<8x256xf32>
    %91 = arith.mulf %89, %90 : vector<8x256xf32>
    %c0_44 = arith.constant 0 : index
    %c0_45 = arith.constant 0 : index
    %92 = vector.load %arg18[%c0_44, %c0_45] : memref<8x1xf32, #tpu.memory_space<vmem>>, vector<8x1xf32>
    %93 = vector.broadcast %92 : vector<8x1xf32> to vector<8x256xf32>
    %94 = arith.addf %91, %93 : vector<8x256xf32>
    %95 = math.cos %94 : vector<8x256xf32>
    %96 = arith.addf %87, %0 : vector<8x256xf32>
    %cst_46 = arith.constant 1.000000e+00 : f32
    %97 = vector.broadcast %cst_46 : f32 to vector<4x256xf32>
    %98 = arith.subf %4, %97 : vector<4x256xf32>
    %cst_47 = arith.constant 1.000000e+09 : f32
    %99 = vector.broadcast %cst_47 : f32 to vector<4x256xf32>
    %100 = arith.mulf %98, %99 : vector<4x256xf32>
    %c0_48 = arith.constant 0 : index
    %c0_49 = arith.constant 0 : index
    %c0_50 = arith.constant 0 : index
    %101 = vector.load %arg19[%c0_48, %c0_49, %c0_50] : memref<2x16x8xf32, #tpu.memory_space<vmem>>, vector<1x16x8xf32>
    %102 = vector.shape_cast %101 : vector<1x16x8xf32> to vector<16x8xf32>
    %cst_51 = arith.constant dense<0.000000e+00> : vector<16x256xf32>
    %103 = tpu.matmul %102, %96, %cst_51 {dimension_numbers = #tpu.dot_dimension_numbers<[1], [0], [0], [1], [0, 0, 1, 1], [], []>} : vector<16x8xf32>, vector<8x256xf32>, vector<16x256xf32> -> vector<16x256xf32>
    %c0_52 = arith.constant 0 : index
    %c0_53 = arith.constant 0 : index
    %c0_54 = arith.constant 0 : index
    %104 = vector.load %arg20[%c0_52, %c0_53, %c0_54] : memref<2x16x1xf32, #tpu.memory_space<vmem>>, vector<1x16x1xf32>
    %105 = vector.shape_cast %104 : vector<1x16x1xf32> to vector<16x1xf32>
    %106 = vector.broadcast %105 : vector<16x1xf32> to vector<16x256xf32>
    %107 = arith.addf %103, %106 : vector<16x256xf32>
    %cst_55 = arith.constant dense<0.000000e+00> : vector<8x1024xf32>
    %108 = tpu.matmul %96, %3, %cst_55 {dimension_numbers = #tpu.dot_dimension_numbers<[1], [0], [0], [1], [0, 0, 1, 1], [], []>} : vector<8x256xf32>, vector<256x1024xf32>, vector<8x1024xf32> -> vector<8x1024xf32>
    %109 = tpu.concatenate %108, %1 in 0 : vector<8x1024xf32>, vector<8x1024xf32> -> vector<16x1024xf32>
    %c0_56 = arith.constant 0 : index
    %c0_57 = arith.constant 0 : index
    %c0_58 = arith.constant 0 : index
    %110 = vector.load %arg21[%c0_56, %c0_57, %c0_58] : memref<2x32x16xf32, #tpu.memory_space<vmem>>, vector<1x32x16xf32>
    %111 = vector.shape_cast %110 : vector<1x32x16xf32> to vector<32x16xf32>
    %cst_59 = arith.constant dense<0.000000e+00> : vector<32x1024xf32>
    %112 = tpu.matmul %111, %109, %cst_59 {dimension_numbers = #tpu.dot_dimension_numbers<[1], [0], [0], [1], [0, 0, 1, 1], [], []>} : vector<32x16xf32>, vector<16x1024xf32>, vector<32x1024xf32> -> vector<32x1024xf32>
    %c0_60 = arith.constant 0 : index
    %c0_61 = arith.constant 0 : index
    %c0_62 = arith.constant 0 : index
    %113 = vector.load %arg22[%c0_60, %c0_61, %c0_62] : memref<2x32x8xf32, #tpu.memory_space<vmem>>, vector<1x32x8xf32>
    %114 = vector.shape_cast %113 : vector<1x32x8xf32> to vector<32x8xf32>
    %cst_63 = arith.constant dense<0.000000e+00> : vector<32x256xf32>
    %115 = tpu.matmul %114, %95, %cst_63 {dimension_numbers = #tpu.dot_dimension_numbers<[1], [0], [0], [1], [0, 0, 1, 1], [], []>} : vector<32x8xf32>, vector<8x256xf32>, vector<32x256xf32> -> vector<32x256xf32>
    %c0_64 = arith.constant 0 : index
    %c0_65 = arith.constant 0 : index
    %c0_66 = arith.constant 0 : index
    %116 = vector.load %arg23[%c0_64, %c0_65, %c0_66] : memref<2x32x1xf32, #tpu.memory_space<vmem>>, vector<1x32x1xf32>
    %117 = vector.shape_cast %116 : vector<1x32x1xf32> to vector<32x1xf32>
    %118 = vector.broadcast %117 : vector<32x1xf32> to vector<32x256xf32>
    %119 = arith.addf %115, %118 : vector<32x256xf32>
    %120 = vector.extract_strided_slice %112 {offsets = [0, 0], sizes = [16, 1024], strides = [1, 1]} : vector<32x1024xf32> to vector<16x1024xf32>
    %121 = vector.extract_strided_slice %112 {offsets = [16, 0], sizes = [16, 1024], strides = [1, 1]} : vector<32x1024xf32> to vector<16x1024xf32>
    %122 = vector.extract_strided_slice %119 {offsets = [0, 0], sizes = [16, 256], strides = [1, 1]} : vector<32x256xf32> to vector<16x256xf32>
    %123 = vector.extract_strided_slice %119 {offsets = [16, 0], sizes = [16, 256], strides = [1, 1]} : vector<32x256xf32> to vector<16x256xf32>
    %124 = arith.mulf %107, %122 : vector<16x256xf32>
    %125 = vector.extract_strided_slice %124 {offsets = [0, 0], sizes = [8, 256], strides = [1, 1]} : vector<16x256xf32> to vector<8x256xf32>
    %cst_67 = arith.constant dense<0.000000e+00> : vector<256xf32>
    %126 = vector.multi_reduction <add>, %125, %cst_67 [0] : vector<8x256xf32> to vector<256xf32>
    %127 = vector.shape_cast %126 : vector<256xf32> to vector<1x256xf32>
    %128 = vector.extract_strided_slice %124 {offsets = [8, 0], sizes = [8, 256], strides = [1, 1]} : vector<16x256xf32> to vector<8x256xf32>
    %cst_68 = arith.constant dense<0.000000e+00> : vector<256xf32>
    %129 = vector.multi_reduction <add>, %128, %cst_68 [0] : vector<8x256xf32> to vector<256xf32>
    %130 = vector.shape_cast %129 : vector<256xf32> to vector<1x256xf32>
    %131 = tpu.concatenate %127, %130 in 0 : vector<1x256xf32>, vector<1x256xf32> -> vector<2x256xf32>
    %132 = vector.extract_strided_slice %120 {offsets = [0, 0], sizes = [16, 256], strides = [1, 1]} : vector<16x1024xf32> to vector<16x256xf32>
    %133 = arith.mulf %107, %132 : vector<16x256xf32>
    %134 = vector.extract_strided_slice %133 {offsets = [0, 0], sizes = [8, 256], strides = [1, 1]} : vector<16x256xf32> to vector<8x256xf32>
    %cst_69 = arith.constant dense<0.000000e+00> : vector<256xf32>
    %135 = vector.multi_reduction <add>, %134, %cst_69 [0] : vector<8x256xf32> to vector<256xf32>
    %136 = vector.shape_cast %135 : vector<256xf32> to vector<1x256xf32>
    %137 = vector.extract_strided_slice %133 {offsets = [8, 0], sizes = [8, 256], strides = [1, 1]} : vector<16x256xf32> to vector<8x256xf32>
    %cst_70 = arith.constant dense<0.000000e+00> : vector<256xf32>
    %138 = vector.multi_reduction <add>, %137, %cst_70 [0] : vector<8x256xf32> to vector<256xf32>
    %139 = vector.shape_cast %138 : vector<256xf32> to vector<1x256xf32>
    %140 = tpu.concatenate %136, %139 in 0 : vector<1x256xf32>, vector<1x256xf32> -> vector<2x256xf32>
    %141 = arith.addf %140, %131 : vector<2x256xf32>
    %cst_71 = arith.constant 0.353553385 : f32
    %142 = vector.broadcast %cst_71 : f32 to vector<2x256xf32>
    %143 = arith.mulf %141, %142 : vector<2x256xf32>
    %144 = vector.extract_strided_slice %100 {offsets = [0, 0], sizes = [1, 256], strides = [1, 1]} : vector<4x256xf32> to vector<1x256xf32>
    %145 = vector.broadcast %144 : vector<1x256xf32> to vector<2x256xf32>
    %146 = arith.addf %143, %145 : vector<2x256xf32>
    %147 = vector.extract_strided_slice %120 {offsets = [0, 256], sizes = [16, 256], strides = [1, 1]} : vector<16x1024xf32> to vector<16x256xf32>
    %148 = arith.mulf %107, %147 : vector<16x256xf32>
    %149 = vector.extract_strided_slice %148 {offsets = [0, 0], sizes = [8, 256], strides = [1, 1]} : vector<16x256xf32> to vector<8x256xf32>
    %cst_72 = arith.constant dense<0.000000e+00> : vector<256xf32>
    %150 = vector.multi_reduction <add>, %149, %cst_72 [0] : vector<8x256xf32> to vector<256xf32>
    %151 = vector.shape_cast %150 : vector<256xf32> to vector<1x256xf32>
    %152 = vector.extract_strided_slice %148 {offsets = [8, 0], sizes = [8, 256], strides = [1, 1]} : vector<16x256xf32> to vector<8x256xf32>
    %cst_73 = arith.constant dense<0.000000e+00> : vector<256xf32>
    %153 = vector.multi_reduction <add>, %152, %cst_73 [0] : vector<8x256xf32> to vector<256xf32>
    %154 = vector.shape_cast %153 : vector<256xf32> to vector<1x256xf32>
    %155 = tpu.concatenate %151, %154 in 0 : vector<1x256xf32>, vector<1x256xf32> -> vector<2x256xf32>
    %156 = arith.addf %155, %131 : vector<2x256xf32>
    %cst_74 = arith.constant 0.353553385 : f32
    %157 = vector.broadcast %cst_74 : f32 to vector<2x256xf32>
    %158 = arith.mulf %156, %157 : vector<2x256xf32>
    %159 = vector.extract_strided_slice %100 {offsets = [1, 0], sizes = [1, 256], strides = [1, 1]} : vector<4x256xf32> to vector<1x256xf32>
    %160 = vector.broadcast %159 : vector<1x256xf32> to vector<2x256xf32>
    %161 = arith.addf %158, %160 : vector<2x256xf32>
    %162 = vector.extract_strided_slice %120 {offsets = [0, 512], sizes = [16, 256], strides = [1, 1]} : vector<16x1024xf32> to vector<16x256xf32>
    %163 = arith.mulf %107, %162 : vector<16x256xf32>
    %164 = vector.extract_strided_slice %163 {offsets = [0, 0], sizes = [8, 256], strides = [1, 1]} : vector<16x256xf32> to vector<8x256xf32>
    %cst_75 = arith.constant dense<0.000000e+00> : vector<256xf32>
    %165 = vector.multi_reduction <add>, %164, %cst_75 [0] : vector<8x256xf32> to vector<256xf32>
    %166 = vector.shape_cast %165 : vector<256xf32> to vector<1x256xf32>
    %167 = vector.extract_strided_slice %163 {offsets = [8, 0], sizes = [8, 256], strides = [1, 1]} : vector<16x256xf32> to vector<8x256xf32>
    %cst_76 = arith.constant dense<0.000000e+00> : vector<256xf32>
    %168 = vector.multi_reduction <add>, %167, %cst_76 [0] : vector<8x256xf32> to vector<256xf32>
    %169 = vector.shape_cast %168 : vector<256xf32> to vector<1x256xf32>
    %170 = tpu.concatenate %166, %169 in 0 : vector<1x256xf32>, vector<1x256xf32> -> vector<2x256xf32>
    %171 = arith.addf %170, %131 : vector<2x256xf32>
    %cst_77 = arith.constant 0.353553385 : f32
    %172 = vector.broadcast %cst_77 : f32 to vector<2x256xf32>
    %173 = arith.mulf %171, %172 : vector<2x256xf32>
    %174 = vector.extract_strided_slice %100 {offsets = [2, 0], sizes = [1, 256], strides = [1, 1]} : vector<4x256xf32> to vector<1x256xf32>
    %175 = vector.broadcast %174 : vector<1x256xf32> to vector<2x256xf32>
    %176 = arith.addf %173, %175 : vector<2x256xf32>
    %177 = vector.extract_strided_slice %120 {offsets = [0, 768], sizes = [16, 256], strides = [1, 1]} : vector<16x1024xf32> to vector<16x256xf32>
    %178 = arith.mulf %107, %177 : vector<16x256xf32>
    %179 = vector.extract_strided_slice %178 {offsets = [0, 0], sizes = [8, 256], strides = [1, 1]} : vector<16x256xf32> to vector<8x256xf32>
    %cst_78 = arith.constant dense<0.000000e+00> : vector<256xf32>
    %180 = vector.multi_reduction <add>, %179, %cst_78 [0] : vector<8x256xf32> to vector<256xf32>
    %181 = vector.shape_cast %180 : vector<256xf32> to vector<1x256xf32>
    %182 = vector.extract_strided_slice %178 {offsets = [8, 0], sizes = [8, 256], strides = [1, 1]} : vector<16x256xf32> to vector<8x256xf32>
    %cst_79 = arith.constant dense<0.000000e+00> : vector<256xf32>
    %183 = vector.multi_reduction <add>, %182, %cst_79 [0] : vector<8x256xf32> to vector<256xf32>
    %184 = vector.shape_cast %183 : vector<256xf32> to vector<1x256xf32>
    %185 = tpu.concatenate %181, %184 in 0 : vector<1x256xf32>, vector<1x256xf32> -> vector<2x256xf32>
    %186 = arith.addf %185, %131 : vector<2x256xf32>
    %cst_80 = arith.constant 0.353553385 : f32
    %187 = vector.broadcast %cst_80 : f32 to vector<2x256xf32>
    %188 = arith.mulf %186, %187 : vector<2x256xf32>
    %189 = vector.extract_strided_slice %100 {offsets = [3, 0], sizes = [1, 256], strides = [1, 1]} : vector<4x256xf32> to vector<1x256xf32>
    %190 = vector.broadcast %189 : vector<1x256xf32> to vector<2x256xf32>
    %191 = arith.addf %188, %190 : vector<2x256xf32>
    %192 = arith.maximumf %146, %161 : vector<2x256xf32>
    %193 = arith.maximumf %192, %176 : vector<2x256xf32>
    %194 = arith.maximumf %193, %191 : vector<2x256xf32>
    %195 = arith.subf %146, %194 : vector<2x256xf32>
    %196 = math.exp %195 : vector<2x256xf32>
    %197 = arith.subf %161, %194 : vector<2x256xf32>
    %198 = math.exp %197 : vector<2x256xf32>
    %199 = arith.subf %176, %194 : vector<2x256xf32>
    %200 = math.exp %199 : vector<2x256xf32>
    %201 = arith.subf %191, %194 : vector<2x256xf32>
    %202 = math.exp %201 : vector<2x256xf32>
    %203 = arith.addf %196, %198 : vector<2x256xf32>
    %204 = arith.addf %203, %200 : vector<2x256xf32>
    %205 = arith.addf %204, %202 : vector<2x256xf32>
    %cst_81 = arith.constant 1.000000e+00 : f32
    %206 = vector.broadcast %cst_81 : f32 to vector<2x256xf32>
    %207 = arith.divf %206, %205 : vector<2x256xf32>
    %208 = arith.mulf %196, %207 : vector<2x256xf32>
    %209 = vector.shape_cast %208 : vector<2x256xf32> to vector<2x1x256xf32>
    %210 = vector.shape_cast %209 : vector<2x1x256xf32> to vector<2x1x256xf32>
    %211 = vector.broadcast %210 : vector<2x1x256xf32> to vector<2x8x256xf32>
    %212 = vector.shape_cast %211 : vector<2x8x256xf32> to vector<16x256xf32>
    %213 = vector.extract_strided_slice %121 {offsets = [0, 0], sizes = [16, 256], strides = [1, 1]} : vector<16x1024xf32> to vector<16x256xf32>
    %214 = arith.mulf %212, %213 : vector<16x256xf32>
    %215 = arith.addf %123, %214 : vector<16x256xf32>
    %216 = arith.mulf %198, %207 : vector<2x256xf32>
    %217 = vector.shape_cast %216 : vector<2x256xf32> to vector<2x1x256xf32>
    %218 = vector.shape_cast %217 : vector<2x1x256xf32> to vector<2x1x256xf32>
    %219 = vector.broadcast %218 : vector<2x1x256xf32> to vector<2x8x256xf32>
    %220 = vector.shape_cast %219 : vector<2x8x256xf32> to vector<16x256xf32>
    %221 = vector.extract_strided_slice %121 {offsets = [0, 256], sizes = [16, 256], strides = [1, 1]} : vector<16x1024xf32> to vector<16x256xf32>
    %222 = arith.mulf %220, %221 : vector<16x256xf32>
    %223 = arith.addf %215, %222 : vector<16x256xf32>
    %224 = arith.mulf %200, %207 : vector<2x256xf32>
    %225 = vector.shape_cast %224 : vector<2x256xf32> to vector<2x1x256xf32>
    %226 = vector.shape_cast %225 : vector<2x1x256xf32> to vector<2x1x256xf32>
    %227 = vector.broadcast %226 : vector<2x1x256xf32> to vector<2x8x256xf32>
    %228 = vector.shape_cast %227 : vector<2x8x256xf32> to vector<16x256xf32>
    %229 = vector.extract_strided_slice %121 {offsets = [0, 512], sizes = [16, 256], strides = [1, 1]} : vector<16x1024xf32> to vector<16x256xf32>
    %230 = arith.mulf %228, %229 : vector<16x256xf32>
    %231 = arith.addf %223, %230 : vector<16x256xf32>
    %232 = arith.mulf %202, %207 : vector<2x256xf32>
    %233 = vector.shape_cast %232 : vector<2x256xf32> to vector<2x1x256xf32>
    %234 = vector.shape_cast %233 : vector<2x1x256xf32> to vector<2x1x256xf32>
    %235 = vector.broadcast %234 : vector<2x1x256xf32> to vector<2x8x256xf32>
    %236 = vector.shape_cast %235 : vector<2x8x256xf32> to vector<16x256xf32>
    %237 = vector.extract_strided_slice %121 {offsets = [0, 768], sizes = [16, 256], strides = [1, 1]} : vector<16x1024xf32> to vector<16x256xf32>
    %238 = arith.mulf %236, %237 : vector<16x256xf32>
    %239 = arith.addf %231, %238 : vector<16x256xf32>
    %c0_82 = arith.constant 0 : index
    %c0_83 = arith.constant 0 : index
    %c0_84 = arith.constant 0 : index
    %240 = vector.load %arg24[%c0_82, %c0_83, %c0_84] : memref<2x8x16xf32, #tpu.memory_space<vmem>>, vector<1x8x16xf32>
    %241 = vector.shape_cast %240 : vector<1x8x16xf32> to vector<8x16xf32>
    %cst_85 = arith.constant dense<0.000000e+00> : vector<8x256xf32>
    %242 = tpu.matmul %241, %239, %cst_85 {dimension_numbers = #tpu.dot_dimension_numbers<[1], [0], [0], [1], [0, 0, 1, 1], [], []>} : vector<8x16xf32>, vector<16x256xf32>, vector<8x256xf32> -> vector<8x256xf32>
    %c0_86 = arith.constant 0 : index
    %c0_87 = arith.constant 0 : index
    %c0_88 = arith.constant 0 : index
    %243 = vector.load %arg25[%c0_86, %c0_87, %c0_88] : memref<2x8x1xf32, #tpu.memory_space<vmem>>, vector<1x8x1xf32>
    %244 = vector.shape_cast %243 : vector<1x8x1xf32> to vector<8x1xf32>
    %245 = vector.broadcast %244 : vector<8x1xf32> to vector<8x256xf32>
    %246 = arith.addf %242, %245 : vector<8x256xf32>
    %c1 = arith.constant 1 : index
    %c0_89 = arith.constant 0 : index
    %c0_90 = arith.constant 0 : index
    %247 = vector.load %arg19[%c1, %c0_89, %c0_90] : memref<2x16x8xf32, #tpu.memory_space<vmem>>, vector<1x16x8xf32>
    %248 = vector.shape_cast %247 : vector<1x16x8xf32> to vector<16x8xf32>
    %cst_91 = arith.constant dense<0.000000e+00> : vector<16x256xf32>
    %249 = tpu.matmul %248, %246, %cst_91 {dimension_numbers = #tpu.dot_dimension_numbers<[1], [0], [0], [1], [0, 0, 1, 1], [], []>} : vector<16x8xf32>, vector<8x256xf32>, vector<16x256xf32> -> vector<16x256xf32>
    %c1_92 = arith.constant 1 : index
    %c0_93 = arith.constant 0 : index
    %c0_94 = arith.constant 0 : index
    %250 = vector.load %arg20[%c1_92, %c0_93, %c0_94] : memref<2x16x1xf32, #tpu.memory_space<vmem>>, vector<1x16x1xf32>
    %251 = vector.shape_cast %250 : vector<1x16x1xf32> to vector<16x1xf32>
    %252 = vector.broadcast %251 : vector<16x1xf32> to vector<16x256xf32>
    %253 = arith.addf %249, %252 : vector<16x256xf32>
    %cst_95 = arith.constant dense<0.000000e+00> : vector<8x1024xf32>
    %254 = tpu.matmul %246, %3, %cst_95 {dimension_numbers = #tpu.dot_dimension_numbers<[1], [0], [0], [1], [0, 0, 1, 1], [], []>} : vector<8x256xf32>, vector<256x1024xf32>, vector<8x1024xf32> -> vector<8x1024xf32>
    %255 = tpu.concatenate %254, %1 in 0 : vector<8x1024xf32>, vector<8x1024xf32> -> vector<16x1024xf32>
    %c1_96 = arith.constant 1 : index
    %c0_97 = arith.constant 0 : index
    %c0_98 = arith.constant 0 : index
    %256 = vector.load %arg21[%c1_96, %c0_97, %c0_98] : memref<2x32x16xf32, #tpu.memory_space<vmem>>, vector<1x32x16xf32>
    %257 = vector.shape_cast %256 : vector<1x32x16xf32> to vector<32x16xf32>
    %cst_99 = arith.constant dense<0.000000e+00> : vector<32x1024xf32>
    %258 = tpu.matmul %257, %255, %cst_99 {dimension_numbers = #tpu.dot_dimension_numbers<[1], [0], [0], [1], [0, 0, 1, 1], [], []>} : vector<32x16xf32>, vector<16x1024xf32>, vector<32x1024xf32> -> vector<32x1024xf32>
    %c1_100 = arith.constant 1 : index
    %c0_101 = arith.constant 0 : index
    %c0_102 = arith.constant 0 : index
    %259 = vector.load %arg22[%c1_100, %c0_101, %c0_102] : memref<2x32x8xf32, #tpu.memory_space<vmem>>, vector<1x32x8xf32>
    %260 = vector.shape_cast %259 : vector<1x32x8xf32> to vector<32x8xf32>
    %cst_103 = arith.constant dense<0.000000e+00> : vector<32x256xf32>
    %261 = tpu.matmul %260, %95, %cst_103 {dimension_numbers = #tpu.dot_dimension_numbers<[1], [0], [0], [1], [0, 0, 1, 1], [], []>} : vector<32x8xf32>, vector<8x256xf32>, vector<32x256xf32> -> vector<32x256xf32>
    %c1_104 = arith.constant 1 : index
    %c0_105 = arith.constant 0 : index
    %c0_106 = arith.constant 0 : index
    %262 = vector.load %arg23[%c1_104, %c0_105, %c0_106] : memref<2x32x1xf32, #tpu.memory_space<vmem>>, vector<1x32x1xf32>
    %263 = vector.shape_cast %262 : vector<1x32x1xf32> to vector<32x1xf32>
    %264 = vector.broadcast %263 : vector<32x1xf32> to vector<32x256xf32>
    %265 = arith.addf %261, %264 : vector<32x256xf32>
    %266 = vector.extract_strided_slice %258 {offsets = [0, 0], sizes = [16, 1024], strides = [1, 1]} : vector<32x1024xf32> to vector<16x1024xf32>
    %267 = vector.extract_strided_slice %258 {offsets = [16, 0], sizes = [16, 1024], strides = [1, 1]} : vector<32x1024xf32> to vector<16x1024xf32>
    %268 = vector.extract_strided_slice %265 {offsets = [0, 0], sizes = [16, 256], strides = [1, 1]} : vector<32x256xf32> to vector<16x256xf32>
    %269 = vector.extract_strided_slice %265 {offsets = [16, 0], sizes = [16, 256], strides = [1, 1]} : vector<32x256xf32> to vector<16x256xf32>
    %270 = arith.mulf %253, %268 : vector<16x256xf32>
    %271 = vector.extract_strided_slice %270 {offsets = [0, 0], sizes = [8, 256], strides = [1, 1]} : vector<16x256xf32> to vector<8x256xf32>
    %cst_107 = arith.constant dense<0.000000e+00> : vector<256xf32>
    %272 = vector.multi_reduction <add>, %271, %cst_107 [0] : vector<8x256xf32> to vector<256xf32>
    %273 = vector.shape_cast %272 : vector<256xf32> to vector<1x256xf32>
    %274 = vector.extract_strided_slice %270 {offsets = [8, 0], sizes = [8, 256], strides = [1, 1]} : vector<16x256xf32> to vector<8x256xf32>
    %cst_108 = arith.constant dense<0.000000e+00> : vector<256xf32>
    %275 = vector.multi_reduction <add>, %274, %cst_108 [0] : vector<8x256xf32> to vector<256xf32>
    %276 = vector.shape_cast %275 : vector<256xf32> to vector<1x256xf32>
    %277 = tpu.concatenate %273, %276 in 0 : vector<1x256xf32>, vector<1x256xf32> -> vector<2x256xf32>
    %278 = vector.extract_strided_slice %266 {offsets = [0, 0], sizes = [16, 256], strides = [1, 1]} : vector<16x1024xf32> to vector<16x256xf32>
    %279 = arith.mulf %253, %278 : vector<16x256xf32>
    %280 = vector.extract_strided_slice %279 {offsets = [0, 0], sizes = [8, 256], strides = [1, 1]} : vector<16x256xf32> to vector<8x256xf32>
    %cst_109 = arith.constant dense<0.000000e+00> : vector<256xf32>
    %281 = vector.multi_reduction <add>, %280, %cst_109 [0] : vector<8x256xf32> to vector<256xf32>
    %282 = vector.shape_cast %281 : vector<256xf32> to vector<1x256xf32>
    %283 = vector.extract_strided_slice %279 {offsets = [8, 0], sizes = [8, 256], strides = [1, 1]} : vector<16x256xf32> to vector<8x256xf32>
    %cst_110 = arith.constant dense<0.000000e+00> : vector<256xf32>
    %284 = vector.multi_reduction <add>, %283, %cst_110 [0] : vector<8x256xf32> to vector<256xf32>
    %285 = vector.shape_cast %284 : vector<256xf32> to vector<1x256xf32>
    %286 = tpu.concatenate %282, %285 in 0 : vector<1x256xf32>, vector<1x256xf32> -> vector<2x256xf32>
    %287 = arith.addf %286, %277 : vector<2x256xf32>
    %cst_111 = arith.constant 0.353553385 : f32
    %288 = vector.broadcast %cst_111 : f32 to vector<2x256xf32>
    %289 = arith.mulf %287, %288 : vector<2x256xf32>
    %290 = vector.extract_strided_slice %100 {offsets = [0, 0], sizes = [1, 256], strides = [1, 1]} : vector<4x256xf32> to vector<1x256xf32>
    %291 = vector.broadcast %290 : vector<1x256xf32> to vector<2x256xf32>
    %292 = arith.addf %289, %291 : vector<2x256xf32>
    %293 = vector.extract_strided_slice %266 {offsets = [0, 256], sizes = [16, 256], strides = [1, 1]} : vector<16x1024xf32> to vector<16x256xf32>
    %294 = arith.mulf %253, %293 : vector<16x256xf32>
    %295 = vector.extract_strided_slice %294 {offsets = [0, 0], sizes = [8, 256], strides = [1, 1]} : vector<16x256xf32> to vector<8x256xf32>
    %cst_112 = arith.constant dense<0.000000e+00> : vector<256xf32>
    %296 = vector.multi_reduction <add>, %295, %cst_112 [0] : vector<8x256xf32> to vector<256xf32>
    %297 = vector.shape_cast %296 : vector<256xf32> to vector<1x256xf32>
    %298 = vector.extract_strided_slice %294 {offsets = [8, 0], sizes = [8, 256], strides = [1, 1]} : vector<16x256xf32> to vector<8x256xf32>
    %cst_113 = arith.constant dense<0.000000e+00> : vector<256xf32>
    %299 = vector.multi_reduction <add>, %298, %cst_113 [0] : vector<8x256xf32> to vector<256xf32>
    %300 = vector.shape_cast %299 : vector<256xf32> to vector<1x256xf32>
    %301 = tpu.concatenate %297, %300 in 0 : vector<1x256xf32>, vector<1x256xf32> -> vector<2x256xf32>
    %302 = arith.addf %301, %277 : vector<2x256xf32>
    %cst_114 = arith.constant 0.353553385 : f32
    %303 = vector.broadcast %cst_114 : f32 to vector<2x256xf32>
    %304 = arith.mulf %302, %303 : vector<2x256xf32>
    %305 = vector.extract_strided_slice %100 {offsets = [1, 0], sizes = [1, 256], strides = [1, 1]} : vector<4x256xf32> to vector<1x256xf32>
    %306 = vector.broadcast %305 : vector<1x256xf32> to vector<2x256xf32>
    %307 = arith.addf %304, %306 : vector<2x256xf32>
    %308 = vector.extract_strided_slice %266 {offsets = [0, 512], sizes = [16, 256], strides = [1, 1]} : vector<16x1024xf32> to vector<16x256xf32>
    %309 = arith.mulf %253, %308 : vector<16x256xf32>
    %310 = vector.extract_strided_slice %309 {offsets = [0, 0], sizes = [8, 256], strides = [1, 1]} : vector<16x256xf32> to vector<8x256xf32>
    %cst_115 = arith.constant dense<0.000000e+00> : vector<256xf32>
    %311 = vector.multi_reduction <add>, %310, %cst_115 [0] : vector<8x256xf32> to vector<256xf32>
    %312 = vector.shape_cast %311 : vector<256xf32> to vector<1x256xf32>
    %313 = vector.extract_strided_slice %309 {offsets = [8, 0], sizes = [8, 256], strides = [1, 1]} : vector<16x256xf32> to vector<8x256xf32>
    %cst_116 = arith.constant dense<0.000000e+00> : vector<256xf32>
    %314 = vector.multi_reduction <add>, %313, %cst_116 [0] : vector<8x256xf32> to vector<256xf32>
    %315 = vector.shape_cast %314 : vector<256xf32> to vector<1x256xf32>
    %316 = tpu.concatenate %312, %315 in 0 : vector<1x256xf32>, vector<1x256xf32> -> vector<2x256xf32>
    %317 = arith.addf %316, %277 : vector<2x256xf32>
    %cst_117 = arith.constant 0.353553385 : f32
    %318 = vector.broadcast %cst_117 : f32 to vector<2x256xf32>
    %319 = arith.mulf %317, %318 : vector<2x256xf32>
    %320 = vector.extract_strided_slice %100 {offsets = [2, 0], sizes = [1, 256], strides = [1, 1]} : vector<4x256xf32> to vector<1x256xf32>
    %321 = vector.broadcast %320 : vector<1x256xf32> to vector<2x256xf32>
    %322 = arith.addf %319, %321 : vector<2x256xf32>
    %323 = vector.extract_strided_slice %266 {offsets = [0, 768], sizes = [16, 256], strides = [1, 1]} : vector<16x1024xf32> to vector<16x256xf32>
    %324 = arith.mulf %253, %323 : vector<16x256xf32>
    %325 = vector.extract_strided_slice %324 {offsets = [0, 0], sizes = [8, 256], strides = [1, 1]} : vector<16x256xf32> to vector<8x256xf32>
    %cst_118 = arith.constant dense<0.000000e+00> : vector<256xf32>
    %326 = vector.multi_reduction <add>, %325, %cst_118 [0] : vector<8x256xf32> to vector<256xf32>
    %327 = vector.shape_cast %326 : vector<256xf32> to vector<1x256xf32>
    %328 = vector.extract_strided_slice %324 {offsets = [8, 0], sizes = [8, 256], strides = [1, 1]} : vector<16x256xf32> to vector<8x256xf32>
    %cst_119 = arith.constant dense<0.000000e+00> : vector<256xf32>
    %329 = vector.multi_reduction <add>, %328, %cst_119 [0] : vector<8x256xf32> to vector<256xf32>
    %330 = vector.shape_cast %329 : vector<256xf32> to vector<1x256xf32>
    %331 = tpu.concatenate %327, %330 in 0 : vector<1x256xf32>, vector<1x256xf32> -> vector<2x256xf32>
    %332 = arith.addf %331, %277 : vector<2x256xf32>
    %cst_120 = arith.constant 0.353553385 : f32
    %333 = vector.broadcast %cst_120 : f32 to vector<2x256xf32>
    %334 = arith.mulf %332, %333 : vector<2x256xf32>
    %335 = vector.extract_strided_slice %100 {offsets = [3, 0], sizes = [1, 256], strides = [1, 1]} : vector<4x256xf32> to vector<1x256xf32>
    %336 = vector.broadcast %335 : vector<1x256xf32> to vector<2x256xf32>
    %337 = arith.addf %334, %336 : vector<2x256xf32>
    %338 = arith.maximumf %292, %307 : vector<2x256xf32>
    %339 = arith.maximumf %338, %322 : vector<2x256xf32>
    %340 = arith.maximumf %339, %337 : vector<2x256xf32>
    %341 = arith.subf %292, %340 : vector<2x256xf32>
    %342 = math.exp %341 : vector<2x256xf32>
    %343 = arith.subf %307, %340 : vector<2x256xf32>
    %344 = math.exp %343 : vector<2x256xf32>
    %345 = arith.subf %322, %340 : vector<2x256xf32>
    %346 = math.exp %345 : vector<2x256xf32>
    %347 = arith.subf %337, %340 : vector<2x256xf32>
    %348 = math.exp %347 : vector<2x256xf32>
    %349 = arith.addf %342, %344 : vector<2x256xf32>
    %350 = arith.addf %349, %346 : vector<2x256xf32>
    %351 = arith.addf %350, %348 : vector<2x256xf32>
    %cst_121 = arith.constant 1.000000e+00 : f32
    %352 = vector.broadcast %cst_121 : f32 to vector<2x256xf32>
    %353 = arith.divf %352, %351 : vector<2x256xf32>
    %354 = arith.mulf %342, %353 : vector<2x256xf32>
    %355 = vector.shape_cast %354 : vector<2x256xf32> to vector<2x1x256xf32>
    %356 = vector.shape_cast %355 : vector<2x1x256xf32> to vector<2x1x256xf32>
    %357 = vector.broadcast %356 : vector<2x1x256xf32> to vector<2x8x256xf32>
    %358 = vector.shape_cast %357 : vector<2x8x256xf32> to vector<16x256xf32>
    %359 = vector.extract_strided_slice %267 {offsets = [0, 0], sizes = [16, 256], strides = [1, 1]} : vector<16x1024xf32> to vector<16x256xf32>
    %360 = arith.mulf %358, %359 : vector<16x256xf32>
    %361 = arith.addf %269, %360 : vector<16x256xf32>
    %362 = arith.mulf %344, %353 : vector<2x256xf32>
    %363 = vector.shape_cast %362 : vector<2x256xf32> to vector<2x1x256xf32>
    %364 = vector.shape_cast %363 : vector<2x1x256xf32> to vector<2x1x256xf32>
    %365 = vector.broadcast %364 : vector<2x1x256xf32> to vector<2x8x256xf32>
    %366 = vector.shape_cast %365 : vector<2x8x256xf32> to vector<16x256xf32>
    %367 = vector.extract_strided_slice %267 {offsets = [0, 256], sizes = [16, 256], strides = [1, 1]} : vector<16x1024xf32> to vector<16x256xf32>
    %368 = arith.mulf %366, %367 : vector<16x256xf32>
    %369 = arith.addf %361, %368 : vector<16x256xf32>
    %370 = arith.mulf %346, %353 : vector<2x256xf32>
    %371 = vector.shape_cast %370 : vector<2x256xf32> to vector<2x1x256xf32>
    %372 = vector.shape_cast %371 : vector<2x1x256xf32> to vector<2x1x256xf32>
    %373 = vector.broadcast %372 : vector<2x1x256xf32> to vector<2x8x256xf32>
    %374 = vector.shape_cast %373 : vector<2x8x256xf32> to vector<16x256xf32>
    %375 = vector.extract_strided_slice %267 {offsets = [0, 512], sizes = [16, 256], strides = [1, 1]} : vector<16x1024xf32> to vector<16x256xf32>
    %376 = arith.mulf %374, %375 : vector<16x256xf32>
    %377 = arith.addf %369, %376 : vector<16x256xf32>
    %378 = arith.mulf %348, %353 : vector<2x256xf32>
    %379 = vector.shape_cast %378 : vector<2x256xf32> to vector<2x1x256xf32>
    %380 = vector.shape_cast %379 : vector<2x1x256xf32> to vector<2x1x256xf32>
    %381 = vector.broadcast %380 : vector<2x1x256xf32> to vector<2x8x256xf32>
    %382 = vector.shape_cast %381 : vector<2x8x256xf32> to vector<16x256xf32>
    %383 = vector.extract_strided_slice %267 {offsets = [0, 768], sizes = [16, 256], strides = [1, 1]} : vector<16x1024xf32> to vector<16x256xf32>
    %384 = arith.mulf %382, %383 : vector<16x256xf32>
    %385 = arith.addf %377, %384 : vector<16x256xf32>
    %c1_122 = arith.constant 1 : index
    %c0_123 = arith.constant 0 : index
    %c0_124 = arith.constant 0 : index
    %386 = vector.load %arg24[%c1_122, %c0_123, %c0_124] : memref<2x8x16xf32, #tpu.memory_space<vmem>>, vector<1x8x16xf32>
    %387 = vector.shape_cast %386 : vector<1x8x16xf32> to vector<8x16xf32>
    %cst_125 = arith.constant dense<0.000000e+00> : vector<8x256xf32>
    %388 = tpu.matmul %387, %385, %cst_125 {dimension_numbers = #tpu.dot_dimension_numbers<[1], [0], [0], [1], [0, 0, 1, 1], [], []>} : vector<8x16xf32>, vector<16x256xf32>, vector<8x256xf32> -> vector<8x256xf32>
    %c1_126 = arith.constant 1 : index
    %c0_127 = arith.constant 0 : index
    %c0_128 = arith.constant 0 : index
    %389 = vector.load %arg25[%c1_126, %c0_127, %c0_128] : memref<2x8x1xf32, #tpu.memory_space<vmem>>, vector<1x8x1xf32>
    %390 = vector.shape_cast %389 : vector<1x8x1xf32> to vector<8x1xf32>
    %391 = vector.broadcast %390 : vector<8x1xf32> to vector<8x256xf32>
    %392 = arith.addf %388, %391 : vector<8x256xf32>
    %c0_129 = arith.constant 0 : index
    %c0_130 = arith.constant 0 : index
    %393 = vector.load %arg26[%c0_129, %c0_130] : memref<8x256xf32, #tpu.memory_space<vmem>>, vector<8x256xf32>
    tpu.vector_store %arg26[%c0_129, %c0_130], %392 {strides = array<i32>} : memref<8x256xf32, #tpu.memory_space<vmem>>, vector<8x256xf32>,
    return
  }
  func.func @transform_0(%arg0: i32) -> (i32, i32) {
    %c0_i32 = arith.constant 0 : i32
    %c0_i32_0 = arith.constant 0 : i32
    return %c0_i32, %arg0 : i32, i32
  }
  func.func @transform_1(%arg0: i32) -> (i32, i32) {
    %c0_i32 = arith.constant 0 : i32
    %c0_i32_0 = arith.constant 0 : i32
    return %c0_i32, %arg0 : i32, i32
  }
  func.func @transform_2(%arg0: i32) -> (i32, i32) {
    %c0_i32 = arith.constant 0 : i32
    %c0_i32_0 = arith.constant 0 : i32
    return %c0_i32, %arg0 : i32, i32
  }
  func.func @transform_3(%arg0: i32) -> (i32, i32) {
    %c0_i32 = arith.constant 0 : i32
    %c0_i32_0 = arith.constant 0 : i32
    %c0_i32_1 = arith.constant 0 : i32
    return %c0_i32, %c0_i32_0 : i32, i32
  }
  func.func @transform_4(%arg0: i32) -> (i32, i32) {
    %c0_i32 = arith.constant 0 : i32
    %c0_i32_0 = arith.constant 0 : i32
    %c0_i32_1 = arith.constant 0 : i32
    return %c0_i32, %c0_i32_0 : i32, i32
  }
  func.func @transform_5(%arg0: i32) -> (i32, i32) {
    %c0_i32 = arith.constant 0 : i32
    %c0_i32_0 = arith.constant 0 : i32
    %c0_i32_1 = arith.constant 0 : i32
    return %c0_i32, %c0_i32_0 : i32, i32
  }
  func.func @transform_6(%arg0: i32) -> (i32, i32) {
    %c0_i32 = arith.constant 0 : i32
    %c0_i32_0 = arith.constant 0 : i32
    %c0_i32_1 = arith.constant 0 : i32
    return %c0_i32, %c0_i32_0 : i32, i32
  }
  func.func @transform_7(%arg0: i32) -> (i32, i32) {
    %c0_i32 = arith.constant 0 : i32
    %c0_i32_0 = arith.constant 0 : i32
    %c0_i32_1 = arith.constant 0 : i32
    return %c0_i32, %c0_i32_0 : i32, i32
  }
  func.func @transform_8(%arg0: i32) -> (i32, i32) {
    %c0_i32 = arith.constant 0 : i32
    %c0_i32_0 = arith.constant 0 : i32
    %c0_i32_1 = arith.constant 0 : i32
    return %c0_i32, %c0_i32_0 : i32, i32
  }
  func.func @transform_9(%arg0: i32) -> (i32, i32) {
    %c0_i32 = arith.constant 0 : i32
    %c0_i32_0 = arith.constant 0 : i32
    %c0_i32_1 = arith.constant 0 : i32
    return %c0_i32, %c0_i32_0 : i32, i32
  }
  func.func @transform_10(%arg0: i32) -> (i32, i32) {
    %c0_i32 = arith.constant 0 : i32
    %c0_i32_0 = arith.constant 0 : i32
    %c0_i32_1 = arith.constant 0 : i32
    return %c0_i32, %c0_i32_0 : i32, i32
  }
  func.func @transform_11(%arg0: i32) -> (i32, i32) {
    %c0_i32 = arith.constant 0 : i32
    %c0_i32_0 = arith.constant 0 : i32
    %c0_i32_1 = arith.constant 0 : i32
    return %c0_i32, %c0_i32_0 : i32, i32
  }
  func.func @transform_12(%arg0: i32) -> (i32, i32) {
    %c0_i32 = arith.constant 0 : i32
    %c0_i32_0 = arith.constant 0 : i32
    %c0_i32_1 = arith.constant 0 : i32
    return %c0_i32, %c0_i32_0 : i32, i32
  }
  func.func @transform_13(%arg0: i32) -> (i32, i32) {
    %c0_i32 = arith.constant 0 : i32
    %c0_i32_0 = arith.constant 0 : i32
    %c0_i32_1 = arith.constant 0 : i32
    return %c0_i32, %c0_i32_0 : i32, i32
  }
  func.func @transform_14(%arg0: i32) -> (i32, i32) {
    %c0_i32 = arith.constant 0 : i32
    %c0_i32_0 = arith.constant 0 : i32
    %c0_i32_1 = arith.constant 0 : i32
    return %c0_i32, %c0_i32_0 : i32, i32
  }
  func.func @transform_15(%arg0: i32) -> (i32, i32) {
    %c0_i32 = arith.constant 0 : i32
    %c0_i32_0 = arith.constant 0 : i32
    %c0_i32_1 = arith.constant 0 : i32
    return %c0_i32, %c0_i32_0 : i32, i32
  }
  func.func @transform_16(%arg0: i32) -> (i32, i32) {
    %c0_i32 = arith.constant 0 : i32
    %c0_i32_0 = arith.constant 0 : i32
    %c0_i32_1 = arith.constant 0 : i32
    return %c0_i32, %c0_i32_0 : i32, i32
  }
  func.func @transform_17(%arg0: i32) -> (i32, i32) {
    %c0_i32 = arith.constant 0 : i32
    %c0_i32_0 = arith.constant 0 : i32
    %c0_i32_1 = arith.constant 0 : i32
    return %c0_i32, %c0_i32_0 : i32, i32
  }
  func.func @transform_18(%arg0: i32) -> (i32, i32, i32) {
    %c0_i32 = arith.constant 0 : i32
    %c0_i32_0 = arith.constant 0 : i32
    %c0_i32_1 = arith.constant 0 : i32
    %c0_i32_2 = arith.constant 0 : i32
    return %c0_i32, %c0_i32_0, %c0_i32_1 : i32, i32, i32
  }
  func.func @transform_19(%arg0: i32) -> (i32, i32, i32) {
    %c0_i32 = arith.constant 0 : i32
    %c0_i32_0 = arith.constant 0 : i32
    %c0_i32_1 = arith.constant 0 : i32
    %c0_i32_2 = arith.constant 0 : i32
    return %c0_i32, %c0_i32_0, %c0_i32_1 : i32, i32, i32
  }
  func.func @transform_20(%arg0: i32) -> (i32, i32, i32) {
    %c0_i32 = arith.constant 0 : i32
    %c0_i32_0 = arith.constant 0 : i32
    %c0_i32_1 = arith.constant 0 : i32
    %c0_i32_2 = arith.constant 0 : i32
    return %c0_i32, %c0_i32_0, %c0_i32_1 : i32, i32, i32
  }
  func.func @transform_21(%arg0: i32) -> (i32, i32, i32) {
    %c0_i32 = arith.constant 0 : i32
    %c0_i32_0 = arith.constant 0 : i32
    %c0_i32_1 = arith.constant 0 : i32
    %c0_i32_2 = arith.constant 0 : i32
    return %c0_i32, %c0_i32_0, %c0_i32_1 : i32, i32, i32
  }
  func.func @transform_22(%arg0: i32) -> (i32, i32, i32) {
    %c0_i32 = arith.constant 0 : i32
    %c0_i32_0 = arith.constant 0 : i32
    %c0_i32_1 = arith.constant 0 : i32
    %c0_i32_2 = arith.constant 0 : i32
    return %c0_i32, %c0_i32_0, %c0_i32_1 : i32, i32, i32
  }
  func.func @transform_23(%arg0: i32) -> (i32, i32, i32) {
    %c0_i32 = arith.constant 0 : i32
    %c0_i32_0 = arith.constant 0 : i32
    %c0_i32_1 = arith.constant 0 : i32
    %c0_i32_2 = arith.constant 0 : i32
    return %c0_i32, %c0_i32_0, %c0_i32_1 : i32, i32, i32
  }
  func.func @transform_24(%arg0: i32) -> (i32, i32, i32) {
    %c0_i32 = arith.constant 0 : i32
    %c0_i32_0 = arith.constant 0 : i32
    %c0_i32_1 = arith.constant 0 : i32
    %c0_i32_2 = arith.constant 0 : i32
    return %c0_i32, %c0_i32_0, %c0_i32_1 : i32, i32, i32
  }
  func.func @transform_25(%arg0: i32) -> (i32, i32) {
    %c0_i32 = arith.constant 0 : i32
    %c0_i32_0 = arith.constant 0 : i32
    return %c0_i32, %arg0 : i32, i32
  }
}

</mosaic_0001>

<llo_original>
// kernel: tile.7
$region0: #{tile.7}
  %s0 = inlined_call_operand.vmem [shape: f32[4,32,1,1,8], index: 0, kind: input, shape index: {}]
  %s1 = inlined_call_operand.vmem [shape: f32[4,256], index: 1, kind: output, shape index: {}]
  $region1: #{tile.7} parent=0
    #allocation0 [shape = 'u8[8192]{0}', space=vmem, size = 0x2000, scoped, tag = 'scoped mem for output reshape']
    %s2 = smov 3
    %v3 = vld [vmem:[%s0] ss:$16 sm:%s2]
    %s4 = smov 12
    %v5 = vld [vmem:[%s0] ss:$16 sm:%s4]
    %vm6 = vcmask 1043458
    %v7 = vsel %vm6, %v5, %v3
    %s8 = smov 48
    %v9 = vld [vmem:[%s0] ss:$16 sm:%s8]
    %vm10 = vcmask 1045508
    %v11 = vsel %vm10, %v9, %v7
    %s12 = smov 192
    %v13 = vld [vmem:[%s0] ss:$16 sm:%s12]
    %vm14 = vcmask 1047558
    %v15 = vsel %vm14, %v13, %v11
    %vm16 = vcmask 64512
    %17 = vst.msk [vmem:[#allocation0] ss:$8 sm:$0x3] %vm16, %v15
    %s18 = scalar_lea.vmem [#allocation0], 4294967281
    %19 = vst.msk [vmem:[%s18] ss:$8 sm:$0xc] %vm16, %v15
    %s20 = scalar_lea.vmem [#allocation0], 4294967266
    %21 = vst.msk [vmem:[%s20] ss:$8 sm:$0x30] %vm16, %v15
    %s22 = scalar_lea.vmem [#allocation0], 4294967251
    %23 = vst.msk [vmem:[%s22] ss:$8 sm:$0xc0] %vm16, %v15
    %s24 = scalar_lea.vmem %s0, 15
    %v25 = vld [vmem:[%s24] sm:$0x1]
    %s26 = scalar_lea.vmem %s0, 46
    %v27 = vld [vmem:[%s26] sm:$0x2]
    %vm28 = vcmask 1041409
    %v29 = vsel %vm28, %v27, %v25
    %s30 = scalar_lea.vmem %s0, 77
    %v31 = vld [vmem:[%s30] sm:$0x4]
    %vm32 = vcmask 1042434
    %v33 = vsel %vm32, %v31, %v29
    %s34 = scalar_lea.vmem %s0, 351
    %s35 = smov 24
    %v36 = vld [vmem:[%s34] ss:$-80 sm:%s35]
    %vm37 = vcmask 1044483
    %v38 = vsel %vm37, %v36, %v33
    %s39 = scalar_lea.vmem %s0, 58
    %v40 = vld [vmem:[%s39] sm:$0x20]
    %vm41 = vcmask 1045509
    %v42 = vsel %vm41, %v40, %v38
    %s43 = scalar_lea.vmem %s0, 89
    %v44 = vld [vmem:[%s43] sm:$0x40]
    %vm45 = vcmask 1046534
    %v46 = vsel %vm45, %v44, %v42
    %s47 = scalar_lea.vmem %s0, 120
    %v48 = vld [vmem:[%s47] sm:$0x80]
    %vm49 = vcmask 1047559
    %v50 = vsel %vm49, %v48, %v46
    %51 = vrot.lane.b32.xlu0 %v50, 120
    %v52 = vpop.permute.xlu0 %51
    %vm53 = vcmask 1048512
    %54 = vst.msk [vmem:[#allocation0] sm:$0xf] %vm53, %v52
    %s55 = scalar_lea.vmem [#allocation0], 4
    %56 = vst.msk [vmem:[%s55] sm:$0xf0] %vm53, %v52
    %s57 = scalar_lea.vmem %s0, 14
    %v58 = vld [vmem:[%s57] sm:$0x1]
    %s59 = scalar_lea.vmem %s0, 45
    %v60 = vld [vmem:[%s59] sm:$0x2]
    %vm61 = vcmask 1041409
    %v62 = vsel %vm61, %v60, %v58
    %s63 = scalar_lea.vmem %s0, 76
    %v64 = vld [vmem:[%s63] sm:$0x4]
    %vm65 = vcmask 1042434
    %v66 = vsel %vm65, %v64, %v62
    %s67 = scalar_lea.vmem %s0, 350
    %s68 = smov 24
    %v69 = vld [vmem:[%s67] ss:$-80 sm:%s68]
    %vm70 = vcmask 1044483
    %v71 = vsel %vm70, %v69, %v66
    %s72 = scalar_lea.vmem %s0, 57
    %v73 = vld [vmem:[%s72] sm:$0x20]
    %vm74 = vcmask 1045509
    %v75 = vsel %vm74, %v73, %v71
    %s76 = scalar_lea.vmem %s0, 88
    %v77 = vld [vmem:[%s76] sm:$0x40]
    %vm78 = vcmask 1046534
    %v79 = vsel %vm78, %v77, %v75
    %s80 = scalar_lea.vmem %s0, 119
    %v81 = vld [vmem:[%s80] sm:$0x80]
    %vm82 = vcmask 1047559
    %v83 = vsel %vm82, %v81, %v79
    %84 = vrot.lane.b32.xlu0 %v83, 112
    %v85 = vpop.permute.xlu0 %84
    %vm86 = vcmask 982912
    %87 = vst.msk [vmem:[#allocation0] sm:$0xf] %vm86, %v85
    %s88 = scalar_lea.vmem [#allocation0], 4
    %89 = vst.msk [vmem:[%s88] sm:$0xf0] %vm86, %v85
    %s90 = scalar_lea.vmem %s0, 13
    %v91 = vld [vmem:[%s90] sm:$0x1]
    %s92 = scalar_lea.vmem %s0, 44
    %v93 = vld [vmem:[%s92] sm:$0x2]
    %vm94 = vcmask 1041409
    %v95 = vsel %vm94, %v93, %v91
    %s96 = scalar_lea.vmem %s0, 75
    %v97 = vld [vmem:[%s96] sm:$0x4]
    %vm98 = vcmask 1042434
    %v99 = vsel %vm98, %v97, %v95
    %s100 = scalar_lea.vmem %s0, 349
    %s101 = smov 24
    %v102 = vld [vmem:[%s100] ss:$-80 sm:%s101]
    %vm103 = vcmask 1044483
    %v104 = vsel %vm103, %v102, %v99
    %s105 = scalar_lea.vmem %s0, 56
    %v106 = vld [vmem:[%s105] sm:$0x20]
    %vm107 = vcmask 1045509
    %v108 = vsel %vm107, %v106, %v104
    %s109 = scalar_lea.vmem %s0, 87
    %v110 = vld [vmem:[%s109] sm:$0x40]
    %vm111 = vcmask 1046534
    %v112 = vsel %vm111, %v110, %v108
    %s113 = scalar_lea.vmem %s0, 118
    %v114 = vld [vmem:[%s113] sm:$0x80]
    %vm115 = vcmask 1047559
    %v116 = vsel %vm115, %v114, %v112
    %117 = vrot.lane.b32.xlu0 %v116, 104
    %v118 = vpop.permute.xlu0 %117
    %vm119 = vcmask 917312
    %120 = vst.msk [vmem:[#allocation0] sm:$0xf] %vm119, %v118
    %s121 = scalar_lea.vmem [#allocation0], 4
    %122 = vst.msk [vmem:[%s121] sm:$0xf0] %vm119, %v118
    %s123 = scalar_lea.vmem %s0, 12
    %v124 = vld [vmem:[%s123] sm:$0x1]
    %s125 = scalar_lea.vmem %s0, 43
    %v126 = vld [vmem:[%s125] sm:$0x2]
    %vm127 = vcmask 1041409
    %v128 = vsel %vm127, %v126, %v124
    %s129 = scalar_lea.vmem %s0, 74
    %v130 = vld [vmem:[%s129] sm:$0x4]
    %vm131 = vcmask 1042434
    %v132 = vsel %vm131, %v130, %v128
    %s133 = scalar_lea.vmem %s0, 348
    %s134 = smov 24
    %v135 = vld [vmem:[%s133] ss:$-80 sm:%s134]
    %vm136 = vcmask 1044483
    %v137 = vsel %vm136, %v135, %v132
    %s138 = scalar_lea.vmem %s0, 55
    %v139 = vld [vmem:[%s138] sm:$0x20]
    %vm140 = vcmask 1045509
    %v141 = vsel %vm140, %v139, %v137
    %s142 = scalar_lea.vmem %s0, 86
    %v143 = vld [vmem:[%s142] sm:$0x40]
    %vm144 = vcmask 1046534
    %v145 = vsel %vm144, %v143, %v141
    %s146 = scalar_lea.vmem %s0, 117
    %v147 = vld [vmem:[%s146] sm:$0x80]
    %vm148 = vcmask 1047559
    %v149 = vsel %vm148, %v147, %v145
    %150 = vrot.lane.b32.xlu0 %v149, 96
    %v151 = vpop.permute.xlu0 %150
    %vm152 = vcmask 851712
    %153 = vst.msk [vmem:[#allocation0] sm:$0xf] %vm152, %v151
    %s154 = scalar_lea.vmem [#allocation0], 4
    %155 = vst.msk [vmem:[%s154] sm:$0xf0] %vm152, %v151
    %s156 = scalar_lea.vmem %s0, 11
    %v157 = vld [vmem:[%s156] sm:$0x1]
    %s158 = scalar_lea.vmem %s0, 42
    %v159 = vld [vmem:[%s158] sm:$0x2]
    %vm160 = vcmask 1041409
    %v161 = vsel %vm160, %v159, %v157
    %s162 = scalar_lea.vmem %s0, 73
    %v163 = vld [vmem:[%s162] sm:$0x4]
    %vm164 = vcmask 1042434
    %v165 = vsel %vm164, %v163, %v161
    %s166 = scalar_lea.vmem %s0, 347
    %s167 = smov 24
    %v168 = vld [vmem:[%s166] ss:$-80 sm:%s167]
    %vm169 = vcmask 1044483
    %v170 = vsel %vm169, %v168, %v165
    %s171 = scalar_lea.vmem %s0, 54
    %v172 = vld [vmem:[%s171] sm:$0x20]
    %vm173 = vcmask 1045509
    %v174 = vsel %vm173, %v172, %v170
    %s175 = scalar_lea.vmem %s0, 85
    %v176 = vld [vmem:[%s175] sm:$0x40]
    %vm177 = vcmask 1046534
    %v178 = vsel %vm177, %v176, %v174
    %s179 = scalar_lea.vmem %s0, 116
    %v180 = vld [vmem:[%s179] sm:$0x80]
    %vm181 = vcmask 1047559
    %v182 = vsel %vm181, %v180, %v178
    %183 = vrot.lane.b32.xlu0 %v182, 88
    %v184 = vpop.permute.xlu0 %183
    %vm185 = vcmask 786112
    %186 = vst.msk [vmem:[#allocation0] sm:$0xf] %vm185, %v184
    %s187 = scalar_lea.vmem [#allocation0], 4
    %188 = vst.msk [vmem:[%s187] sm:$0xf0] %vm185, %v184
    %s189 = scalar_lea.vmem %s0, 10
    %v190 = vld [vmem:[%s189] sm:$0x1]
    %s191 = scalar_lea.vmem %s0, 41
    %v192 = vld [vmem:[%s191] sm:$0x2]
    %vm193 = vcmask 1041409
    %v194 = vsel %vm193, %v192, %v190
    %s195 = scalar_lea.vmem %s0, 72
    %v196 = vld [vmem:[%s195] sm:$0x4]
    %vm197 = vcmask 1042434
    %v198 = vsel %vm197, %v196, %v194
    %s199 = scalar_lea.vmem %s0, 346
    %s200 = smov 24
    %v201 = vld [vmem:[%s199] ss:$-80 sm:%s200]
    %vm202 = vcmask 1044483
    %v203 = vsel %vm202, %v201, %v198
    %s204 = scalar_lea.vmem %s0, 53
    %v205 = vld [vmem:[%s204] sm:$0x20]
    %vm206 = vcmask 1045509
    %v207 = vsel %vm206, %v205, %v203
    %s208 = scalar_lea.vmem %s0, 84
    %v209 = vld [vmem:[%s208] sm:$0x40]
    %vm210 = vcmask 1046534
    %v211 = vsel %vm210, %v209, %v207
    %s212 = scalar_lea.vmem %s0, 115
    %v213 = vld [vmem:[%s212] sm:$0x80]
    %vm214 = vcmask 1047559
    %v215 = vsel %vm214, %v213, %v211
    %216 = vrot.lane.b32.xlu0 %v215, 80
    %v217 = vpop.permute.xlu0 %216
    %vm218 = vcmask 720512
    %219 = vst.msk [vmem:[#allocation0] sm:$0xf] %vm218, %v217
    %s220 = scalar_lea.vmem [#allocation0], 4
    %221 = vst.msk [vmem:[%s220] sm:$0xf0] %vm218, %v217
    %s222 = scalar_lea.vmem %s0, 9
    %v223 = vld [vmem:[%s222] sm:$0x1]
    %s224 = scalar_lea.vmem %s0, 40
    %v225 = vld [vmem:[%s224] sm:$0x2]
    %vm226 = vcmask 1041409
    %v227 = vsel %vm226, %v225, %v223
    %s228 = scalar_lea.vmem %s0, 71
    %v229 = vld [vmem:[%s228] sm:$0x4]
    %vm230 = vcmask 1042434
    %v231 = vsel %vm230, %v229, %v227
    %s232 = scalar_lea.vmem %s0, 345
    %s233 = smov 24
    %v234 = vld [vmem:[%s232] ss:$-80 sm:%s233]
    %vm235 = vcmask 1044483
    %v236 = vsel %vm235, %v234, %v231
    %s237 = scalar_lea.vmem %s0, 52
    %v238 = vld [vmem:[%s237] sm:$0x20]
    %vm239 = vcmask 1045509
    %v240 = vsel %vm239, %v238, %v236
    %s241 = scalar_lea.vmem %s0, 83
    %v242 = vld [vmem:[%s241] sm:$0x40]
    %vm243 = vcmask 1046534
    %v244 = vsel %vm243, %v242, %v240
    %s245 = scalar_lea.vmem %s0, 114
    %v246 = vld [vmem:[%s245] sm:$0x80]
    %vm247 = vcmask 1047559
    %v248 = vsel %vm247, %v246, %v244
    %249 = vrot.lane.b32.xlu0 %v248, 72
    %v250 = vpop.permute.xlu0 %249
    %vm251 = vcmask 654912
    %252 = vst.msk [vmem:[#allocation0] sm:$0xf] %vm251, %v250
    %s253 = scalar_lea.vmem [#allocation0], 4
    %254 = vst.msk [vmem:[%s253] sm:$0xf0] %vm251, %v250
    %s255 = scalar_lea.vmem %s0, 8
    %v256 = vld [vmem:[%s255] sm:$0x1]
    %s257 = scalar_lea.vmem %s0, 39
    %v258 = vld [vmem:[%s257] sm:$0x2]
    %vm259 = vcmask 1041409
    %v260 = vsel %vm259, %v258, %v256
    %s261 = scalar_lea.vmem %s0, 70
    %v262 = vld [vmem:[%s261] sm:$0x4]
    %vm263 = vcmask 1042434
    %v264 = vsel %vm263, %v262, %v260
    %s265 = scalar_lea.vmem %s0, 344
    %s266 = smov 24
    %v267 = vld [vmem:[%s265] ss:$-80 sm:%s266]
    %vm268 = vcmask 1044483
    %v269 = vsel %vm268, %v267, %v264
    %s270 = scalar_lea.vmem %s0, 51
    %v271 = vld [vmem:[%s270] sm:$0x20]
    %vm272 = vcmask 1045509
    %v273 = vsel %vm272, %v271, %v269
    %s274 = scalar_lea.vmem %s0, 82
    %v275 = vld [vmem:[%s274] sm:$0x40]
    %vm276 = vcmask 1046534
    %v277 = vsel %vm276, %v275, %v273
    %s278 = scalar_lea.vmem %s0, 113
    %v279 = vld [vmem:[%s278] sm:$0x80]
    %vm280 = vcmask 1047559
    %v281 = vsel %vm280, %v279, %v277
    %282 = vrot.lane.b32.xlu0 %v281, 64
    %v283 = vpop.permute.xlu0 %282
    %vm284 = vcmask 589312
    %285 = vst.msk [vmem:[#allocation0] sm:$0xf] %vm284, %v283
    %s286 = scalar_lea.vmem [#allocation0], 4
    %287 = vst.msk [vmem:[%s286] sm:$0xf0] %vm284, %v283
    %s288 = scalar_lea.vmem %s0, 7
    %v289 = vld [vmem:[%s288] sm:$0x1]
    %s290 = scalar_lea.vmem %s0, 38
    %v291 = vld [vmem:[%s290] sm:$0x2]
    %vm292 = vcmask 1041409
    %v293 = vsel %vm292, %v291, %v289
    %s294 = scalar_lea.vmem %s0, 69
    %v295 = vld [vmem:[%s294] sm:$0x4]
    %vm296 = vcmask 1042434
    %v297 = vsel %vm296, %v295, %v293
    %s298 = scalar_lea.vmem %s0, 343
    %s299 = smov 24
    %v300 = vld [vmem:[%s298] ss:$-80 sm:%s299]
    %vm301 = vcmask 1044483
    %v302 = vsel %vm301, %v300, %v297
    %s303 = scalar_lea.vmem %s0, 50
    %v304 = vld [vmem:[%s303] sm:$0x20]
    %vm305 = vcmask 1045509
    %v306 = vsel %vm305, %v304, %v302
    %s307 = scalar_lea.vmem %s0, 81
    %v308 = vld [vmem:[%s307] sm:$0x40]
    %vm309 = vcmask 1046534
    %v310 = vsel %vm309, %v308, %v306
    %s311 = scalar_lea.vmem %s0, 112
    %v312 = vld [vmem:[%s311] sm:$0x80]
    %vm313 = vcmask 1047559
    %v314 = vsel %vm313, %v312, %v310
    %315 = vrot.lane.b32.xlu0 %v314, 56
    %v316 = vpop.permute.xlu0 %315
    %vm317 = vcmask 523712
    %318 = vst.msk [vmem:[#allocation0] sm:$0xf] %vm317, %v316
    %s319 = scalar_lea.vmem [#allocation0], 4
    %320 = vst.msk [vmem:[%s319] sm:$0xf0] %vm317, %v316
    %s321 = scalar_lea.vmem %s0, 6
    %v322 = vld [vmem:[%s321] sm:$0x1]
    %s323 = scalar_lea.vmem %s0, 37
    %v324 = vld [vmem:[%s323] sm:$0x2]
    %vm325 = vcmask 1041409
    %v326 = vsel %vm325, %v324, %v322
    %s327 = scalar_lea.vmem %s0, 68
    %v328 = vld [vmem:[%s327] sm:$0x4]
    %vm329 = vcmask 1042434
    %v330 = vsel %vm329, %v328, %v326
    %s331 = scalar_lea.vmem %s0, 342
    %s332 = smov 24
    %v333 = vld [vmem:[%s331] ss:$-80 sm:%s332]
    %vm334 = vcmask 1044483
    %v335 = vsel %vm334, %v333, %v330
    %s336 = scalar_lea.vmem %s0, 49
    %v337 = vld [vmem:[%s336] sm:$0x20]
    %vm338 = vcmask 1045509
    %v339 = vsel %vm338, %v337, %v335
    %s340 = scalar_lea.vmem %s0, 80
    %v341 = vld [vmem:[%s340] sm:$0x40]
    %vm342 = vcmask 1046534
    %v343 = vsel %vm342, %v341, %v339
    %s344 = scalar_lea.vmem %s0, 111
    %v345 = vld [vmem:[%s344] sm:$0x80]
    %vm346 = vcmask 1047559
    %v347 = vsel %vm346, %v345, %v343
    %348 = vrot.lane.b32.xlu0 %v347, 48
    %v349 = vpop.permute.xlu0 %348
    %vm350 = vcmask 458112
    %351 = vst.msk [vmem:[#allocation0] sm:$0xf] %vm350, %v349
    %s352 = scalar_lea.vmem [#allocation0], 4
    %353 = vst.msk [vmem:[%s352] sm:$0xf0] %vm350, %v349
    %s354 = scalar_lea.vmem %s0, 5
    %v355 = vld [vmem:[%s354] sm:$0x1]
    %s356 = scalar_lea.vmem %s0, 36
    %v357 = vld [vmem:[%s356] sm:$0x2]
    %vm358 = vcmask 1041409
    %v359 = vsel %vm358, %v357, %v355
    %s360 = scalar_lea.vmem %s0, 67
    %v361 = vld [vmem:[%s360] sm:$0x4]
    %vm362 = vcmask 1042434
    %v363 = vsel %vm362, %v361, %v359
    %s364 = scalar_lea.vmem %s0, 341
    %s365 = smov 24
    %v366 = vld [vmem:[%s364] ss:$-80 sm:%s365]
    %vm367 = vcmask 1044483
    %v368 = vsel %vm367, %v366, %v363
    %s369 = scalar_lea.vmem %s0, 48
    %v370 = vld [vmem:[%s369] sm:$0x20]
    %vm371 = vcmask 1045509
    %v372 = vsel %vm371, %v370, %v368
    %s373 = scalar_lea.vmem %s0, 79
    %v374 = vld [vmem:[%s373] sm:$0x40]
    %vm375 = vcmask 1046534
    %v376 = vsel %vm375, %v374, %v372
    %s377 = scalar_lea.vmem %s0, 110
    %v378 = vld [vmem:[%s377] sm:$0x80]
    %vm379 = vcmask 1047559
    %v380 = vsel %vm379, %v378, %v376
    %381 = vrot.lane.b32.xlu0 %v380, 40
    %v382 = vpop.permute.xlu0 %381
    %vm383 = vcmask 392512
    %384 = vst.msk [vmem:[#allocation0] sm:$0xf] %vm383, %v382
    %s385 = scalar_lea.vmem [#allocation0], 4
    %386 = vst.msk [vmem:[%s385] sm:$0xf0] %vm383, %v382
    %s387 = scalar_lea.vmem %s0, 4
    %v388 = vld [vmem:[%s387] sm:$0x1]
    %s389 = scalar_lea.vmem %s0, 35
    %v390 = vld [vmem:[%s389] sm:$0x2]
    %vm391 = vcmask 1041409
    %v392 = vsel %vm391, %v390, %v388
    %s393 = scalar_lea.vmem %s0, 66
    %v394 = vld [vmem:[%s393] sm:$0x4]
    %vm395 = vcmask 1042434
    %v396 = vsel %vm395, %v394, %v392
    %s397 = scalar_lea.vmem %s0, 340
    %s398 = smov 24
    %v399 = vld [vmem:[%s397] ss:$-80 sm:%s398]
    %vm400 = vcmask 1044483
    %v401 = vsel %vm400, %v399, %v396
    %s402 = scalar_lea.vmem %s0, 47
    %v403 = vld [vmem:[%s402] sm:$0x20]
    %vm404 = vcmask 1045509
    %v405 = vsel %vm404, %v403, %v401
    %s406 = scalar_lea.vmem %s0, 78
    %v407 = vld [vmem:[%s406] sm:$0x40]
    %vm408 = vcmask 1046534
    %v409 = vsel %vm408, %v407, %v405
    %s410 = scalar_lea.vmem %s0, 109
    %v411 = vld [vmem:[%s410] sm:$0x80]
    %vm412 = vcmask 1047559
    %v413 = vsel %vm412, %v411, %v409
    %414 = vrot.lane.b32.xlu0 %v413, 32
    %v415 = vpop.permute.xlu0 %414
    %vm416 = vcmask 326912
    %417 = vst.msk [vmem:[#allocation0] sm:$0xf] %vm416, %v415
    %s418 = scalar_lea.vmem [#allocation0], 4
    %419 = vst.msk [vmem:[%s418] sm:$0xf0] %vm416, %v415
    %s420 = scalar_lea.vmem %s0, 3
    %v421 = vld [vmem:[%s420] sm:$0x1]
    %s422 = scalar_lea.vmem %s0, 34
    %v423 = vld [vmem:[%s422] sm:$0x2]
    %vm424 = vcmask 1041409
    %v425 = vsel %vm424, %v423, %v421
    %s426 = scalar_lea.vmem %s0, 65
    %v427 = vld [vmem:[%s426] sm:$0x4]
    %vm428 = vcmask 1042434
    %v429 = vsel %vm428, %v427, %v425
    %s430 = scalar_lea.vmem %s0, 339
    %s431 = smov 24
    %v432 = vld [vmem:[%s430] ss:$-80 sm:%s431]
    %vm433 = vcmask 1044483
    %v434 = vsel %vm433, %v432, %v429
    %s435 = scalar_lea.vmem %s0, 46
    %v436 = vld [vmem:[%s435] sm:$0x20]
    %vm437 = vcmask 1045509
    %v438 = vsel %vm437, %v436, %v434
    %s439 = scalar_lea.vmem %s0, 77
    %v440 = vld [vmem:[%s439] sm:$0x40]
    %vm441 = vcmask 1046534
    %v442 = vsel %vm441, %v440, %v438
    %s443 = scalar_lea.vmem %s0, 108
    %v444 = vld [vmem:[%s443] sm:$0x80]
    %vm445 = vcmask 1047559
    %v446 = vsel %vm445, %v444, %v442
    %447 = vrot.lane.b32.xlu0 %v446, 24
    %v448 = vpop.permute.xlu0 %447
    %vm449 = vcmask 261312
    %450 = vst.msk [vmem:[#allocation0] sm:$0xf] %vm449, %v448
    %s451 = scalar_lea.vmem [#allocation0], 4
    %452 = vst.msk [vmem:[%s451] sm:$0xf0] %vm449, %v448
    %s453 = scalar_lea.vmem %s0, 2
    %v454 = vld [vmem:[%s453] sm:$0x1]
    %s455 = scalar_lea.vmem %s0, 33
    %v456 = vld [vmem:[%s455] sm:$0x2]
    %vm457 = vcmask 1041409
    %v458 = vsel %vm457, %v456, %v454
    %s459 = scalar_lea.vmem %s0, 64
    %v460 = vld [vmem:[%s459] sm:$0x4]
    %vm461 = vcmask 1042434
    %v462 = vsel %vm461, %v460, %v458
    %s463 = scalar_lea.vmem %s0, 338
    %s464 = smov 24
    %v465 = vld [vmem:[%s463] ss:$-80 sm:%s464]
    %vm466 = vcmask 1044483
    %v467 = vsel %vm466, %v465, %v462
    %s468 = scalar_lea.vmem %s0, 45
    %v469 = vld [vmem:[%s468] sm:$0x20]
    %vm470 = vcmask 1045509
    %v471 = vsel %vm470, %v469, %v467
    %s472 = scalar_lea.vmem %s0, 76
    %v473 = vld [vmem:[%s472] sm:$0x40]
    %vm474 = vcmask 1046534
    %v475 = vsel %vm474, %v473, %v471
    %s476 = scalar_lea.vmem %s0, 107
    %v477 = vld [vmem:[%s476] sm:$0x80]
    %vm478 = vcmask 1047559
    %v479 = vsel %vm478, %v477, %v475
    %480 = vrot.lane.b32.xlu0 %v479, 16
    %v481 = vpop.permute.xlu0 %480
    %vm482 = vcmask 195712
    %483 = vst.msk [vmem:[#allocation0] sm:$0xf] %vm482, %v481
    %s484 = scalar_lea.vmem [#allocation0], 4
    %485 = vst.msk [vmem:[%s484] sm:$0xf0] %vm482, %v481
    %s486 = scalar_lea.vmem %s0, 1
    %v487 = vld [vmem:[%s486] sm:$0x1]
    %s488 = scalar_lea.vmem %s0, 32
    %v489 = vld [vmem:[%s488] sm:$0x2]
    %vm490 = vcmask 1041409
    %v491 = vsel %vm490, %v489, %v487
    %s492 = scalar_lea.vmem %s0, 63
    %v493 = vld [vmem:[%s492] sm:$0x4]
    %vm494 = vcmask 1042434
    %v495 = vsel %vm494, %v493, %v491
    %s496 = scalar_lea.vmem %s0, 337
    %s497 = smov 24
    %v498 = vld [vmem:[%s496] ss:$-80 sm:%s497]
    %vm499 = vcmask 1044483
    %v500 = vsel %vm499, %v498, %v495
    %s501 = scalar_lea.vmem %s0, 44
    %v502 = vld [vmem:[%s501] sm:$0x20]
    %vm503 = vcmask 1045509
    %v504 = vsel %vm503, %v502, %v500
    %s505 = scalar_lea.vmem %s0, 75
    %v506 = vld [vmem:[%s505] sm:$0x40]
    %vm507 = vcmask 1046534
    %v508 = vsel %vm507, %v506, %v504
    %s509 = scalar_lea.vmem %s0, 106
    %v510 = vld [vmem:[%s509] sm:$0x80]
    %vm511 = vcmask 1047559
    %v512 = vsel %vm511, %v510, %v508
    %513 = vrot.lane.b32.xlu0 %v512, 8
    %v514 = vpop.permute.xlu0 %513
    %vm515 = vcmask 130112
    %516 = vst.msk [vmem:[#allocation0] sm:$0xf] %vm515, %v514
    %s517 = scalar_lea.vmem [#allocation0], 4
    %518 = vst.msk [vmem:[%s517] sm:$0xf0] %vm515, %v514
    %s520 = sshll.u32 1, 4
    %s521 = ssub.s32 %s520, 1
    %v523 = vld [vmem:[#allocation0] sm:%s521]
    %s524 = sshll.u32 1, 4
    %s525 = ssub.s32 %s524, 1
    %526 = vst [vmem:[%s1] sm:%s525] %v523
    %s527 = scalar_lea.vmem [#allocation0], 8
    %v528 = vld [vmem:[%s527] sm:%s521]
    %s529 = sshll.u32 1, 4
    %s530 = ssub.s32 %s529, 1
    %s531 = scalar_lea.vmem %s1, 4
    %532 = vst [vmem:[%s531] sm:%s530] %v528

// kernel: tgn_forward_pallas.1
$region0: #{tgn_forward_pallas.1}
  #allocation0 [shape = 'u32[]', space=smem, size = 0x4, offset = 0x4, fixed_abs, tag = 'smem constant byte address 0x4 - core index']
  #allocation1 [shape = 'u32[144,128]{1,0:T(1,128)}', space=vmem, size = 0x12000, scoped, tag = 'internal scratch']
  %s0 = inlined_call_operand.vmem [shape: f32[8,256], index: 0, kind: input, shape index: {}]
  %s1 = inlined_call_operand.vmem [shape: f32[8,1024], index: 1, kind: input, shape index: {}]
  %s2 = inlined_call_operand.vmem [shape: f32[1,256], index: 2, kind: input, shape index: {}]
  %s3 = inlined_call_operand.vmem [shape: f32[256,1024], index: 3, kind: input, shape index: {}]
  %s4 = inlined_call_operand.vmem [shape: f32[4,256], index: 4, kind: input, shape index: {}]
  %s5 = inlined_call_operand.vmem [shape: f32[8,8], index: 5, kind: input, shape index: {}]
  %s6 = inlined_call_operand.vmem [shape: f32[8,1], index: 6, kind: input, shape index: {}]
  %s7 = inlined_call_operand.vmem [shape: f32[8,8], index: 7, kind: input, shape index: {}]
  %s8 = inlined_call_operand.vmem [shape: f32[8,1], index: 8, kind: input, shape index: {}]
  %s9 = inlined_call_operand.vmem [shape: f32[12,8], index: 9, kind: input, shape index: {}]
  %s10 = inlined_call_operand.vmem [shape: f32[12,1], index: 10, kind: input, shape index: {}]
  %s11 = inlined_call_operand.vmem [shape: f32[8,12], index: 11, kind: input, shape index: {}]
  %s12 = inlined_call_operand.vmem [shape: f32[8,1], index: 12, kind: input, shape index: {}]
  %s13 = inlined_call_operand.vmem [shape: f32[24,8], index: 13, kind: input, shape index: {}]
  %s14 = inlined_call_operand.vmem [shape: f32[24,1], index: 14, kind: input, shape index: {}]
  %s15 = inlined_call_operand.vmem [shape: f32[24,1], index: 15, kind: input, shape index: {}]
  %s16 = inlined_call_operand.vmem [shape: f32[8,1], index: 16, kind: input, shape index: {}]
  %s17 = inlined_call_operand.vmem [shape: f32[8,1], index: 17, kind: input, shape index: {}]
  %s18 = inlined_call_operand.vmem [shape: f32[2,16,8], index: 18, kind: input, shape index: {}]
  %s19 = inlined_call_operand.vmem [shape: f32[2,16,1], index: 19, kind: input, shape index: {}]
  %s20 = inlined_call_operand.vmem [shape: f32[2,32,16], index: 20, kind: input, shape index: {}]
  %s21 = inlined_call_operand.vmem [shape: f32[2,32,8], index: 21, kind: input, shape index: {}]
  %s22 = inlined_call_operand.vmem [shape: f32[2,32,1], index: 22, kind: input, shape index: {}]
  %s23 = inlined_call_operand.vmem [shape: f32[2,8,16], index: 23, kind: input, shape index: {}]
  %s24 = inlined_call_operand.vmem [shape: f32[2,8,1], index: 24, kind: input, shape index: {}]
  %s25 = inlined_call_operand.vmem [shape: f32[8,256], index: 25, kind: output, shape index: {}]
  %s26 = sld [smem:[#allocation0]]
  $region110: #{tgn_forward_pallas.1} parent=0
    _
  %s28 = ssub.s32 1, %s26
  %s29 = scalar_select 0, %s28, %s26
  // Predicated region
  $region2: #{tgn_forward_pallas.1} parent=0 // pred_check
    _
  $region3: #{tgn_forward_pallas.1} parent=0 // pred_check_branch
    %31 = sbr.rel (0) target = $region5
  $region4: #{tgn_forward_pallas.1} parent=0 // pred_region
    _
  $region5: #{tgn_forward_pallas.1} parent=0 // pred_fallthru
    _
  // Predicated region
  $region6: #{tgn_forward_pallas.1} parent=0 // pred_check
    _
  $region7: #{tgn_forward_pallas.1} parent=0 // pred_check_branch
    %33 = sbr.rel (0) target = $region9
  $region8: #{tgn_forward_pallas.1} parent=0 // pred_region
    _
  $region9: #{tgn_forward_pallas.1} parent=0 // pred_fallthru
    _
  // Predicated region
  $region10: #{tgn_forward_pallas.1} parent=0 // pred_check
    _
  $region11: #{tgn_forward_pallas.1} parent=0 // pred_check_branch
    %35 = sbr.rel (0) target = $region13
  $region12: #{tgn_forward_pallas.1} parent=0 // pred_region
    _
  $region13: #{tgn_forward_pallas.1} parent=0 // pred_fallthru
    _
  // Predicated region
  $region14: #{tgn_forward_pallas.1} parent=0 // pred_check
    _
  $region15: #{tgn_forward_pallas.1} parent=0 // pred_check_branch
    %37 = sbr.rel (0) target = $region17
  $region16: #{tgn_forward_pallas.1} parent=0 // pred_region
    _
  $region17: #{tgn_forward_pallas.1} parent=0 // pred_fallthru
    _
  // Predicated region
  $region18: #{tgn_forward_pallas.1} parent=0 // pred_check
    _
  $region19: #{tgn_forward_pallas.1} parent=0 // pred_check_branch
    %39 = sbr.rel (0) target = $region21
  $region20: #{tgn_forward_pallas.1} parent=0 // pred_region
    _
  $region21: #{tgn_forward_pallas.1} parent=0 // pred_fallthru
    _
  // Predicated region
  $region22: #{tgn_forward_pallas.1} parent=0 // pred_check
    _
  $region23: #{tgn_forward_pallas.1} parent=0 // pred_check_branch
    %41 = sbr.rel (0) target = $region25
  $region24: #{tgn_forward_pallas.1} parent=0 // pred_region
    _
  $region25: #{tgn_forward_pallas.1} parent=0 // pred_fallthru
    _
  // Predicated region
  $region26: #{tgn_forward_pallas.1} parent=0 // pred_check
    _
  $region27: #{tgn_forward_pallas.1} parent=0 // pred_check_branch
    %43 = sbr.rel (0) target = $region29
  $region28: #{tgn_forward_pallas.1} parent=0 // pred_region
    _
  $region29: #{tgn_forward_pallas.1} parent=0 // pred_fallthru
    _
  // Predicated region
  $region30: #{tgn_forward_pallas.1} parent=0 // pred_check
    _
  $region31: #{tgn_forward_pallas.1} parent=0 // pred_check_branch
    %45 = sbr.rel (0) target = $region33
  $region32: #{tgn_forward_pallas.1} parent=0 // pred_region
    _
  $region33: #{tgn_forward_pallas.1} parent=0 // pred_fallthru
    _
  // Predicated region
  $region34: #{tgn_forward_pallas.1} parent=0 // pred_check
    _
  $region35: #{tgn_forward_pallas.1} parent=0 // pred_check_branch
    %47 = sbr.rel (0) target = $region37
  $region36: #{tgn_forward_pallas.1} parent=0 // pred_region
    _
  $region37: #{tgn_forward_pallas.1} parent=0 // pred_fallthru
    _
  // Predicated region
  $region38: #{tgn_forward_pallas.1} parent=0 // pred_check
    _
  $region39: #{tgn_forward_pallas.1} parent=0 // pred_check_branch
    %49 = sbr.rel (0) target = $region41
  $region40: #{tgn_forward_pallas.1} parent=0 // pred_region
    _
  $region41: #{tgn_forward_pallas.1} parent=0 // pred_fallthru
    _
  // Predicated region
  $region42: #{tgn_forward_pallas.1} parent=0 // pred_check
    _
  $region43: #{tgn_forward_pallas.1} parent=0 // pred_check_branch
    %51 = sbr.rel (0) target = $region45
  $region44: #{tgn_forward_pallas.1} parent=0 // pred_region
    _
  $region45: #{tgn_forward_pallas.1} parent=0 // pred_fallthru
    _
  // Predicated region
  $region46: #{tgn_forward_pallas.1} parent=0 // pred_check
    _
  $region47: #{tgn_forward_pallas.1} parent=0 // pred_check_branch
    %53 = sbr.rel (0) target = $region49
  $region48: #{tgn_forward_pallas.1} parent=0 // pred_region
    _
  $region49: #{tgn_forward_pallas.1} parent=0 // pred_fallthru
    _
  // Predicated region
  $region50: #{tgn_forward_pallas.1} parent=0 // pred_check
    _
  $region51: #{tgn_forward_pallas.1} parent=0 // pred_check_branch
    %55 = sbr.rel (0) target = $region53
  $region52: #{tgn_forward_pallas.1} parent=0 // pred_region
    _
  $region53: #{tgn_forward_pallas.1} parent=0 // pred_fallthru
    _
  // Predicated region
  $region54: #{tgn_forward_pallas.1} parent=0 // pred_check
    _
  $region55: #{tgn_forward_pallas.1} parent=0 // pred_check_branch
    %57 = sbr.rel (0) target = $region57
  $region56: #{tgn_forward_pallas.1} parent=0 // pred_region
    _
  $region57: #{tgn_forward_pallas.1} parent=0 // pred_fallthru
    _
  // Predicated region
  $region58: #{tgn_forward_pallas.1} parent=0 // pred_check
    _
  $region59: #{tgn_forward_pallas.1} parent=0 // pred_check_branch
    %59 = sbr.rel (0) target = $region61
  $region60: #{tgn_forward_pallas.1} parent=0 // pred_region
    _
  $region61: #{tgn_forward_pallas.1} parent=0 // pred_fallthru
    _
  // Predicated region
  $region62: #{tgn_forward_pallas.1} parent=0 // pred_check
    _
  $region63: #{tgn_forward_pallas.1} parent=0 // pred_check_branch
    %61 = sbr.rel (0) target = $region65
  $region64: #{tgn_forward_pallas.1} parent=0 // pred_region
    _
  $region65: #{tgn_forward_pallas.1} parent=0 // pred_fallthru
    _
  // Predicated region
  $region66: #{tgn_forward_pallas.1} parent=0 // pred_check
    _
  $region67: #{tgn_forward_pallas.1} parent=0 // pred_check_branch
    %63 = sbr.rel (0) target = $region69
  $region68: #{tgn_forward_pallas.1} parent=0 // pred_region
    _
  $region69: #{tgn_forward_pallas.1} parent=0 // pred_fallthru
    _
  // Predicated region
  $region70: #{tgn_forward_pallas.1} parent=0 // pred_check
    _
  $region71: #{tgn_forward_pallas.1} parent=0 // pred_check_branch
    %65 = sbr.rel (0) target = $region73
  $region72: #{tgn_forward_pallas.1} parent=0 // pred_region
    _
  $region73: #{tgn_forward_pallas.1} parent=0 // pred_fallthru
    _
  // Predicated region
  $region74: #{tgn_forward_pallas.1} parent=0 // pred_check
    _
  $region75: #{tgn_forward_pallas.1} parent=0 // pred_check_branch
    %67 = sbr.rel (0) target = $region77
  $region76: #{tgn_forward_pallas.1} parent=0 // pred_region
    _
  $region77: #{tgn_forward_pallas.1} parent=0 // pred_fallthru
    _
  // Predicated region
  $region78: #{tgn_forward_pallas.1} parent=0 // pred_check
    _
  $region79: #{tgn_forward_pallas.1} parent=0 // pred_check_branch
    %69 = sbr.rel (0) target = $region81
  $region80: #{tgn_forward_pallas.1} parent=0 // pred_region
    _
  $region81: #{tgn_forward_pallas.1} parent=0 // pred_fallthru
    _
  // Predicated region
  $region82: #{tgn_forward_pallas.1} parent=0 // pred_check
    _
  $region83: #{tgn_forward_pallas.1} parent=0 // pred_check_branch
    %71 = sbr.rel (0) target = $region85
  $region84: #{tgn_forward_pallas.1} parent=0 // pred_region
    _
  $region85: #{tgn_forward_pallas.1} parent=0 // pred_fallthru
    _
  // Predicated region
  $region86: #{tgn_forward_pallas.1} parent=0 // pred_check
    _
  $region87: #{tgn_forward_pallas.1} parent=0 // pred_check_branch
    %73 = sbr.rel (0) target = $region89
  $region88: #{tgn_forward_pallas.1} parent=0 // pred_region
    _
  $region89: #{tgn_forward_pallas.1} parent=0 // pred_fallthru
    _
  // Predicated region
  $region90: #{tgn_forward_pallas.1} parent=0 // pred_check
    _
  $region91: #{tgn_forward_pallas.1} parent=0 // pred_check_branch
    %75 = sbr.rel (0) target = $region93
  $region92: #{tgn_forward_pallas.1} parent=0 // pred_region
    _
  $region93: #{tgn_forward_pallas.1} parent=0 // pred_fallthru
    _
  // Predicated region
  $region94: #{tgn_forward_pallas.1} parent=0 // pred_check
    _
  $region95: #{tgn_forward_pallas.1} parent=0 // pred_check_branch
    %77 = sbr.rel (0) target = $region97
  $region96: #{tgn_forward_pallas.1} parent=0 // pred_region
    _
  $region97: #{tgn_forward_pallas.1} parent=0 // pred_fallthru
    _
  // Predicated region
  $region98: #{tgn_forward_pallas.1} parent=0 // pred_check
    _
  $region99: #{tgn_forward_pallas.1} parent=0 // pred_check_branch
    %79 = sbr.rel (0) target = $region101
  $region100: #{tgn_forward_pallas.1} parent=0 // pred_region
    _
  $region101: #{tgn_forward_pallas.1} parent=0 // pred_fallthru
    _
  %v80 = vld [vmem:[%s0] sm:$0xff]
  %v81 = vld [vmem:[%s0 + $0x8] sm:$0xff]
  %v82 = vld [vmem:[%s1] sm:$0xff]
  %v83 = vld [vmem:[%s1 + $0x8] sm:$0xff]
  %v84 = vld [vmem:[%s1 + $0x10] sm:$0xff]
  %v85 = vld [vmem:[%s1 + $0x18] sm:$0xff]
  %v86 = vld [vmem:[%s1 + $0x20] sm:$0xff]
  %v87 = vld [vmem:[%s1 + $0x28] sm:$0xff]
  %v88 = vld [vmem:[%s1 + $0x30] sm:$0xff]
  %v89 = vld [vmem:[%s1 + $0x38] sm:$0xff]
  %v90 = vld [vmem:[%s2] sm:$0x3]
  %v91 = vld [vmem:[%s3] sm:$0xff]
  %v92 = vld [vmem:[%s3 + $0x8] sm:$0xff]
  %v93 = vld [vmem:[%s3 + $0x10] sm:$0xff]
  %v94 = vld [vmem:[%s3 + $0x18] sm:$0xff]
  %v95 = vld [vmem:[%s3 + $0x20] sm:$0xff]
  %v96 = vld [vmem:[%s3 + $0x28] sm:$0xff]
  %v97 = vld [vmem:[%s3 + $0x30] sm:$0xff]
  %v98 = vld [vmem:[%s3 + $0x38] sm:$0xff]
  %v99 = vld [vmem:[%s3 + $0x40] sm:$0xff]
  %v100 = vld [vmem:[%s3 + $0x48] sm:$0xff]
  %v101 = vld [vmem:[%s3 + $0x50] sm:$0xff]
  %v102 = vld [vmem:[%s3 + $0x58] sm:$0xff]
  %v103 = vld [vmem:[%s3 + $0x60] sm:$0xff]
  %v104 = vld [vmem:[%s3 + $0x68] sm:$0xff]
  %v105 = vld [vmem:[%s3 + $0x70] sm:$0xff]
  %v106 = vld [vmem:[%s3 + $0x78] sm:$0xff]
  %v107 = vld [vmem:[%s3 + $0x80] sm:$0xff]
  %v108 = vld [vmem:[%s3 + $0x88] sm:$0xff]
  %v109 = vld [vmem:[%s3 + $0x90] sm:$0xff]
  %v110 = vld [vmem:[%s3 + $0x98] sm:$0xff]
  %v111 = vld [vmem:[%s3 + $0xa0] sm:$0xff]
  %v112 = vld [vmem:[%s3 + $0xa8] sm:$0xff]
  %v113 = vld [vmem:[%s3 + $0xb0] sm:$0xff]
  %v114 = vld [vmem:[%s3 + $0xb8] sm:$0xff]
  %v115 = vld [vmem:[%s3 + $0xc0] sm:$0xff]
  %v116 = vld [vmem:[%s3 + $0xc8] sm:$0xff]
  %v117 = vld [vmem:[%s3 + $0xd0] sm:$0xff]
  %v118 = vld [vmem:[%s3 + $0xd8] sm:$0xff]
  %v119 = vld [vmem:[%s3 + $0xe0] sm:$0xff]
  %v120 = vld [vmem:[%s3 + $0xe8] sm:$0xff]
  %v121 = vld [vmem:[%s3 + $0xf0] sm:$0xff]
  %v122 = vld [vmem:[%s3 + $0xf8] sm:$0xff]
  %v123 = vld [vmem:[%s3 + $0x100] sm:$0xff]
  %v124 = vld [vmem:[%s3 + $0x108] sm:$0xff]
  %v125 = vld [vmem:[%s3 + $0x110] sm:$0xff]
  %v126 = vld [vmem:[%s3 + $0x118] sm:$0xff]
  %v127 = vld [vmem:[%s3 + $0x120] sm:$0xff]
  %v128 = vld [vmem:[%s3 + $0x128] sm:$0xff]
  %v129 = vld [vmem:[%s3 + $0x130] sm:$0xff]
  %v130 = vld [vmem:[%s3 + $0x138] sm:$0xff]
  %v131 = vld [vmem:[%s3 + $0x140] sm:$0xff]
  %v132 = vld [vmem:[%s3 + $0x148] sm:$0xff]
  %v133 = vld [vmem:[%s3 + $0x150] sm:$0xff]
  %v134 = vld [vmem:[%s3 + $0x158] sm:$0xff]
  %v135 = vld [vmem:[%s3 + $0x160] sm:$0xff]
  %v136 = vld [vmem:[%s3 + $0x168] sm:$0xff]
  %v137 = vld [vmem:[%s3 + $0x170] sm:$0xff]
  %v138 = vld [vmem:[%s3 + $0x178] sm:$0xff]
  %v139 = vld [vmem:[%s3 + $0x180] sm:$0xff]
  %v140 = vld [vmem:[%s3 + $0x188] sm:$0xff]
  %v141 = vld [vmem:[%s3 + $0x190] sm:$0xff]
  %v142 = vld [vmem:[%s3 + $0x198] sm:$0xff]
  %v143 = vld [vmem:[%s3 + $0x1a0] sm:$0xff]
  %v144 = vld [vmem:[%s3 + $0x1a8] sm:$0xff]
  %v145 = vld [vmem:[%s3 + $0x1b0] sm:$0xff]
  %v146 = vld [vmem:[%s3 + $0x1b8] sm:$0xff]
  %v147 = vld [vmem:[%s3 + $0x1c0] sm:$0xff]
  %v148 = vld [vmem:[%s3 + $0x1c8] sm:$0xff]
  %v149 = vld [vmem:[%s3 + $0x1d0] sm:$0xff]
  %v150 = vld [vmem:[%s3 + $0x1d8] sm:$0xff]
  %v151 = vld [vmem:[%s3 + $0x1e0] sm:$0xff]
  %v152 = vld [vmem:[%s3 + $0x1e8] sm:$0xff]
  %v153 = vld [vmem:[%s3 + $0x1f0] sm:$0xff]
  %v154 = vld [vmem:[%s3 + $0x1f8] sm:$0xff]
  %v155 = vld [vmem:[%s3 + $0x200] sm:$0xff]
  %v156 = vld [vmem:[%s3 + $0x208] sm:$0xff]
  %v157 = vld [vmem:[%s3 + $0x210] sm:$0xff]
  %v158 = vld [vmem:[%s3 + $0x218] sm:$0xff]
  %v159 = vld [vmem:[%s3 + $0x220] sm:$0xff]
  %v160 = vld [vmem:[%s3 + $0x228] sm:$0xff]
  %v161 = vld [vmem:[%s3 + $0x230] sm:$0xff]
  %v162 = vld [vmem:[%s3 + $0x238] sm:$0xff]
  %v163 = vld [vmem:[%s3 + $0x240] sm:$0xff]
  %v164 = vld [vmem:[%s3 + $0x248] sm:$0xff]
  %v165 = vld [vmem:[%s3 + $0x250] sm:$0xff]
  %v166 = vld [vmem:[%s3 + $0x258] sm:$0xff]
  %v167 = vld [vmem:[%s3 + $0x260] sm:$0xff]
  %v168 = vld [vmem:[%s3 + $0x268] sm:$0xff]
  %v169 = vld [vmem:[%s3 + $0x270] sm:$0xff]
  %v170 = vld [vmem:[%s3 + $0x278] sm:$0xff]
  %v171 = vld [vmem:[%s3 + $0x280] sm:$0xff]
  %v172 = vld [vmem:[%s3 + $0x288] sm:$0xff]
  %v173 = vld [vmem:[%s3 + $0x290] sm:$0xff]
  %v174 = vld [vmem:[%s3 + $0x298] sm:$0xff]
  %v175 = vld [vmem:[%s3 + $0x2a0] sm:$0xff]
  %v176 = vld [vmem:[%s3 + $0x2a8] sm:$0xff]
  %v177 = vld [vmem:[%s3 + $0x2b0] sm:$0xff]
  %v178 = vld [vmem:[%s3 + $0x2b8] sm:$0xff]
  %v179 = vld [vmem:[%s3 + $0x2c0] sm:$0xff]
  %v180 = vld [vmem:[%s3 + $0x2c8] sm:$0xff]
  %v181 = vld [vmem:[%s3 + $0x2d0] sm:$0xff]
  %v182 = vld [vmem:[%s3 + $0x2d8] sm:$0xff]
  %v183 = vld [vmem:[%s3 + $0x2e0] sm:$0xff]
  %v184 = vld [vmem:[%s3 + $0x2e8] sm:$0xff]
  %v185 = vld [vmem:[%s3 + $0x2f0] sm:$0xff]
  %v186 = vld [vmem:[%s3 + $0x2f8] sm:$0xff]
  %v187 = vld [vmem:[%s3 + $0x300] sm:$0xff]
  %v188 = vld [vmem:[%s3 + $0x308] sm:$0xff]
  %v189 = vld [vmem:[%s3 + $0x310] sm:$0xff]
  %v190 = vld [vmem:[%s3 + $0x318] sm:$0xff]
  %v191 = vld [vmem:[%s3 + $0x320] sm:$0xff]
  %v192 = vld [vmem:[%s3 + $0x328] sm:$0xff]
  %v193 = vld [vmem:[%s3 + $0x330] sm:$0xff]
  %v194 = vld [vmem:[%s3 + $0x338] sm:$0xff]
  %v195 = vld [vmem:[%s3 + $0x340] sm:$0xff]
  %v196 = vld [vmem:[%s3 + $0x348] sm:$0xff]
  %v197 = vld [vmem:[%s3 + $0x350] sm:$0xff]
  %v198 = vld [vmem:[%s3 + $0x358] sm:$0xff]
  %v199 = vld [vmem:[%s3 + $0x360] sm:$0xff]
  %v200 = vld [vmem:[%s3 + $0x368] sm:$0xff]
  %v201 = vld [vmem:[%s3 + $0x370] sm:$0xff]
  %v202 = vld [vmem:[%s3 + $0x378] sm:$0xff]
  %v203 = vld [vmem:[%s3 + $0x380] sm:$0xff]
  %v204 = vld [vmem:[%s3 + $0x388] sm:$0xff]
  %v205 = vld [vmem:[%s3 + $0x390] sm:$0xff]
  %v206 = vld [vmem:[%s3 + $0x398] sm:$0xff]
  %v207 = vld [vmem:[%s3 + $0x3a0] sm:$0xff]
  %v208 = vld [vmem:[%s3 + $0x3a8] sm:$0xff]
  %v209 = vld [vmem:[%s3 + $0x3b0] sm:$0xff]
  %v210 = vld [vmem:[%s3 + $0x3b8] sm:$0xff]
  %v211 = vld [vmem:[%s3 + $0x3c0] sm:$0xff]
  %v212 = vld [vmem:[%s3 + $0x3c8] sm:$0xff]
  %v213 = vld [vmem:[%s3 + $0x3d0] sm:$0xff]
  %v214 = vld [vmem:[%s3 + $0x3d8] sm:$0xff]
  %v215 = vld [vmem:[%s3 + $0x3e0] sm:$0xff]
  %v216 = vld [vmem:[%s3 + $0x3e8] sm:$0xff]
  %v217 = vld [vmem:[%s3 + $0x3f0] sm:$0xff]
  %v218 = vld [vmem:[%s3 + $0x3f8] sm:$0xff]
  %v219 = vld [vmem:[%s3 + $0x400] sm:$0xff]
  %v220 = vld [vmem:[%s3 + $0x408] sm:$0xff]
  %v221 = vld [vmem:[%s3 + $0x410] sm:$0xff]
  %v222 = vld [vmem:[%s3 + $0x418] sm:$0xff]
  %v223 = vld [vmem:[%s3 + $0x420] sm:$0xff]
  %v224 = vld [vmem:[%s3 + $0x428] sm:$0xff]
  %v225 = vld [vmem:[%s3 + $0x430] sm:$0xff]
  %v226 = vld [vmem:[%s3 + $0x438] sm:$0xff]
  %v227 = vld [vmem:[%s3 + $0x440] sm:$0xff]
  %v228 = vld [vmem:[%s3 + $0x448] sm:$0xff]
  %v229 = vld [vmem:[%s3 + $0x450] sm:$0xff]
  %v230 = vld [vmem:[%s3 + $0x458] sm:$0xff]
  %v231 = vld [vmem:[%s3 + $0x460] sm:$0xff]
  %v232 = vld [vmem:[%s3 + $0x468] sm:$0xff]
  %v233 = vld [vmem:[%s3 + $0x470] sm:$0xff]
  %v234 = vld [vmem:[%s3 + $0x478] sm:$0xff]
  %v235 = vld [vmem:[%s3 + $0x480] sm:$0xff]
  %v236 = vld [vmem:[%s3 + $0x488] sm:$0xff]
  %v237 = vld [vmem:[%s3 + $0x490] sm:$0xff]
  %v238 = vld [vmem:[%s3 + $0x498] sm:$0xff]
  %v239 = vld [vmem:[%s3 + $0x4a0] sm:$0xff]
  %v240 = vld [vmem:[%s3 + $0x4a8] sm:$0xff]
  %v241 = vld [vmem:[%s3 + $0x4b0] sm:$0xff]
  %v242 = vld [vmem:[%s3 + $0x4b8] sm:$0xff]
  %v243 = vld [vmem:[%s3 + $0x4c0] sm:$0xff]
  %v244 = vld [vmem:[%s3 + $0x4c8] sm:$0xff]
  %v245 = vld [vmem:[%s3 + $0x4d0] sm:$0xff]
  %v246 = vld [vmem:[%s3 + $0x4d8] sm:$0xff]
  %v247 = vld [vmem:[%s3 + $0x4e0] sm:$0xff]
  %v248 = vld [vmem:[%s3 + $0x4e8] sm:$0xff]
  %v249 = vld [vmem:[%s3 + $0x4f0] sm:$0xff]
  %v250 = vld [vmem:[%s3 + $0x4f8] sm:$0xff]
  %v251 = vld [vmem:[%s3 + $0x500] sm:$0xff]
  %v252 = vld [vmem:[%s3 + $0x508] sm:$0xff]
  %v253 = vld [vmem:[%s3 + $0x510] sm:$0xff]
  %v254 = vld [vmem:[%s3 + $0x518] sm:$0xff]
  %v255 = vld [vmem:[%s3 + $0x520] sm:$0xff]
  %v256 = vld [vmem:[%s3 + $0x528] sm:$0xff]
  %v257 = vld [vmem:[%s3 + $0x530] sm:$0xff]
  %v258 = vld [vmem:[%s3 + $0x538] sm:$0xff]
  %v259 = vld [vmem:[%s3 + $0x540] sm:$0xff]
  %v260 = vld [vmem:[%s3 + $0x548] sm:$0xff]
  %v261 = vld [vmem:[%s3 + $0x550] sm:$0xff]
  %v262 = vld [vmem:[%s3 + $0x558] sm:$0xff]
  %v263 = vld [vmem:[%s3 + $0x560] sm:$0xff]
  %v264 = vld [vmem:[%s3 + $0x568] sm:$0xff]
  %v265 = vld [vmem:[%s3 + $0x570] sm:$0xff]
  %v266 = vld [vmem:[%s3 + $0x578] sm:$0xff]
  %v267 = vld [vmem:[%s3 + $0x580] sm:$0xff]
  %v268 = vld [vmem:[%s3 + $0x588] sm:$0xff]
  %v269 = vld [vmem:[%s3 + $0x590] sm:$0xff]
  %v270 = vld [vmem:[%s3 + $0x598] sm:$0xff]
  %v271 = vld [vmem:[%s3 + $0x5a0] sm:$0xff]
  %v272 = vld [vmem:[%s3 + $0x5a8] sm:$0xff]
  %v273 = vld [vmem:[%s3 + $0x5b0] sm:$0xff]
  %v274 = vld [vmem:[%s3 + $0x5b8] sm:$0xff]
  %v275 = vld [vmem:[%s3 + $0x5c0] sm:$0xff]
  %v276 = vld [vmem:[%s3 + $0x5c8] sm:$0xff]
  %v277 = vld [vmem:[%s3 + $0x5d0] sm:$0xff]
  %v278 = vld [vmem:[%s3 + $0x5d8] sm:$0xff]
  %v279 = vld [vmem:[%s3 + $0x5e0] sm:$0xff]
  %v280 = vld [vmem:[%s3 + $0x5e8] sm:$0xff]
  %v281 = vld [vmem:[%s3 + $0x5f0] sm:$0xff]
  %v282 = vld [vmem:[%s3 + $0x5f8] sm:$0xff]
  %v283 = vld [vmem:[%s3 + $0x600] sm:$0xff]
  %v284 = vld [vmem:[%s3 + $0x608] sm:$0xff]
  %v285 = vld [vmem:[%s3 + $0x610] sm:$0xff]
  %v286 = vld [vmem:[%s3 + $0x618] sm:$0xff]
  %v287 = vld [vmem:[%s3 + $0x620] sm:$0xff]
  %v288 = vld [vmem:[%s3 + $0x628] sm:$0xff]
  %v289 = vld [vmem:[%s3 + $0x630] sm:$0xff]
  %v290 = vld [vmem:[%s3 + $0x638] sm:$0xff]
  %v291 = vld [vmem:[%s3 + $0x640] sm:$0xff]
  %v292 = vld [vmem:[%s3 + $0x648] sm:$0xff]
  %v293 = vld [vmem:[%s3 + $0x650] sm:$0xff]
  %v294 = vld [vmem:[%s3 + $0x658] sm:$0xff]
  %v295 = vld [vmem:[%s3 + $0x660] sm:$0xff]
  %v296 = vld [vmem:[%s3 + $0x668] sm:$0xff]
  %v297 = vld [vmem:[%s3 + $0x670] sm:$0xff]
  %v298 = vld [vmem:[%s3 + $0x678] sm:$0xff]
  %v299 = vld [vmem:[%s3 + $0x680] sm:$0xff]
  %v300 = vld [vmem:[%s3 + $0x688] sm:$0xff]
  %v301 = vld [vmem:[%s3 + $0x690] sm:$0xff]
  %v302 = vld [vmem:[%s3 + $0x698] sm:$0xff]
  %v303 = vld [vmem:[%s3 + $0x6a0] sm:$0xff]
  %v304 = vld [vmem:[%s3 + $0x6a8] sm:$0xff]
  %v305 = vld [vmem:[%s3 + $0x6b0] sm:$0xff]
  %v306 = vld [vmem:[%s3 + $0x6b8] sm:$0xff]
  %v307 = vld [vmem:[%s3 + $0x6c0] sm:$0xff]
  %v308 = vld [vmem:[%s3 + $0x6c8] sm:$0xff]
  %v309 = vld [vmem:[%s3 + $0x6d0] sm:$0xff]
  %v310 = vld [vmem:[%s3 + $0x6d8] sm:$0xff]
  %v311 = vld [vmem:[%s3 + $0x6e0] sm:$0xff]
  %v312 = vld [vmem:[%s3 + $0x6e8] sm:$0xff]
  %v313 = vld [vmem:[%s3 + $0x6f0] sm:$0xff]
  %v314 = vld [vmem:[%s3 + $0x6f8] sm:$0xff]
  %v315 = vld [vmem:[%s3 + $0x700] sm:$0xff]
  %v316 = vld [vmem:[%s3 + $0x708] sm:$0xff]
  %v317 = vld [vmem:[%s3 + $0x710] sm:$0xff]
  %v318 = vld [vmem:[%s3 + $0x718] sm:$0xff]
  %v319 = vld [vmem:[%s3 + $0x720] sm:$0xff]
  %v320 = vld [vmem:[%s3 + $0x728] sm:$0xff]
  %v321 = vld [vmem:[%s3 + $0x730] sm:$0xff]
  %v322 = vld [vmem:[%s3 + $0x738] sm:$0xff]
  %v323 = vld [vmem:[%s3 + $0x740] sm:$0xff]
  %v324 = vld [vmem:[%s3 + $0x748] sm:$0xff]
  %v325 = vld [vmem:[%s3 + $0x750] sm:$0xff]
  %v326 = vld [vmem:[%s3 + $0x758] sm:$0xff]
  %v327 = vld [vmem:[%s3 + $0x760] sm:$0xff]
  %v328 = vld [vmem:[%s3 + $0x768] sm:$0xff]
  %v329 = vld [vmem:[%s3 + $0x770] sm:$0xff]
  %v330 = vld [vmem:[%s3 + $0x778] sm:$0xff]
  %v331 = vld [vmem:[%s3 + $0x780] sm:$0xff]
  %v332 = vld [vmem:[%s3 + $0x788] sm:$0xff]
  %v333 = vld [vmem:[%s3 + $0x790] sm:$0xff]
  %v334 = vld [vmem:[%s3 + $0x798] sm:$0xff]
  %v335 = vld [vmem:[%s3 + $0x7a0] sm:$0xff]
  %v336 = vld [vmem:[%s3 + $0x7a8] sm:$0xff]
  %v337 = vld [vmem:[%s3 + $0x7b0] sm:$0xff]
  %v338 = vld [vmem:[%s3 + $0x7b8] sm:$0xff]
  %v339 = vld [vmem:[%s3 + $0x7c0] sm:$0xff]
  %v340 = vld [vmem:[%s3 + $0x7c8] sm:$0xff]
  %v341 = vld [vmem:[%s3 + $0x7d0] sm:$0xff]
  %v342 = vld [vmem:[%s3 + $0x7d8] sm:$0xff]
  %v343 = vld [vmem:[%s3 + $0x7e0] sm:$0xff]
  %v344 = vld [vmem:[%s3 + $0x7e8] sm:$0xff]
  %v345 = vld [vmem:[%s3 + $0x7f0] sm:$0xff]
  %v346 = vld [vmem:[%s3 + $0x7f8] sm:$0xff]
  %v347 = vld [vmem:[%s4] sm:$0xff]
  %v348 = vld [vmem:[%s5] sm:$0xff]
  %v349 = vld [vmem:[%s6] sm:$0xff]
  %351 = vset.pattern.permute.xlu0 0
  %352 = vperm.xlu0 %351, %v349
  %v353 = vpop.permute.xlu0 %352
  %vm355 = vcmask 64512
  %v357 = vsel %vm355, %v348, 0
  %359 = vmatprep.subr.mxu0 0.0
  %360 = vmatpush1.msra.mxu0 0.0
  %361 = vmatprep.subr.mxu0 0.0
  %362 = vmatpush1.msra.mxu0 0.0
  %363 = vmatprep.subr.mxu0 0.0
  %364 = vmatpush1.msra.mxu0 0.0
  %365 = vmatprep.subr.mxu0 0.0
  %366 = vmatpush1.msra.mxu0 0.0
  %367 = vmatprep.subr.mxu0 0.0
  %368 = vmatpush1.msra.mxu0 0.0
  %369 = vmatprep.subr.mxu0 0.0
  %370 = vmatpush1.msra.mxu0 0.0
  %371 = vmatprep.subr.mxu0 0.0
  %372 = vmatpush1.msra.mxu0 0.0
  %373 = vmatprep.subr.mxu0 0.0
  %374 = vmatpush1.msra.mxu0 0.0
  %375 = vmatprep.subr.mxu0 0.0
  %376 = vmatpush1.msra.mxu0 0.0
  %377 = vmatprep.subr.mxu0 0.0
  %378 = vmatpush1.msra.mxu0 0.0
  %379 = vmatprep.subr.mxu0 0.0
  %380 = vmatpush1.msra.mxu0 0.0
  %381 = vmatprep.subr.mxu0 0.0
  %382 = vmatpush1.msra.mxu0 0.0
  %383 = vmatprep.subr.mxu0 0.0
  %384 = vmatpush1.msra.mxu0 0.0
  %385 = vmatprep.subr.mxu0 0.0
  %386 = vmatpush1.msra.mxu0 0.0
  %387 = vmatprep.subr.mxu0 0.0
  %388 = vmatpush1.msra.mxu0 0.0
  %389 = vmatprep.subr.mxu0 %v81
  %390 = vmatpush1.msra.mxu0 %v80
  %391 = vmatprep.subr.mxu0 0.0
  %392 = vmatpush2.msra.mxu0 0.0
  %393 = vmatprep.subr.mxu0 0.0
  %394 = vmatpush2.msra.mxu0 0.0
  %395 = vmatprep.subr.mxu0 0.0
  %396 = vmatpush2.msra.mxu0 0.0
  %397 = vmatprep.subr.mxu0 0.0
  %398 = vmatpush2.msra.mxu0 0.0
  %399 = vmatprep.subr.mxu0 0.0
  %400 = vmatpush2.msra.mxu0 0.0
  %401 = vmatprep.subr.mxu0 0.0
  %402 = vmatpush2.msra.mxu0 0.0
  %403 = vmatprep.subr.mxu0 0.0
  %404 = vmatpush2.msra.mxu0 0.0
  %405 = vmatprep.subr.mxu0 0.0
  %406 = vmatpush2.msra.mxu0 0.0
  %407 = vmatprep.subr.mxu0 0.0
  %408 = vmatpush2.msra.mxu0 0.0
  %409 = vmatprep.subr.mxu0 0.0
  %410 = vmatpush2.msra.mxu0 0.0
  %411 = vmatprep.subr.mxu0 0.0
  %412 = vmatpush2.msra.mxu0 0.0
  %413 = vmatprep.subr.mxu0 0.0
  %414 = vmatpush2.msra.mxu0 0.0
  %415 = vmatprep.subr.mxu0 0.0
  %416 = vmatpush2.msra.mxu0 0.0
  %417 = vmatprep.subr.mxu0 0.0
  %418 = vmatpush2.msra.mxu0 0.0
  %419 = vmatprep.subr.mxu0 0.0
  %420 = vmatpush2.msra.mxu0 0.0
  %421 = vmatprep.subr.mxu0 0.0
  %422 = vmatpush2.msra.mxu0 0.0
  %423 = vmatprep.mubr.f32.mxu0 0.0
  %424 = vmatmul.mubr.f32.gmra.mxu0 %v357
  %v425 = vpop.f32.mrf.mxu0
  %v426 = vadd.f32 %v353, %v425
  %v427 = vpop.f32.mrf.mxu0
  %v428 = vadd.f32 %v353, %v427
  %429 = vdwg.mxu0
  %v430 = vmax.f32 %v426, 0.0
  %v431 = vmax.f32 %v428, 0.0
  %v432 = vld [vmem:[%s7] sm:$0xff]
  %v433 = vld [vmem:[%s8] sm:$0xff]
  %435 = vset.pattern.permute.xlu0 0
  %436 = vperm.xlu0 %435, %v433
  %v437 = vpop.permute.xlu0 %436
  %v440 = vsel %vm355, %v432, 0
  %442 = vmatprep.subr.mxu0 0.0
  %443 = vmatpush1.msra.mxu0 0.0
  %444 = vmatprep.subr.mxu0 0.0
  %445 = vmatpush1.msra.mxu0 0.0
  %446 = vmatprep.subr.mxu0 0.0
  %447 = vmatpush1.msra.mxu0 0.0
  %448 = vmatprep.subr.mxu0 0.0
  %449 = vmatpush1.msra.mxu0 0.0
  %450 = vmatprep.subr.mxu0 0.0
  %451 = vmatpush1.msra.mxu0 0.0
  %452 = vmatprep.subr.mxu0 0.0
  %453 = vmatpush1.msra.mxu0 0.0
  %454 = vmatprep.subr.mxu0 0.0
  %455 = vmatpush1.msra.mxu0 0.0
  %456 = vmatprep.subr.mxu0 0.0
  %457 = vmatpush1.msra.mxu0 0.0
  %458 = vmatprep.subr.mxu0 0.0
  %459 = vmatpush1.msra.mxu0 0.0
  %460 = vmatprep.subr.mxu0 0.0
  %461 = vmatpush1.msra.mxu0 0.0
  %462 = vmatprep.subr.mxu0 0.0
  %463 = vmatpush1.msra.mxu0 0.0
  %464 = vmatprep.subr.mxu0 0.0
  %465 = vmatpush1.msra.mxu0 0.0
  %466 = vmatprep.subr.mxu0 0.0
  %467 = vmatpush1.msra.mxu0 0.0
  %468 = vmatprep.subr.mxu0 0.0
  %469 = vmatpush1.msra.mxu0 0.0
  %470 = vmatprep.subr.mxu0 0.0
  %471 = vmatpush1.msra.mxu0 0.0
  %472 = vmatprep.subr.mxu0 %v431
  %473 = vmatpush1.msra.mxu0 %v430
  %474 = vmatprep.subr.mxu0 0.0
  %475 = vmatpush2.msra.mxu0 0.0
  %476 = vmatprep.subr.mxu0 0.0
  %477 = vmatpush2.msra.mxu0 0.0
  %478 = vmatprep.subr.mxu0 0.0
  %479 = vmatpush2.msra.mxu0 0.0
  %480 = vmatprep.subr.mxu0 0.0
  %481 = vmatpush2.msra.mxu0 0.0
  %482 = vmatprep.subr.mxu0 0.0
  %483 = vmatpush2.msra.mxu0 0.0
  %484 = vmatprep.subr.mxu0 0.0
  %485 = vmatpush2.msra.mxu0 0.0
  %486 = vmatprep.subr.mxu0 0.0
  %487 = vmatpush2.msra.mxu0 0.0
  %488 = vmatprep.subr.mxu0 0.0
  %489 = vmatpush2.msra.mxu0 0.0
  %490 = vmatprep.subr.mxu0 0.0
  %491 = vmatpush2.msra.mxu0 0.0
  %492 = vmatprep.subr.mxu0 0.0
  %493 = vmatpush2.msra.mxu0 0.0
  %494 = vmatprep.subr.mxu0 0.0
  %495 = vmatpush2.msra.mxu0 0.0
  %496 = vmatprep.subr.mxu0 0.0
  %497 = vmatpush2.msra.mxu0 0.0
  %498 = vmatprep.subr.mxu0 0.0
  %499 = vmatpush2.msra.mxu0 0.0
  %500 = vmatprep.subr.mxu0 0.0
  %501 = vmatpush2.msra.mxu0 0.0
  %502 = vmatprep.subr.mxu0 0.0
  %503 = vmatpush2.msra.mxu0 0.0
  %504 = vmatprep.subr.mxu0 0.0
  %505 = vmatpush2.msra.mxu0 0.0
  %506 = vmatprep.mubr.f32.mxu0 0.0
  %507 = vmatmul.mubr.f32.gmra.mxu0 %v440
  %v508 = vpop.f32.mrf.mxu0
  %v509 = vadd.f32 %v437, %v508
  %v510 = vpop.f32.mrf.mxu0
  %v511 = vadd.f32 %v437, %v510
  %512 = vdwg.mxu0
  %v513 = vld [vmem:[%s9] sm:$0xff]
  %v514 = vld [vmem:[%s9 + $0x8] sm:$0xf]
  %v515 = vld [vmem:[%s10] sm:$0xff]
  %v516 = vld [vmem:[%s10 + $0x8] sm:$0xf]
  %518 = vset.pattern.permute.xlu0 0
  %519 = vperm.xlu0 %518, %v515
  %v520 = vpop.permute.xlu0 %519
  %523 = vset.pattern.permute.xlu0 0
  %524 = vperm.xlu0 %523, %v516
  %v525 = vpop.permute.xlu0 %524
  %v528 = vsel %vm355, %v513, 0
  %v531 = vsel %vm355, %v514, 0
  %533 = vmatprep.subr.mxu0 0.0
  %534 = vmatpush1.msra.mxu0 0.0
  %535 = vmatprep.subr.mxu0 0.0
  %536 = vmatpush1.msra.mxu0 0.0
  %537 = vmatprep.subr.mxu0 0.0
  %538 = vmatpush1.msra.mxu0 0.0
  %539 = vmatprep.subr.mxu0 0.0
  %540 = vmatpush1.msra.mxu0 0.0
  %541 = vmatprep.subr.mxu0 0.0
  %542 = vmatpush1.msra.mxu0 0.0
  %543 = vmatprep.subr.mxu0 0.0
  %544 = vmatpush1.msra.mxu0 0.0
  %545 = vmatprep.subr.mxu0 0.0
  %546 = vmatpush1.msra.mxu0 0.0
  %547 = vmatprep.subr.mxu0 0.0
  %548 = vmatpush1.msra.mxu0 0.0
  %549 = vmatprep.subr.mxu0 0.0
  %550 = vmatpush1.msra.mxu0 0.0
  %551 = vmatprep.subr.mxu0 0.0
  %552 = vmatpush1.msra.mxu0 0.0
  %553 = vmatprep.subr.mxu0 0.0
  %554 = vmatpush1.msra.mxu0 0.0
  %555 = vmatprep.subr.mxu0 0.0
  %556 = vmatpush1.msra.mxu0 0.0
  %557 = vmatprep.subr.mxu0 0.0
  %558 = vmatpush1.msra.mxu0 0.0
  %559 = vmatprep.subr.mxu0 0.0
  %560 = vmatpush1.msra.mxu0 0.0
  %561 = vmatprep.subr.mxu0 0.0
  %562 = vmatpush1.msra.mxu0 0.0
  %563 = vmatprep.subr.mxu0 %v83
  %564 = vmatpush1.msra.mxu0 %v82
  %565 = vmatprep.subr.mxu0 0.0
  %566 = vmatpush2.msra.mxu0 0.0
  %567 = vmatprep.subr.mxu0 0.0
  %568 = vmatpush2.msra.mxu0 0.0
  %569 = vmatprep.subr.mxu0 0.0
  %570 = vmatpush2.msra.mxu0 0.0
  %571 = vmatprep.subr.mxu0 0.0
  %572 = vmatpush2.msra.mxu0 0.0
  %573 = vmatprep.subr.mxu0 0.0
  %574 = vmatpush2.msra.mxu0 0.0
  %575 = vmatprep.subr.mxu0 0.0
  %576 = vmatpush2.msra.mxu0 0.0
  %577 = vmatprep.subr.mxu0 0.0
  %578 = vmatpush2.msra.mxu0 0.0
  %579 = vmatprep.subr.mxu0 0.0
  %580 = vmatpush2.msra.mxu0 0.0
  %581 = vmatprep.subr.mxu0 0.0
  %582 = vmatpush2.msra.mxu0 0.0
  %583 = vmatprep.subr.mxu0 0.0
  %584 = vmatpush2.msra.mxu0 0.0
  %585 = vmatprep.subr.mxu0 0.0
  %586 = vmatpush2.msra.mxu0 0.0
  %587 = vmatprep.subr.mxu0 0.0
  %588 = vmatpush2.msra.mxu0 0.0
  %589 = vmatprep.subr.mxu0 0.0
  %590 = vmatpush2.msra.mxu0 0.0
  %591 = vmatprep.subr.mxu0 0.0
  %592 = vmatpush2.msra.mxu0 0.0
  %593 = vmatprep.subr.mxu0 0.0
  %594 = vmatpush2.msra.mxu0 0.0
  %595 = vmatprep.subr.mxu0 0.0
  %596 = vmatpush2.msra.mxu0 0.0
  %597 = vmatprep.mubr.f32.mxu0 0.0
  %598 = vmatmul.mubr.f32.gmra.mxu0 %v528
  %v599 = vpop.f32.mrf.mxu0
  %v600 = vadd.f32 %v520, %v599
  %v601 = vpop.f32.mrf.mxu0
  %v602 = vadd.f32 %v520, %v601
  %603 = vmatprep.mubr.f32.mxu0 0.0
  %604 = vmatmul.mubr.f32.gmra.mxu0 %v531
  %v605 = vpop.f32.mrf.mxu0
  %v606 = vadd.f32 %v525, %v605
  %v607 = vpop.f32.mrf.mxu0
  %v608 = vadd.f32 %v525, %v607
  %609 = vdwg.mxu0
  %610 = vmatprep.subr.mxu0 0.0
  %611 = vmatpush1.msra.mxu0 0.0
  %612 = vmatprep.subr.mxu0 0.0
  %613 = vmatpush1.msra.mxu0 0.0
  %614 = vmatprep.subr.mxu0 0.0
  %615 = vmatpush1.msra.mxu0 0.0
  %616 = vmatprep.subr.mxu0 0.0
  %617 = vmatpush1.msra.mxu0 0.0
  %618 = vmatprep.subr.mxu0 0.0
  %619 = vmatpush1.msra.mxu0 0.0
  %620 = vmatprep.subr.mxu0 0.0
  %621 = vmatpush1.msra.mxu0 0.0
  %622 = vmatprep.subr.mxu0 0.0
  %623 = vmatpush1.msra.mxu0 0.0
  %624 = vmatprep.subr.mxu0 0.0
  %625 = vmatpush1.msra.mxu0 0.0
  %626 = vmatprep.subr.mxu0 0.0
  %627 = vmatpush1.msra.mxu0 0.0
  %628 = vmatprep.subr.mxu0 0.0
  %629 = vmatpush1.msra.mxu0 0.0
  %630 = vmatprep.subr.mxu0 0.0
  %631 = vmatpush1.msra.mxu0 0.0
  %632 = vmatprep.subr.mxu0 0.0
  %633 = vmatpush1.msra.mxu0 0.0
  %634 = vmatprep.subr.mxu0 0.0
  %635 = vmatpush1.msra.mxu0 0.0
  %636 = vmatprep.subr.mxu0 0.0
  %637 = vmatpush1.msra.mxu0 0.0
  %638 = vmatprep.subr.mxu0 0.0
  %639 = vmatpush1.msra.mxu0 0.0
  %640 = vmatprep.subr.mxu0 %v85
  %641 = vmatpush1.msra.mxu0 %v84
  %642 = vmatprep.subr.mxu0 0.0
  %643 = vmatpush2.msra.mxu0 0.0
  %644 = vmatprep.subr.mxu0 0.0
  %645 = vmatpush2.msra.mxu0 0.0
  %646 = vmatprep.subr.mxu0 0.0
  %647 = vmatpush2.msra.mxu0 0.0
  %648 = vmatprep.subr.mxu0 0.0
  %649 = vmatpush2.msra.mxu0 0.0
  %650 = vmatprep.subr.mxu0 0.0
  %651 = vmatpush2.msra.mxu0 0.0
  %652 = vmatprep.subr.mxu0 0.0
  %653 = vmatpush2.msra.mxu0 0.0
  %654 = vmatprep.subr.mxu0 0.0
  %655 = vmatpush2.msra.mxu0 0.0
  %656 = vmatprep.subr.mxu0 0.0
  %657 = vmatpush2.msra.mxu0 0.0
  %658 = vmatprep.subr.mxu0 0.0
  %659 = vmatpush2.msra.mxu0 0.0
  %660 = vmatprep.subr.mxu0 0.0
  %661 = vmatpush2.msra.mxu0 0.0
  %662 = vmatprep.subr.mxu0 0.0
  %663 = vmatpush2.msra.mxu0 0.0
  %664 = vmatprep.subr.mxu0 0.0
  %665 = vmatpush2.msra.mxu0 0.0
  %666 = vmatprep.subr.mxu0 0.0
  %667 = vmatpush2.msra.mxu0 0.0
  %668 = vmatprep.subr.mxu0 0.0
  %669 = vmatpush2.msra.mxu0 0.0
  %670 = vmatprep.subr.mxu0 0.0
  %671 = vmatpush2.msra.mxu0 0.0
  %672 = vmatprep.subr.mxu0 0.0
  %673 = vmatpush2.msra.mxu0 0.0
  %674 = vmatprep.mubr.f32.mxu0 0.0
  %675 = vmatmul.mubr.f32.gmra.mxu0 %v528
  %v676 = vpop.f32.mrf.mxu0
  %v677 = vadd.f32 %v520, %v676
  %v678 = vpop.f32.mrf.mxu0
  %v679 = vadd.f32 %v520, %v678
  %680 = vmatprep.mubr.f32.mxu0 0.0
  %681 = vmatmul.mubr.f32.gmra.mxu0 %v531
  %v682 = vpop.f32.mrf.mxu0
  %v683 = vadd.f32 %v525, %v682
  %v684 = vpop.f32.mrf.mxu0
  %v685 = vadd.f32 %v525, %v684
  %686 = vdwg.mxu0
  %687 = vmatprep.subr.mxu0 0.0
  %688 = vmatpush1.msra.mxu0 0.0
  %689 = vmatprep.subr.mxu0 0.0
  %690 = vmatpush1.msra.mxu0 0.0
  %691 = vmatprep.subr.mxu0 0.0
  %692 = vmatpush1.msra.mxu0 0.0
  %693 = vmatprep.subr.mxu0 0.0
  %694 = vmatpush1.msra.mxu0 0.0
  %695 = vmatprep.subr.mxu0 0.0
  %696 = vmatpush1.msra.mxu0 0.0
  %697 = vmatprep.subr.mxu0 0.0
  %698 = vmatpush1.msra.mxu0 0.0
  %699 = vmatprep.subr.mxu0 0.0
  %700 = vmatpush1.msra.mxu0 0.0
  %701 = vmatprep.subr.mxu0 0.0
  %702 = vmatpush1.msra.mxu0 0.0
  %703 = vmatprep.subr.mxu0 0.0
  %704 = vmatpush1.msra.mxu0 0.0
  %705 = vmatprep.subr.mxu0 0.0
  %706 = vmatpush1.msra.mxu0 0.0
  %707 = vmatprep.subr.mxu0 0.0
  %708 = vmatpush1.msra.mxu0 0.0
  %709 = vmatprep.subr.mxu0 0.0
  %710 = vmatpush1.msra.mxu0 0.0
  %711 = vmatprep.subr.mxu0 0.0
  %712 = vmatpush1.msra.mxu0 0.0
  %713 = vmatprep.subr.mxu0 0.0
  %714 = vmatpush1.msra.mxu0 0.0
  %715 = vmatprep.subr.mxu0 0.0
  %716 = vmatpush1.msra.mxu0 0.0
  %717 = vmatprep.subr.mxu0 %v87
  %718 = vmatpush1.msra.mxu0 %v86
  %719 = vmatprep.subr.mxu0 0.0
  %720 = vmatpush2.msra.mxu0 0.0
  %721 = vmatprep.subr.mxu0 0.0
  %722 = vmatpush2.msra.mxu0 0.0
  %723 = vmatprep.subr.mxu0 0.0
  %724 = vmatpush2.msra.mxu0 0.0
  %725 = vmatprep.subr.mxu0 0.0
  %726 = vmatpush2.msra.mxu0 0.0
  %727 = vmatprep.subr.mxu0 0.0
  %728 = vmatpush2.msra.mxu0 0.0
  %729 = vmatprep.subr.mxu0 0.0
  %730 = vmatpush2.msra.mxu0 0.0
  %731 = vmatprep.subr.mxu0 0.0
  %732 = vmatpush2.msra.mxu0 0.0
  %733 = vmatprep.subr.mxu0 0.0
  %734 = vmatpush2.msra.mxu0 0.0
  %735 = vmatprep.subr.mxu0 0.0
  %736 = vmatpush2.msra.mxu0 0.0
  %737 = vmatprep.subr.mxu0 0.0
  %738 = vmatpush2.msra.mxu0 0.0
  %739 = vmatprep.subr.mxu0 0.0
  %740 = vmatpush2.msra.mxu0 0.0
  %741 = vmatprep.subr.mxu0 0.0
  %742 = vmatpush2.msra.mxu0 0.0
  %743 = vmatprep.subr.mxu0 0.0
  %744 = vmatpush2.msra.mxu0 0.0
  %745 = vmatprep.subr.mxu0 0.0
  %746 = vmatpush2.msra.mxu0 0.0
  %747 = vmatprep.subr.mxu0 0.0
  %748 = vmatpush2.msra.mxu0 0.0
  %749 = vmatprep.subr.mxu0 0.0
  %750 = vmatpush2.msra.mxu0 0.0
  %751 = vmatprep.mubr.f32.mxu0 0.0
  %752 = vmatmul.mubr.f32.gmra.mxu0 %v528
  %v753 = vpop.f32.mrf.mxu0
  %v754 = vadd.f32 %v520, %v753
  %v755 = vpop.f32.mrf.mxu0
  %v756 = vadd.f32 %v520, %v755
  %757 = vmatprep.mubr.f32.mxu0 0.0
  %758 = vmatmul.mubr.f32.gmra.mxu0 %v531
  %v759 = vpop.f32.mrf.mxu0
  %v760 = vadd.f32 %v525, %v759
  %v761 = vpop.f32.mrf.mxu0
  %v762 = vadd.f32 %v525, %v761
  %763 = vdwg.mxu0
  %764 = vmatprep.subr.mxu0 0.0
  %765 = vmatpush1.msra.mxu0 0.0
  %766 = vmatprep.subr.mxu0 0.0
  %767 = vmatpush1.msra.mxu0 0.0
  %768 = vmatprep.subr.mxu0 0.0
  %769 = vmatpush1.msra.mxu0 0.0
  %770 = vmatprep.subr.mxu0 0.0
  %771 = vmatpush1.msra.mxu0 0.0
  %772 = vmatprep.subr.mxu0 0.0
  %773 = vmatpush1.msra.mxu0 0.0
  %774 = vmatprep.subr.mxu0 0.0
  %775 = vmatpush1.msra.mxu0 0.0
  %776 = vmatprep.subr.mxu0 0.0
  %777 = vmatpush1.msra.mxu0 0.0
  %778 = vmatprep.subr.mxu0 0.0
  %779 = vmatpush1.msra.mxu0 0.0
  %780 = vmatprep.subr.mxu0 0.0
  %781 = vmatpush1.msra.mxu0 0.0
  %782 = vmatprep.subr.mxu0 0.0
  %783 = vmatpush1.msra.mxu0 0.0
  %784 = vmatprep.subr.mxu0 0.0
  %785 = vmatpush1.msra.mxu0 0.0
  %786 = vmatprep.subr.mxu0 0.0
  %787 = vmatpush1.msra.mxu0 0.0
  %788 = vmatprep.subr.mxu0 0.0
  %789 = vmatpush1.msra.mxu0 0.0
  %790 = vmatprep.subr.mxu0 0.0
  %791 = vmatpush1.msra.mxu0 0.0
  %792 = vmatprep.subr.mxu0 0.0
  %793 = vmatpush1.msra.mxu0 0.0
  %794 = vmatprep.subr.mxu0 %v89
  %795 = vmatpush1.msra.mxu0 %v88
  %796 = vmatprep.subr.mxu0 0.0
  %797 = vmatpush2.msra.mxu0 0.0
  %798 = vmatprep.subr.mxu0 0.0
  %799 = vmatpush2.msra.mxu0 0.0
  %800 = vmatprep.subr.mxu0 0.0
  %801 = vmatpush2.msra.mxu0 0.0
  %802 = vmatprep.subr.mxu0 0.0
  %803 = vmatpush2.msra.mxu0 0.0
  %804 = vmatprep.subr.mxu0 0.0
  %805 = vmatpush2.msra.mxu0 0.0
  %806 = vmatprep.subr.mxu0 0.0
  %807 = vmatpush2.msra.mxu0 0.0
  %808 = vmatprep.subr.mxu0 0.0
  %809 = vmatpush2.msra.mxu0 0.0
  %810 = vmatprep.subr.mxu0 0.0
  %811 = vmatpush2.msra.mxu0 0.0
  %812 = vmatprep.subr.mxu0 0.0
  %813 = vmatpush2.msra.mxu0 0.0
  %814 = vmatprep.subr.mxu0 0.0
  %815 = vmatpush2.msra.mxu0 0.0
  %816 = vmatprep.subr.mxu0 0.0
  %817 = vmatpush2.msra.mxu0 0.0
  %818 = vmatprep.subr.mxu0 0.0
  %819 = vmatpush2.msra.mxu0 0.0
  %820 = vmatprep.subr.mxu0 0.0
  %821 = vmatpush2.msra.mxu0 0.0
  %822 = vmatprep.subr.mxu0 0.0
  %823 = vmatpush2.msra.mxu0 0.0
  %824 = vmatprep.subr.mxu0 0.0
  %825 = vmatpush2.msra.mxu0 0.0
  %826 = vmatprep.subr.mxu0 0.0
  %827 = vmatpush2.msra.mxu0 0.0
  %828 = vmatprep.mubr.f32.mxu0 0.0
  %829 = vmatmul.mubr.f32.gmra.mxu0 %v528
  %v830 = vpop.f32.mrf.mxu0
  %v831 = vadd.f32 %v520, %v830
  %v832 = vpop.f32.mrf.mxu0
  %v833 = vadd.f32 %v520, %v832
  %834 = vmatprep.mubr.f32.mxu0 0.0
  %835 = vmatmul.mubr.f32.gmra.mxu0 %v531
  %v836 = vpop.f32.mrf.mxu0
  %v837 = vadd.f32 %v525, %v836
  %v838 = vpop.f32.mrf.mxu0
  %v839 = vadd.f32 %v525, %v838
  %840 = vdwg.mxu0
  %v841 = vmax.f32 %v600, 0.0
  %v842 = vmax.f32 %v602, 0.0
  %v843 = vmax.f32 %v677, 0.0
  %v844 = vmax.f32 %v679, 0.0
  %v845 = vmax.f32 %v754, 0.0
  %v846 = vmax.f32 %v756, 0.0
  %v847 = vmax.f32 %v831, 0.0
  %v848 = vmax.f32 %v833, 0.0
  %v849 = vmax.f32 %v606, 0.0
  %v850 = vmax.f32 %v608, 0.0
  %v851 = vmax.f32 %v683, 0.0
  %v852 = vmax.f32 %v685, 0.0
  %v853 = vmax.f32 %v760, 0.0
  %v854 = vmax.f32 %v762, 0.0
  %v855 = vmax.f32 %v837, 0.0
  %v856 = vmax.f32 %v839, 0.0
  %v857 = vld [vmem:[%s11] sm:$0xff]
  %v858 = vld [vmem:[%s12] sm:$0xff]
  %860 = vset.pattern.permute.xlu0 0
  %861 = vperm.xlu0 %860, %v858
  %v862 = vpop.permute.xlu0 %861
  %vm864 = vcmask 97280
  %v866 = vsel %vm864, %v857, 0
  %vm868 = vcmask 1043456
  %v870 = vsel %vm868, %v849, 0
  %v873 = vsel %vm868, %v850, 0
  %v876 = vsel %vm868, %v851, 0
  %v879 = vsel %vm868, %v852, 0
  %v882 = vsel %vm868, %v853, 0
  %v885 = vsel %vm868, %v854, 0
  %v888 = vsel %vm868, %v855, 0
  %v891 = vsel %vm868, %v856, 0
  %893 = vmatprep.subr.mxu0 0.0
  %894 = vmatpush1.msra.mxu0 0.0
  %895 = vmatprep.subr.mxu0 0.0
  %896 = vmatpush1.msra.mxu0 0.0
  %897 = vmatprep.subr.mxu0 0.0
  %898 = vmatpush1.msra.mxu0 0.0
  %899 = vmatprep.subr.mxu0 0.0
  %900 = vmatpush1.msra.mxu0 0.0
  %901 = vmatprep.subr.mxu0 0.0
  %902 = vmatpush1.msra.mxu0 0.0
  %903 = vmatprep.subr.mxu0 0.0
  %904 = vmatpush1.msra.mxu0 0.0
  %905 = vmatprep.subr.mxu0 0.0
  %906 = vmatpush1.msra.mxu0 0.0
  %907 = vmatprep.subr.mxu0 0.0
  %908 = vmatpush1.msra.mxu0 0.0
  %909 = vmatprep.subr.mxu0 0.0
  %910 = vmatpush1.msra.mxu0 0.0
  %911 = vmatprep.subr.mxu0 0.0
  %912 = vmatpush1.msra.mxu0 0.0
  %913 = vmatprep.subr.mxu0 0.0
  %914 = vmatpush1.msra.mxu0 0.0
  %915 = vmatprep.subr.mxu0 0.0
  %916 = vmatpush1.msra.mxu0 0.0
  %917 = vmatprep.subr.mxu0 0.0
  %918 = vmatpush1.msra.mxu0 0.0
  %919 = vmatprep.subr.mxu0 0.0
  %920 = vmatpush1.msra.mxu0 0.0
  %921 = vmatprep.subr.mxu0 %v873
  %922 = vmatpush1.msra.mxu0 %v870
  %923 = vmatprep.subr.mxu0 %v842
  %924 = vmatpush1.msra.mxu0 %v841
  %925 = vmatprep.subr.mxu0 0.0
  %926 = vmatpush2.msra.mxu0 0.0
  %927 = vmatprep.subr.mxu0 0.0
  %928 = vmatpush2.msra.mxu0 0.0
  %929 = vmatprep.subr.mxu0 0.0
  %930 = vmatpush2.msra.mxu0 0.0
  %931 = vmatprep.subr.mxu0 0.0
  %932 = vmatpush2.msra.mxu0 0.0
  %933 = vmatprep.subr.mxu0 0.0
  %934 = vmatpush2.msra.mxu0 0.0
  %935 = vmatprep.subr.mxu0 0.0
  %936 = vmatpush2.msra.mxu0 0.0
  %937 = vmatprep.subr.mxu0 0.0
  %938 = vmatpush2.msra.mxu0 0.0
  %939 = vmatprep.subr.mxu0 0.0
  %940 = vmatpush2.msra.mxu0 0.0
  %941 = vmatprep.subr.mxu0 0.0
  %942 = vmatpush2.msra.mxu0 0.0
  %943 = vmatprep.subr.mxu0 0.0
  %944 = vmatpush2.msra.mxu0 0.0
  %945 = vmatprep.subr.mxu0 0.0
  %946 = vmatpush2.msra.mxu0 0.0
  %947 = vmatprep.subr.mxu0 0.0
  %948 = vmatpush2.msra.mxu0 0.0
  %949 = vmatprep.subr.mxu0 0.0
  %950 = vmatpush2.msra.mxu0 0.0
  %951 = vmatprep.subr.mxu0 0.0
  %952 = vmatpush2.msra.mxu0 0.0
  %953 = vmatprep.subr.mxu0 0.0
  %954 = vmatpush2.msra.mxu0 0.0
  %955 = vmatprep.subr.mxu0 0.0
  %956 = vmatpush2.msra.mxu0 0.0
  %957 = vmatprep.mubr.f32.mxu0 0.0
  %958 = vmatmul.mubr.f32.gmra.mxu0 %v866
  %v959 = vpop.f32.mrf.mxu0
  %v960 = vadd.f32 %v862, %v959
  %v961 = vpop.f32.mrf.mxu0
  %v962 = vadd.f32 %v862, %v961
  %963 = vdwg.mxu0
  %964 = vmatprep.subr.mxu0 0.0
  %965 = vmatpush1.msra.mxu0 0.0
  %966 = vmatprep.subr.mxu0 0.0
  %967 = vmatpush1.msra.mxu0 0.0
  %968 = vmatprep.subr.mxu0 0.0
  %969 = vmatpush1.msra.mxu0 0.0
  %970 = vmatprep.subr.mxu0 0.0
  %971 = vmatpush1.msra.mxu0 0.0
  %972 = vmatprep.subr.mxu0 0.0
  %973 = vmatpush1.msra.mxu0 0.0
  %974 = vmatprep.subr.mxu0 0.0
  %975 = vmatpush1.msra.mxu0 0.0
  %976 = vmatprep.subr.mxu0 0.0
  %977 = vmatpush1.msra.mxu0 0.0
  %978 = vmatprep.subr.mxu0 0.0
  %979 = vmatpush1.msra.mxu0 0.0
  %980 = vmatprep.subr.mxu0 0.0
  %981 = vmatpush1.msra.mxu0 0.0
  %982 = vmatprep.subr.mxu0 0.0
  %983 = vmatpush1.msra.mxu0 0.0
  %984 = vmatprep.subr.mxu0 0.0
  %985 = vmatpush1.msra.mxu0 0.0
  %986 = vmatprep.subr.mxu0 0.0
  %987 = vmatpush1.msra.mxu0 0.0
  %988 = vmatprep.subr.mxu0 0.0
  %989 = vmatpush1.msra.mxu0 0.0
  %990 = vmatprep.subr.mxu0 0.0
  %991 = vmatpush1.msra.mxu0 0.0
  %992 = vmatprep.subr.mxu0 %v879
  %993 = vmatpush1.msra.mxu0 %v876
  %994 = vmatprep.subr.mxu0 %v844
  %995 = vmatpush1.msra.mxu0 %v843
  %996 = vmatprep.subr.mxu0 0.0
  %997 = vmatpush2.msra.mxu0 0.0
  %998 = vmatprep.subr.mxu0 0.0
  %999 = vmatpush2.msra.mxu0 0.0
  %1000 = vmatprep.subr.mxu0 0.0
  %1001 = vmatpush2.msra.mxu0 0.0
  %1002 = vmatprep.subr.mxu0 0.0
  %1003 = vmatpush2.msra.mxu0 0.0
  %1004 = vmatprep.subr.mxu0 0.0
  %1005 = vmatpush2.msra.mxu0 0.0
  %1006 = vmatprep.subr.mxu0 0.0
  %1007 = vmatpush2.msra.mxu0 0.0
  %1008 = vmatprep.subr.mxu0 0.0
  %1009 = vmatpush2.msra.mxu0 0.0
  %1010 = vmatprep.subr.mxu0 0.0
  %1011 = vmatpush2.msra.mxu0 0.0
  %1012 = vmatprep.subr.mxu0 0.0
  %1013 = vmatpush2.msra.mxu0 0.0
  %1014 = vmatprep.subr.mxu0 0.0
  %1015 = vmatpush2.msra.mxu0 0.0
  %1016 = vmatprep.subr.mxu0 0.0
  %1017 = vmatpush2.msra.mxu0 0.0
  %1018 = vmatprep.subr.mxu0 0.0
  %1019 = vmatpush2.msra.mxu0 0.0
  %1020 = vmatprep.subr.mxu0 0.0
  %1021 = vmatpush2.msra.mxu0 0.0
  %1022 = vmatprep.subr.mxu0 0.0
  %1023 = vmatpush2.msra.mxu0 0.0
  %1024 = vmatprep.subr.mxu0 0.0
  %1025 = vmatpush2.msra.mxu0 0.0
  %1026 = vmatprep.subr.mxu0 0.0
  %1027 = vmatpush2.msra.mxu0 0.0
  %1028 = vmatprep.mubr.f32.mxu0 0.0
  %1029 = vmatmul.mubr.f32.gmra.mxu0 %v866
  %v1030 = vpop.f32.mrf.mxu0
  %v1031 = vadd.f32 %v862, %v1030
  %v1032 = vpop.f32.mrf.mxu0
  %v1033 = vadd.f32 %v862, %v1032
  %1034 = vdwg.mxu0
  %1035 = vmatprep.subr.mxu0 0.0
  %1036 = vmatpush1.msra.mxu0 0.0
  %1037 = vmatprep.subr.mxu0 0.0
  %1038 = vmatpush1.msra.mxu0 0.0
  %1039 = vmatprep.subr.mxu0 0.0
  %1040 = vmatpush1.msra.mxu0 0.0
  %1041 = vmatprep.subr.mxu0 0.0
  %1042 = vmatpush1.msra.mxu0 0.0
  %1043 = vmatprep.subr.mxu0 0.0
  %1044 = vmatpush1.msra.mxu0 0.0
  %1045 = vmatprep.subr.mxu0 0.0
  %1046 = vmatpush1.msra.mxu0 0.0
  %1047 = vmatprep.subr.mxu0 0.0
  %1048 = vmatpush1.msra.mxu0 0.0
  %1049 = vmatprep.subr.mxu0 0.0
  %1050 = vmatpush1.msra.mxu0 0.0
  %1051 = vmatprep.subr.mxu0 0.0
  %1052 = vmatpush1.msra.mxu0 0.0
  %1053 = vmatprep.subr.mxu0 0.0
  %1054 = vmatpush1.msra.mxu0 0.0
  %1055 = vmatprep.subr.mxu0 0.0
  %1056 = vmatpush1.msra.mxu0 0.0
  %1057 = vmatprep.subr.mxu0 0.0
  %1058 = vmatpush1.msra.mxu0 0.0
  %1059 = vmatprep.subr.mxu0 0.0
  %1060 = vmatpush1.msra.mxu0 0.0
  %1061 = vmatprep.subr.mxu0 0.0
  %1062 = vmatpush1.msra.mxu0 0.0
  %1063 = vmatprep.subr.mxu0 %v885
  %1064 = vmatpush1.msra.mxu0 %v882
  %1065 = vmatprep.subr.mxu0 %v846
  %1066 = vmatpush1.msra.mxu0 %v845
  %1067 = vmatprep.subr.mxu0 0.0
  %1068 = vmatpush2.msra.mxu0 0.0
  %1069 = vmatprep.subr.mxu0 0.0
  %1070 = vmatpush2.msra.mxu0 0.0
  %1071 = vmatprep.subr.mxu0 0.0
  %1072 = vmatpush2.msra.mxu0 0.0
  %1073 = vmatprep.subr.mxu0 0.0
  %1074 = vmatpush2.msra.mxu0 0.0
  %1075 = vmatprep.subr.mxu0 0.0
  %1076 = vmatpush2.msra.mxu0 0.0
  %1077 = vmatprep.subr.mxu0 0.0
  %1078 = vmatpush2.msra.mxu0 0.0
  %1079 = vmatprep.subr.mxu0 0.0
  %1080 = vmatpush2.msra.mxu0 0.0
  %1081 = vmatprep.subr.mxu0 0.0
  %1082 = vmatpush2.msra.mxu0 0.0
  %1083 = vmatprep.subr.mxu0 0.0
  %1084 = vmatpush2.msra.mxu0 0.0
  %1085 = vmatprep.subr.mxu0 0.0
  %1086 = vmatpush2.msra.mxu0 0.0
  %1087 = vmatprep.subr.mxu0 0.0
  %1088 = vmatpush2.msra.mxu0 0.0
  %1089 = vmatprep.subr.mxu0 0.0
  %1090 = vmatpush2.msra.mxu0 0.0
  %1091 = vmatprep.subr.mxu0 0.0
  %1092 = vmatpush2.msra.mxu0 0.0
  %1093 = vmatprep.subr.mxu0 0.0
  %1094 = vmatpush2.msra.mxu0 0.0
  %1095 = vmatprep.subr.mxu0 0.0
  %1096 = vmatpush2.msra.mxu0 0.0
  %1097 = vmatprep.subr.mxu0 0.0
  %1098 = vmatpush2.msra.mxu0 0.0
  %1099 = vmatprep.mubr.f32.mxu0 0.0
  %1100 = vmatmul.mubr.f32.gmra.mxu0 %v866
  %v1101 = vpop.f32.mrf.mxu0
  %v1102 = vadd.f32 %v862, %v1101
  %v1103 = vpop.f32.mrf.mxu0
  %v1104 = vadd.f32 %v862, %v1103
  %1105 = vdwg.mxu0
  %1106 = vmatprep.subr.mxu0 0.0
  %1107 = vmatpush1.msra.mxu0 0.0
  %1108 = vmatprep.subr.mxu0 0.0
  %1109 = vmatpush1.msra.mxu0 0.0
  %1110 = vmatprep.subr.mxu0 0.0
  %1111 = vmatpush1.msra.mxu0 0.0
  %1112 = vmatprep.subr.mxu0 0.0
  %1113 = vmatpush1.msra.mxu0 0.0
  %1114 = vmatprep.subr.mxu0 0.0
  %1115 = vmatpush1.msra.mxu0 0.0
  %1116 = vmatprep.subr.mxu0 0.0
  %1117 = vmatpush1.msra.mxu0 0.0
  %1118 = vmatprep.subr.mxu0 0.0
  %1119 = vmatpush1.msra.mxu0 0.0
  %1120 = vmatprep.subr.mxu0 0.0
  %1121 = vmatpush1.msra.mxu0 0.0
  %1122 = vmatprep.subr.mxu0 0.0
  %1123 = vmatpush1.msra.mxu0 0.0
  %1124 = vmatprep.subr.mxu0 0.0
  %1125 = vmatpush1.msra.mxu0 0.0
  %1126 = vmatprep.subr.mxu0 0.0
  %1127 = vmatpush1.msra.mxu0 0.0
  %1128 = vmatprep.subr.mxu0 0.0
  %1129 = vmatpush1.msra.mxu0 0.0
  %1130 = vmatprep.subr.mxu0 0.0
  %1131 = vmatpush1.msra.mxu0 0.0
  %1132 = vmatprep.subr.mxu0 0.0
  %1133 = vmatpush1.msra.mxu0 0.0
  %1134 = vmatprep.subr.mxu0 %v891
  %1135 = vmatpush1.msra.mxu0 %v888
  %1136 = vmatprep.subr.mxu0 %v848
  %1137 = vmatpush1.msra.mxu0 %v847
  %1138 = vmatprep.subr.mxu0 0.0
  %1139 = vmatpush2.msra.mxu0 0.0
  %1140 = vmatprep.subr.mxu0 0.0
  %1141 = vmatpush2.msra.mxu0 0.0
  %1142 = vmatprep.subr.mxu0 0.0
  %1143 = vmatpush2.msra.mxu0 0.0
  %1144 = vmatprep.subr.mxu0 0.0
  %1145 = vmatpush2.msra.mxu0 0.0
  %1146 = vmatprep.subr.mxu0 0.0
  %1147 = vmatpush2.msra.mxu0 0.0
  %1148 = vmatprep.subr.mxu0 0.0
  %1149 = vmatpush2.msra.mxu0 0.0
  %1150 = vmatprep.subr.mxu0 0.0
  %1151 = vmatpush2.msra.mxu0 0.0
  %1152 = vmatprep.subr.mxu0 0.0
  %1153 = vmatpush2.msra.mxu0 0.0
  %1154 = vmatprep.subr.mxu0 0.0
  %1155 = vmatpush2.msra.mxu0 0.0
  %1156 = vmatprep.subr.mxu0 0.0
  %1157 = vmatpush2.msra.mxu0 0.0
  %1158 = vmatprep.subr.mxu0 0.0
  %1159 = vmatpush2.msra.mxu0 0.0
  %1160 = vmatprep.subr.mxu0 0.0
  %1161 = vmatpush2.msra.mxu0 0.0
  %1162 = vmatprep.subr.mxu0 0.0
  %1163 = vmatpush2.msra.mxu0 0.0
  %1164 = vmatprep.subr.mxu0 0.0
  %1165 = vmatpush2.msra.mxu0 0.0
  %1166 = vmatprep.subr.mxu0 0.0
  %1167 = vmatpush2.msra.mxu0 0.0
  %1168 = vmatprep.subr.mxu0 0.0
  %1169 = vmatpush2.msra.mxu0 0.0
  %1170 = vmatprep.mubr.f32.mxu0 0.0
  %1171 = vmatmul.mubr.f32.gmra.mxu0 %v866
  %v1172 = vpop.f32.mrf.mxu0
  %v1173 = vadd.f32 %v862, %v1172
  %v1174 = vpop.f32.mrf.mxu0
  %v1175 = vadd.f32 %v862, %v1174
  %1176 = vdwg.mxu0
  %v1178 = vlaneseq
  %v1179 = vshrl.u32 %v1178, 7
  %v1180 = vsub.s32 0, %v1179
  %v1181 = vrot.slane %v347, %v1180
  %v1182 = vlaneseq
  %v1183 = vshrl.u32 %v1182, 7
  %v1184 = vsub.s32 4, %v1183
  %v1185 = vrot.slane %v347, %v1184
  %v1188 = vlaneseq
  %v1189 = vshrl.u32 %v1188, 7
  %v1190 = vsub.s32 0, %v1189
  %v1191 = vrot.slane %v1181, %v1190
  %v1192 = vlaneseq
  %v1193 = vshrl.u32 %v1192, 7
  %v1194 = vsub.s32 0, %v1193
  %v1195 = vrot.slane %v1185, %v1194
  %v1196 = vmul.f32 %v960, %v1191
  %v1197 = vmul.f32 %v962, %v1195
  %v1198 = vadd.f32 %v509, %v1196
  %v1199 = vadd.f32 %v511, %v1197
  %v1200 = vlaneseq
  %v1201 = vshrl.u32 %v1200, 7
  %v1202 = vsub.s32 1, %v1201
  %v1203 = vrot.slane %v347, %v1202
  %v1204 = vlaneseq
  %v1205 = vshrl.u32 %v1204, 7
  %v1206 = vsub.s32 5, %v1205
  %v1207 = vrot.slane %v347, %v1206
  %v1210 = vlaneseq
  %v1211 = vshrl.u32 %v1210, 7
  %v1212 = vsub.s32 1, %v1211
  %v1213 = vrot.slane %v1203, %v1212
  %v1214 = vlaneseq
  %v1215 = vshrl.u32 %v1214, 7
  %v1216 = vsub.s32 1, %v1215
  %v1217 = vrot.slane %v1207, %v1216
  %v1218 = vmul.f32 %v1031, %v1213
  %v1219 = vmul.f32 %v1033, %v1217
  %v1220 = vadd.f32 %v1198, %v1218
  %v1221 = vadd.f32 %v1199, %v1219
  %v1222 = vlaneseq
  %v1223 = vshrl.u32 %v1222, 7
  %v1224 = vsub.s32 2, %v1223
  %v1225 = vrot.slane %v347, %v1224
  %v1226 = vlaneseq
  %v1227 = vshrl.u32 %v1226, 7
  %v1228 = vsub.s32 6, %v1227
  %v1229 = vrot.slane %v347, %v1228
  %v1232 = vlaneseq
  %v1233 = vshrl.u32 %v1232, 7
  %v1234 = vsub.s32 2, %v1233
  %v1235 = vrot.slane %v1225, %v1234
  %v1236 = vlaneseq
  %v1237 = vshrl.u32 %v1236, 7
  %v1238 = vsub.s32 2, %v1237
  %v1239 = vrot.slane %v1229, %v1238
  %v1240 = vmul.f32 %v1102, %v1235
  %v1241 = vmul.f32 %v1104, %v1239
  %v1242 = vadd.f32 %v1220, %v1240
  %v1243 = vadd.f32 %v1221, %v1241
  %v1244 = vlaneseq
  %v1245 = vshrl.u32 %v1244, 7
  %v1246 = vsub.s32 3, %v1245
  %v1247 = vrot.slane %v347, %v1246
  %v1248 = vlaneseq
  %v1249 = vshrl.u32 %v1248, 7
  %v1250 = vsub.s32 7, %v1249
  %v1251 = vrot.slane %v347, %v1250
  %v1254 = vlaneseq
  %v1255 = vshrl.u32 %v1254, 7
  %v1256 = vsub.s32 3, %v1255
  %v1257 = vrot.slane %v1247, %v1256
  %v1258 = vlaneseq
  %v1259 = vshrl.u32 %v1258, 7
  %v1260 = vsub.s32 3, %v1259
  %v1261 = vrot.slane %v1251, %v1260
  %v1262 = vmul.f32 %v1173, %v1257
  %v1263 = vmul.f32 %v1175, %v1261
  %v1264 = vadd.f32 %v1242, %v1262
  %v1265 = vadd.f32 %v1243, %v1263
  %v1266 = vcombine.high %v347, %v347
  %v1268 = vsel %vm868, %v347, 0.0
  %v1269 = vrot.slane %v1268, 4
  %v1270 = vadd.f32 %v1268, %v1269
  %v1271 = vrot.slane %v1270, 2
  %v1272 = vadd.f32 %v1270, %v1271
  %v1273 = vrot.slane %v1272, 1
  %v1274 = vadd.f32 %v1272, %v1273
  %v1275 = vsel %vm868, %v1266, 0.0
  %v1276 = vrot.slane %v1275, 4
  %v1277 = vadd.f32 %v1275, %v1276
  %v1278 = vrot.slane %v1277, 2
  %v1279 = vadd.f32 %v1277, %v1278
  %v1280 = vrot.slane %v1279, 1
  %v1281 = vadd.f32 %v1279, %v1280
  %v1282 = vadd.f32 %v1274, 1.0
  %v1283 = vadd.f32 %v1281, 1.0
  %v1284 = vrcp.pop %v1282
  %v1285 = vmul.f32 %v1264, %v1284
  %v1286 = vrcp.pop %v1283
  %v1287 = vmul.f32 %v1265, %v1286
  %v1288 = vld [vmem:[%s13] sm:$0xff]
  %v1289 = vld [vmem:[%s13 + $0x8] sm:$0xff]
  %v1290 = vld [vmem:[%s13 + $0x10] sm:$0xff]
  %v1291 = vld [vmem:[%s14] sm:$0xff]
  %v1292 = vld [vmem:[%s14 + $0x8] sm:$0xff]
  %v1293 = vld [vmem:[%s14 + $0x10] sm:$0xff]
  %1295 = vset.pattern.permute.xlu0 0
  %1296 = vperm.xlu0 %1295, %v1291
  %v1297 = vpop.permute.xlu0 %1296
  %1300 = vset.pattern.permute.xlu0 0
  %1301 = vperm.xlu0 %1300, %v1292
  %v1302 = vpop.permute.xlu0 %1301
  %1305 = vset.pattern.permute.xlu0 0
  %1306 = vperm.xlu0 %1305, %v1293
  %v1307 = vpop.permute.xlu0 %1306
  %v1310 = vsel %vm355, %v1288, 0
  %v1313 = vsel %vm355, %v1289, 0
  %v1316 = vsel %vm355, %v1290, 0
  %1318 = vmatprep.subr.mxu0 0.0
  %1319 = vmatpush1.msra.mxu0 0.0
  %1320 = vmatprep.subr.mxu0 0.0
  %1321 = vmatpush1.msra.mxu0 0.0
  %1322 = vmatprep.subr.mxu0 0.0
  %1323 = vmatpush1.msra.mxu0 0.0
  %1324 = vmatprep.subr.mxu0 0.0
  %1325 = vmatpush1.msra.mxu0 0.0
  %1326 = vmatprep.subr.mxu0 0.0
  %1327 = vmatpush1.msra.mxu0 0.0
  %1328 = vmatprep.subr.mxu0 0.0
  %1329 = vmatpush1.msra.mxu0 0.0
  %1330 = vmatprep.subr.mxu0 0.0
  %1331 = vmatpush1.msra.mxu0 0.0
  %1332 = vmatprep.subr.mxu0 0.0
  %1333 = vmatpush1.msra.mxu0 0.0
  %1334 = vmatprep.subr.mxu0 0.0
  %1335 = vmatpush1.msra.mxu0 0.0
  %1336 = vmatprep.subr.mxu0 0.0
  %1337 = vmatpush1.msra.mxu0 0.0
  %1338 = vmatprep.subr.mxu0 0.0
  %1339 = vmatpush1.msra.mxu0 0.0
  %1340 = vmatprep.subr.mxu0 0.0
  %1341 = vmatpush1.msra.mxu0 0.0
  %1342 = vmatprep.subr.mxu0 0.0
  %1343 = vmatpush1.msra.mxu0 0.0
  %1344 = vmatprep.subr.mxu0 0.0
  %1345 = vmatpush1.msra.mxu0 0.0
  %1346 = vmatprep.subr.mxu0 0.0
  %1347 = vmatpush1.msra.mxu0 0.0
  %1348 = vmatprep.subr.mxu0 %v1287
  %1349 = vmatpush1.msra.mxu0 %v1285
  %1350 = vmatprep.subr.mxu0 0.0
  %1351 = vmatpush2.msra.mxu0 0.0
  %1352 = vmatprep.subr.mxu0 0.0
  %1353 = vmatpush2.msra.mxu0 0.0
  %1354 = vmatprep.subr.mxu0 0.0
  %1355 = vmatpush2.msra.mxu0 0.0
  %1356 = vmatprep.subr.mxu0 0.0
  %1357 = vmatpush2.msra.mxu0 0.0
  %1358 = vmatprep.subr.mxu0 0.0
  %1359 = vmatpush2.msra.mxu0 0.0
  %1360 = vmatprep.subr.mxu0 0.0
  %1361 = vmatpush2.msra.mxu0 0.0
  %1362 = vmatprep.subr.mxu0 0.0
  %1363 = vmatpush2.msra.mxu0 0.0
  %1364 = vmatprep.subr.mxu0 0.0
  %1365 = vmatpush2.msra.mxu0 0.0
  %1366 = vmatprep.subr.mxu0 0.0
  %1367 = vmatpush2.msra.mxu0 0.0
  %1368 = vmatprep.subr.mxu0 0.0
  %1369 = vmatpush2.msra.mxu0 0.0
  %1370 = vmatprep.subr.mxu0 0.0
  %1371 = vmatpush2.msra.mxu0 0.0
  %1372 = vmatprep.subr.mxu0 0.0
  %1373 = vmatpush2.msra.mxu0 0.0
  %1374 = vmatprep.subr.mxu0 0.0
  %1375 = vmatpush2.msra.mxu0 0.0
  %1376 = vmatprep.subr.mxu0 0.0
  %1377 = vmatpush2.msra.mxu0 0.0
  %1378 = vmatprep.subr.mxu0 0.0
  %1379 = vmatpush2.msra.mxu0 0.0
  %1380 = vmatprep.subr.mxu0 0.0
  %1381 = vmatpush2.msra.mxu0 0.0
  %1382 = vmatprep.mubr.f32.mxu0 0.0
  %1383 = vmatmul.mubr.f32.gmra.mxu0 %v1310
  %v1384 = vpop.f32.mrf.mxu0
  %v1385 = vadd.f32 %v1297, %v1384
  %v1386 = vpop.f32.mrf.mxu0
  %v1387 = vadd.f32 %v1297, %v1386
  %1388 = vmatprep.mubr.f32.mxu0 0.0
  %1389 = vmatmul.mubr.f32.gmra.mxu0 %v1313
  %v1390 = vpop.f32.mrf.mxu0
  %v1391 = vadd.f32 %v1302, %v1390
  %v1392 = vpop.f32.mrf.mxu0
  %v1393 = vadd.f32 %v1302, %v1392
  %1394 = vmatprep.mubr.f32.mxu0 0.0
  %1395 = vmatmul.mubr.f32.gmra.mxu0 %v1316
  %v1396 = vpop.f32.mrf.mxu0
  %v1397 = vadd.f32 %v1307, %v1396
  %v1398 = vpop.f32.mrf.mxu0
  %v1399 = vadd.f32 %v1307, %v1398
  %1400 = vdwg.mxu0
  %v1401 = vld [vmem:[%s15] sm:$0xff]
  %v1402 = vld [vmem:[%s15 + $0x8] sm:$0xff]
  %v1403 = vld [vmem:[%s15 + $0x10] sm:$0xff]
  %1405 = vset.pattern.permute.xlu0 0
  %1406 = vperm.xlu0 %1405, %v1401
  %v1407 = vpop.permute.xlu0 %1406
  %v1409 = vadd.f32 %v1385, %v1407
  %v1410 = vadd.f32 %v1387, %v1407
  %v1411 = vxor.u32 %v1409, 2147483648
  %v1412 = vxor.u32 %v1410, 2147483648
  %v1413 = vmul.f32 %v1411, 1.442695
  %v1414 = vpow.pop %v1413
  %v1415 = vmul.f32 %v1412, 1.442695
  %v1416 = vpow.pop %v1415
  %v1417 = vadd.f32 %v1414, 1.0
  %v1418 = vadd.f32 %v1416, 1.0
  %v1419 = vrcp.pop %v1417
  %v1420 = vmul.f32 1.0, %v1419
  %v1421 = vrcp.pop %v1418
  %v1422 = vmul.f32 1.0, %v1421
  %1424 = vset.pattern.permute.xlu0 0
  %1425 = vperm.xlu0 %1424, %v1402
  %v1426 = vpop.permute.xlu0 %1425
  %v1428 = vadd.f32 %v1391, %v1426
  %v1429 = vadd.f32 %v1393, %v1426
  %v1430 = vxor.u32 %v1428, 2147483648
  %v1431 = vxor.u32 %v1429, 2147483648
  %v1432 = vmul.f32 %v1430, 1.442695
  %v1433 = vpow.pop %v1432
  %v1434 = vmul.f32 %v1431, 1.442695
  %v1435 = vpow.pop %v1434
  %v1436 = vadd.f32 %v1433, 1.0
  %v1437 = vadd.f32 %v1435, 1.0
  %v1438 = vrcp.pop %v1436
  %v1439 = vmul.f32 1.0, %v1438
  %v1440 = vrcp.pop %v1437
  %v1441 = vmul.f32 1.0, %v1440
  %1443 = vset.pattern.permute.xlu0 0
  %1444 = vperm.xlu0 %1443, %v1403
  %v1445 = vpop.permute.xlu0 %1444
  %v1447 = vmul.f32 %v1420, %v1445
  %v1448 = vmul.f32 %v1422, %v1445
  %v1449 = vadd.f32 %v1397, %v1447
  %v1450 = vadd.f32 %v1399, %v1448
  %v1451 = vtanh.pop %v1449
  %v1452 = vtanh.pop %v1450
  %v1453 = vsub.f32 1.0, %v1439
  %v1454 = vsub.f32 1.0, %v1441
  %v1455 = vmul.f32 %v1453, %v1451
  %v1456 = vmul.f32 %v1454, %v1452
  %v1457 = vld [vmem:[%s16] sm:$0xff]
  %1459 = vset.pattern.permute.xlu0 0
  %1460 = vperm.xlu0 %1459, %v1457
  %v1461 = vpop.permute.xlu0 %1460
  %v1464 = vlaneseq
  %v1465 = vshrl.u32 %v1464, 7
  %v1466 = vsub.s32 0, %v1465
  %v1467 = vrot.slane %v90, %v1466
  %v1468 = vlaneseq
  %v1469 = vshrl.u32 %v1468, 7
  %v1470 = vsub.s32 1, %v1469
  %v1471 = vrot.slane %v90, %v1470
  %v1474 = vmul.f32 %v1461, %v1467
  %v1475 = vmul.f32 %v1461, %v1471
  %v1476 = vld [vmem:[%s17] sm:$0xff]
  %1478 = vset.pattern.permute.xlu0 0
  %1479 = vperm.xlu0 %1478, %v1476
  %v1480 = vpop.permute.xlu0 %1479
  %v1482 = vadd.f32 %v1474, %v1480
  %v1483 = vadd.f32 %v1475, %v1480
  %v1484 = vand.u32 2147483647, %v1482
  %vm1485 = vcmp.le.f32.partialorder %v1484, 0.7853982
  %vm1486 = vcmp.lt.s32.totalorder %v1482, 0
  %v1487 = vand.u32 %v1482, 2139095040
  %v1488 = vshrl.u32 %v1487, 23
  %v1489 = vsub.s32 %v1488, 127
  %v1490 = vand.u32 2147483647, %v1482
  %v1491 = vand.u32 %v1490, 8388607
  %v1492 = vor.u32 %v1491, 8388608
  %v1493 = vsub.s32 0, %v1492
  %v1494 = vadd.s32 %v1489, 1
  %vm1495 = vcmp.gt.s32.totalorder %v1494, 0
  %v1496 = vsel %vm1495, %v1494, 0
  %v1497 = vshrl.u32 %v1496, 5
  %v1498 = vand.u32 %v1496, 31
  %v1499 = vsub.s32 32, %v1498
  %v1500 = vshrl.u32 683565275, %v1499
  %v1501 = vshll.u32 683565275, %v1498
  %v1502 = vshrl.u32 2475754826, %v1499
  %v1503 = vor.u32 %v1501, %v1502
  %v1504 = vshll.u32 2475754826, %v1498
  %v1505 = vshrl.u32 2131351028, %v1499
  %v1506 = vor.u32 %v1504, %v1505
  %v1507 = vshll.u32 2131351028, %v1498
  %v1508 = vshrl.u32 2102212464, %v1499
  %v1509 = vor.u32 %v1507, %v1508
  %v1510 = vshll.u32 2102212464, %v1498
  %v1511 = vshrl.u32 920167782, %v1499
  %v1512 = vor.u32 %v1510, %v1511
  %v1513 = vshll.u32 920167782, %v1498
  %v1514 = vshrl.u32 1326507024, %v1499
  %v1515 = vor.u32 %v1513, %v1514
  %vm1516 = vcmp.lt.s32.totalorder %v1497, 1
  %vm1517 = vcmp.lt.s32.totalorder %v1497, 2
  %vm1518 = vcmp.lt.s32.totalorder %v1497, 3
  %vm1519 = vcmp.lt.s32.totalorder %v1497, 4
  %v1520 = vsel %vm1516, %v1500, %v1503
  %v1521 = vsel %vm1519, %v1509, 2102212464
  %v1522 = vsel %vm1518, %v1506, %v1521
  %v1523 = vsel %vm1517, %v1520, %v1522
  %v1524 = vsel %vm1516, %v1503, %v1506
  %v1525 = vsel %vm1519, %v1512, 920167782
  %v1526 = vsel %vm1518, %v1509, %v1525
  %v1527 = vsel %vm1517, %v1524, %v1526
  %v1528 = vsel %vm1516, %v1506, %v1509
  %v1529 = vsel %vm1519, %v1515, 1326507024
  %v1530 = vsel %vm1518, %v1512, %v1529
  %v1531 = vsel %vm1517, %v1528, %v1530
  %v1532 = vshll.u32 %v1492, 8
  %v1533 = vmul.u32.u64.compose %v1532, %v1531
  %v1534 = vextract.low.u32 %v1533
  %v1535 = vextract.high.u32 %v1533
  %v1536 = vmul.u32.u64.compose %v1532, %v1527
  %v1537 = vextract.low.u32 %v1536
  %v1538 = vextract.high.u32 %v1536
  %v1539 = vmul.u32 %v1532, %v1523
  %v1540 = vadd.s32 %v1535, %v1537
  %vm1541 = vc.u32 %v1535, %v1537
  %v1542 = vadd.s32 %v1538, 1
  %v1543 = vsel %vm1541, %v1542, %v1538
  %v1544 = vadd.s32 %v1539, %v1543
  %v1545 = vadd.s32 %v1544, 536870912
  %v1546 = vshrl.u32 %v1545, 30
  %v1547 = vshll.u32 %v1546, 30
  %v1548 = vsub.s32 %v1544, %v1547
  %vm1549 = vcmp.lt.s32.totalorder %v1548, 0
  %v1550 = vsub.s32 0, %v1548
  %v1551 = vsel %vm1549, %v1550, %v1548
  %v1552 = vclz %v1551
  %v1553 = vsub.s32 %v1552, 2
  %vm1554 = vcmp.gt.s32.totalorder 0, %v1553
  %v1555 = vsel %vm1554, 0, %v1553
  %v1556 = vsub.s32 32, %v1555
  %v1557 = vshll.u32 %v1548, %v1555
  %v1558 = vshrl.u32 %v1540, %v1556
  %v1559 = vor.u32 %v1557, %v1558
  %v1560 = vsub.s32 4294967266, %v1555
  %v1561 = vadd.s32 %v1560, 127
  %v1562 = vshll.u32 %v1561, 23
  %v1563 = vor.u32 4788187, %v1562
  %v1564 = vand.u32 2147483647, %v1563
  %v1566 = vcvt.s32.f32 %v1559
  %v1567 = vmul.f32 %v1566, %v1564
  %v1568 = vxor.u32 %v1567, 2147483648
  %v1569 = vsel %vm1486, %v1568, %v1567
  %v1570 = vsub.s32 4, %v1546
  %v1571 = vsel %vm1486, %v1570, %v1546
  %v1572 = vsel %vm1485, %v1482, %v1569
  %v1573 = vsel %vm1485, 0, %v1571
  %v1574 = vcosq.f32.pop %v1572
  %v1575 = vsinq.f32.pop %v1572
  %vm1576 = vweird.f32 %v1482
  %v1577 = vand.u32 %v1573, 3
  %vm1578 = vcmp.lt.s32.totalorder %v1577, 2
  %vm1579 = vcmp.eq.s32.totalorder %v1577, 0
  %v1580 = vxor.u32 %v1575, 2147483648
  %v1581 = vsel %vm1579, %v1574, %v1580
  %vm1582 = vcmp.eq.s32.totalorder %v1577, 2
  %v1583 = vxor.u32 %v1574, 2147483648
  %v1584 = vsel %vm1582, %v1583, %v1575
  %v1585 = vsel %vm1578, %v1581, %v1584
  %v1586 = vsel %vm1576, nan, %v1585
  %v1587 = vand.u32 2147483647, %v1483
  %vm1588 = vcmp.le.f32.partialorder %v1587, 0.7853982
  %vm1589 = vcmp.lt.s32.totalorder %v1483, 0
  %v1590 = vand.u32 %v1483, 2139095040
  %v1591 = vshrl.u32 %v1590, 23
  %v1592 = vsub.s32 %v1591, 127
  %v1593 = vand.u32 2147483647, %v1483
  %v1594 = vand.u32 %v1593, 8388607
  %v1595 = vor.u32 %v1594, 8388608
  %v1596 = vsub.s32 0, %v1595
  %v1597 = vadd.s32 %v1592, 1
  %vm1598 = vcmp.gt.s32.totalorder %v1597, 0
  %v1599 = vsel %vm1598, %v1597, 0
  %v1600 = vshrl.u32 %v1599, 5
  %v1601 = vand.u32 %v1599, 31
  %v1602 = vsub.s32 32, %v1601
  %v1603 = vshrl.u32 683565275, %v1602
  %v1604 = vshll.u32 683565275, %v1601
  %v1605 = vshrl.u32 2475754826, %v1602
  %v1606 = vor.u32 %v1604, %v1605
  %v1607 = vshll.u32 2475754826, %v1601
  %v1608 = vshrl.u32 2131351028, %v1602
  %v1609 = vor.u32 %v1607, %v1608
  %v1610 = vshll.u32 2131351028, %v1601
  %v1611 = vshrl.u32 2102212464, %v1602
  %v1612 = vor.u32 %v1610, %v1611
  %v1613 = vshll.u32 2102212464, %v1601
  %v1614 = vshrl.u32 920167782, %v1602
  %v1615 = vor.u32 %v1613, %v1614
  %v1616 = vshll.u32 920167782, %v1601
  %v1617 = vshrl.u32 1326507024, %v1602
  %v1618 = vor.u32 %v1616, %v1617
  %vm1619 = vcmp.lt.s32.totalorder %v1600, 1
  %vm1620 = vcmp.lt.s32.totalorder %v1600, 2
  %vm1621 = vcmp.lt.s32.totalorder %v1600, 3
  %vm1622 = vcmp.lt.s32.totalorder %v1600, 4
  %v1623 = vsel %vm1619, %v1603, %v1606
  %v1624 = vsel %vm1622, %v1612, 2102212464
  %v1625 = vsel %vm1621, %v1609, %v1624
  %v1626 = vsel %vm1620, %v1623, %v1625
  %v1627 = vsel %vm1619, %v1606, %v1609
  %v1628 = vsel %vm1622, %v1615, 920167782
  %v1629 = vsel %vm1621, %v1612, %v1628
  %v1630 = vsel %vm1620, %v1627, %v1629
  %v1631 = vsel %vm1619, %v1609, %v1612
  %v1632 = vsel %vm1622, %v1618, 1326507024
  %v1633 = vsel %vm1621, %v1615, %v1632
  %v1634 = vsel %vm1620, %v1631, %v1633
  %v1635 = vshll.u32 %v1595, 8
  %v1636 = vmul.u32.u64.compose %v1635, %v1634
  %v1637 = vextract.low.u32 %v1636
  %v1638 = vextract.high.u32 %v1636
  %v1639 = vmul.u32.u64.compose %v1635, %v1630
  %v1640 = vextract.low.u32 %v1639
  %v1641 = vextract.high.u32 %v1639
  %v1642 = vmul.u32 %v1635, %v1626
  %v1643 = vadd.s32 %v1638, %v1640
  %vm1644 = vc.u32 %v1638, %v1640
  %v1645 = vadd.s32 %v1641, 1
  %v1646 = vsel %vm1644, %v1645, %v1641
  %v1647 = vadd.s32 %v1642, %v1646
  %v1648 = vadd.s32 %v1647, 536870912
  %v1649 = vshrl.u32 %v1648, 30
  %v1650 = vshll.u32 %v1649, 30
  %v1651 = vsub.s32 %v1647, %v1650
  %vm1652 = vcmp.lt.s32.totalorder %v1651, 0
  %v1653 = vsub.s32 0, %v1651
  %v1654 = vsel %vm1652, %v1653, %v1651
  %v1655 = vclz %v1654
  %v1656 = vsub.s32 %v1655, 2
  %vm1657 = vcmp.gt.s32.totalorder 0, %v1656
  %v1658 = vsel %vm1657, 0, %v1656
  %v1659 = vsub.s32 32, %v1658
  %v1660 = vshll.u32 %v1651, %v1658
  %v1661 = vshrl.u32 %v1643, %v1659
  %v1662 = vor.u32 %v1660, %v1661
  %v1663 = vsub.s32 4294967266, %v1658
  %v1664 = vadd.s32 %v1663, 127
  %v1665 = vshll.u32 %v1664, 23
  %v1666 = vor.u32 4788187, %v1665
  %v1667 = vand.u32 2147483647, %v1666
  %v1669 = vcvt.s32.f32 %v1662
  %v1670 = vmul.f32 %v1669, %v1667
  %v1671 = vxor.u32 %v1670, 2147483648
  %v1672 = vsel %vm1589, %v1671, %v1670
  %v1673 = vsub.s32 4, %v1649
  %v1674 = vsel %vm1589, %v1673, %v1649
  %v1675 = vsel %vm1588, %v1483, %v1672
  %v1676 = vsel %vm1588, 0, %v1674
  %v1677 = vcosq.f32.pop %v1675
  %v1678 = vsinq.f32.pop %v1675
  %vm1679 = vweird.f32 %v1483
  %v1680 = vand.u32 %v1676, 3
  %vm1681 = vcmp.lt.s32.totalorder %v1680, 2
  %vm1682 = vcmp.eq.s32.totalorder %v1680, 0
  %v1683 = vxor.u32 %v1678, 2147483648
  %v1684 = vsel %vm1682, %v1677, %v1683
  %vm1685 = vcmp.eq.s32.totalorder %v1680, 2
  %v1686 = vxor.u32 %v1677, 2147483648
  %v1687 = vsel %vm1685, %v1686, %v1678
  %v1688 = vsel %vm1681, %v1684, %v1687
  %v1689 = vsel %vm1679, nan, %v1688
  %v1690 = vadd.f32 %v1455, %v80
  %v1691 = vadd.f32 %v1456, %v81
  %v1692 = vsub.f32 %v347, 1.0
  %v1693 = vmul.f32 %v1692, 1e+09
  %v1694 = vld [vmem:[%s18] sm:$0xff]
  %v1695 = vld [vmem:[%s18 + $0x8] sm:$0xff]
  %v1696 = vld [vmem:[%s19] sm:$0xff]
  %v1697 = vld [vmem:[%s19 + $0x8] sm:$0xff]
  %1699 = vset.pattern.permute.xlu0 0
  %1700 = vperm.xlu0 %1699, %v1696
  %v1701 = vpop.permute.xlu0 %1700
  %1704 = vset.pattern.permute.xlu0 0
  %1705 = vperm.xlu0 %1704, %v1697
  %v1706 = vpop.permute.xlu0 %1705
  %v1709 = vsel %vm355, %v1694, 0
  %v1712 = vsel %vm355, %v1695, 0
  %1714 = vmatprep.subr.mxu0 0.0
  %1715 = vmatpush1.msra.mxu0 0.0
  %1716 = vmatprep.subr.mxu0 0.0
  %1717 = vmatpush1.msra.mxu0 0.0
  %1718 = vmatprep.subr.mxu0 0.0
  %1719 = vmatpush1.msra.mxu0 0.0
  %1720 = vmatprep.subr.mxu0 0.0
  %1721 = vmatpush1.msra.mxu0 0.0
  %1722 = vmatprep.subr.mxu0 0.0
  %1723 = vmatpush1.msra.mxu0 0.0
  %1724 = vmatprep.subr.mxu0 0.0
  %1725 = vmatpush1.msra.mxu0 0.0
  %1726 = vmatprep.subr.mxu0 0.0
  %1727 = vmatpush1.msra.mxu0 0.0
  %1728 = vmatprep.subr.mxu0 0.0
  %1729 = vmatpush1.msra.mxu0 0.0
  %1730 = vmatprep.subr.mxu0 0.0
  %1731 = vmatpush1.msra.mxu0 0.0
  %1732 = vmatprep.subr.mxu0 0.0
  %1733 = vmatpush1.msra.mxu0 0.0
  %1734 = vmatprep.subr.mxu0 0.0
  %1735 = vmatpush1.msra.mxu0 0.0
  %1736 = vmatprep.subr.mxu0 0.0
  %1737 = vmatpush1.msra.mxu0 0.0
  %1738 = vmatprep.subr.mxu0 0.0
  %1739 = vmatpush1.msra.mxu0 0.0
  %1740 = vmatprep.subr.mxu0 0.0
  %1741 = vmatpush1.msra.mxu0 0.0
  %1742 = vmatprep.subr.mxu0 0.0
  %1743 = vmatpush1.msra.mxu0 0.0
  %1744 = vmatprep.subr.mxu0 %v1691
  %1745 = vmatpush1.msra.mxu0 %v1690
  %1746 = vmatprep.subr.mxu0 0.0
  %1747 = vmatpush2.msra.mxu0 0.0
  %1748 = vmatprep.subr.mxu0 0.0
  %1749 = vmatpush2.msra.mxu0 0.0
  %1750 = vmatprep.subr.mxu0 0.0
  %1751 = vmatpush2.msra.mxu0 0.0
  %1752 = vmatprep.subr.mxu0 0.0
  %1753 = vmatpush2.msra.mxu0 0.0
  %1754 = vmatprep.subr.mxu0 0.0
  %1755 = vmatpush2.msra.mxu0 0.0
  %1756 = vmatprep.subr.mxu0 0.0
  %1757 = vmatpush2.msra.mxu0 0.0
  %1758 = vmatprep.subr.mxu0 0.0
  %1759 = vmatpush2.msra.mxu0 0.0
  %1760 = vmatprep.subr.mxu0 0.0
  %1761 = vmatpush2.msra.mxu0 0.0
  %1762 = vmatprep.subr.mxu0 0.0
  %1763 = vmatpush2.msra.mxu0 0.0
  %1764 = vmatprep.subr.mxu0 0.0
  %1765 = vmatpush2.msra.mxu0 0.0
  %1766 = vmatprep.subr.mxu0 0.0
  %1767 = vmatpush2.msra.mxu0 0.0
  %1768 = vmatprep.subr.mxu0 0.0
  %1769 = vmatpush2.msra.mxu0 0.0
  %1770 = vmatprep.subr.mxu0 0.0
  %1771 = vmatpush2.msra.mxu0 0.0
  %1772 = vmatprep.subr.mxu0 0.0
  %1773 = vmatpush2.msra.mxu0 0.0
  %1774 = vmatprep.subr.mxu0 0.0
  %1775 = vmatpush2.msra.mxu0 0.0
  %1776 = vmatprep.subr.mxu0 0.0
  %1777 = vmatpush2.msra.mxu0 0.0
  %1778 = vmatprep.mubr.f32.mxu0 0.0
  %1779 = vmatmul.mubr.f32.gmra.mxu0 %v1709
  %v1780 = vpop.f32.mrf.mxu0
  %v1781 = vadd.f32 %v1701, %v1780
  %v1782 = vpop.f32.mrf.mxu0
  %v1783 = vadd.f32 %v1701, %v1782
  %1784 = vmatprep.mubr.f32.mxu0 0.0
  %1785 = vmatmul.mubr.f32.gmra.mxu0 %v1712
  %v1786 = vpop.f32.mrf.mxu0
  %v1787 = vadd.f32 %v1706, %v1786
  %v1788 = vpop.f32.mrf.mxu0
  %v1789 = vadd.f32 %v1706, %v1788
  %1790 = vdwg.mxu0
  %1791 = vmatprep.subr.mxu0 %v212
  %1792 = vmatpush1.msra.mxu0 %v211
  %1793 = vmatprep.subr.mxu0 %v204
  %1794 = vmatpush1.msra.mxu0 %v203
  %1795 = vmatprep.subr.mxu0 %v196
  %1796 = vmatpush1.msra.mxu0 %v195
  %1797 = vmatprep.subr.mxu0 %v188
  %1798 = vmatpush1.msra.mxu0 %v187
  %1799 = vmatprep.subr.mxu0 %v180
  %1800 = vmatpush1.msra.mxu0 %v179
  %1801 = vmatprep.subr.mxu0 %v172
  %1802 = vmatpush1.msra.mxu0 %v171
  %1803 = vmatprep.subr.mxu0 %v164
  %1804 = vmatpush1.msra.mxu0 %v163
  %1805 = vmatprep.subr.mxu0 %v156
  %1806 = vmatpush1.msra.mxu0 %v155
  %1807 = vmatprep.subr.mxu0 %v148
  %1808 = vmatpush1.msra.mxu0 %v147
  %1809 = vmatprep.subr.mxu0 %v140
  %1810 = vmatpush1.msra.mxu0 %v139
  %1811 = vmatprep.subr.mxu0 %v132
  %1812 = vmatpush1.msra.mxu0 %v131
  %1813 = vmatprep.subr.mxu0 %v124
  %1814 = vmatpush1.msra.mxu0 %v123
  %1815 = vmatprep.subr.mxu0 %v116
  %1816 = vmatpush1.msra.mxu0 %v115
  %1817 = vmatprep.subr.mxu0 %v108
  %1818 = vmatpush1.msra.mxu0 %v107
  %1819 = vmatprep.subr.mxu0 %v100
  %1820 = vmatpush1.msra.mxu0 %v99
  %1821 = vmatprep.subr.mxu0 %v92
  %1822 = vmatpush1.msra.mxu0 %v91
  %1823 = vmatprep.subr.mxu0 %v340
  %1824 = vmatpush2.msra.mxu0 %v339
  %1825 = vmatprep.subr.mxu0 %v332
  %1826 = vmatpush2.msra.mxu0 %v331
  %1827 = vmatprep.subr.mxu0 %v324
  %1828 = vmatpush2.msra.mxu0 %v323
  %1829 = vmatprep.subr.mxu0 %v316
  %1830 = vmatpush2.msra.mxu0 %v315
  %1831 = vmatprep.subr.mxu0 %v308
  %1832 = vmatpush2.msra.mxu0 %v307
  %1833 = vmatprep.subr.mxu0 %v300
  %1834 = vmatpush2.msra.mxu0 %v299
  %1835 = vmatprep.subr.mxu0 %v292
  %1836 = vmatpush2.msra.mxu0 %v291
  %1837 = vmatprep.subr.mxu0 %v284
  %1838 = vmatpush2.msra.mxu0 %v283
  %1839 = vmatprep.subr.mxu0 %v276
  %1840 = vmatpush2.msra.mxu0 %v275
  %1841 = vmatprep.subr.mxu0 %v268
  %1842 = vmatpush2.msra.mxu0 %v267
  %1843 = vmatprep.subr.mxu0 %v260
  %1844 = vmatpush2.msra.mxu0 %v259
  %1845 = vmatprep.subr.mxu0 %v252
  %1846 = vmatpush2.msra.mxu0 %v251
  %1847 = vmatprep.subr.mxu0 %v244
  %1848 = vmatpush2.msra.mxu0 %v243
  %1849 = vmatprep.subr.mxu0 %v236
  %1850 = vmatpush2.msra.mxu0 %v235
  %1851 = vmatprep.subr.mxu0 %v228
  %1852 = vmatpush2.msra.mxu0 %v227
  %1853 = vmatprep.subr.mxu0 %v220
  %1854 = vmatpush2.msra.mxu0 %v219
  %1855 = vmatprep.mubr.f32.mxu0 %v1691
  %1856 = vmatmul.mubr.f32.gmra.mxu0 %v1690
  %v1857 = vpop.f32.mrf.mxu0
  %v1858 = vadd.f32 0.0, %v1857
  %v1859 = vpop.f32.mrf.mxu0
  %v1860 = vadd.f32 0.0, %v1859
  %1861 = vdwg.mxu0
  %1862 = vmatprep.subr.mxu0 %v214
  %1863 = vmatpush1.msra.mxu0 %v213
  %1864 = vmatprep.subr.mxu0 %v206
  %1865 = vmatpush1.msra.mxu0 %v205
  %1866 = vmatprep.subr.mxu0 %v198
  %1867 = vmatpush1.msra.mxu0 %v197
  %1868 = vmatprep.subr.mxu0 %v190
  %1869 = vmatpush1.msra.mxu0 %v189
  %1870 = vmatprep.subr.mxu0 %v182
  %1871 = vmatpush1.msra.mxu0 %v181
  %1872 = vmatprep.subr.mxu0 %v174
  %1873 = vmatpush1.msra.mxu0 %v173
  %1874 = vmatprep.subr.mxu0 %v166
  %1875 = vmatpush1.msra.mxu0 %v165
  %1876 = vmatprep.subr.mxu0 %v158
  %1877 = vmatpush1.msra.mxu0 %v157
  %1878 = vmatprep.subr.mxu0 %v150
  %1879 = vmatpush1.msra.mxu0 %v149
  %1880 = vmatprep.subr.mxu0 %v142
  %1881 = vmatpush1.msra.mxu0 %v141
  %1882 = vmatprep.subr.mxu0 %v134
  %1883 = vmatpush1.msra.mxu0 %v133
  %1884 = vmatprep.subr.mxu0 %v126
  %1885 = vmatpush1.msra.mxu0 %v125
  %1886 = vmatprep.subr.mxu0 %v118
  %1887 = vmatpush1.msra.mxu0 %v117
  %1888 = vmatprep.subr.mxu0 %v110
  %1889 = vmatpush1.msra.mxu0 %v109
  %1890 = vmatprep.subr.mxu0 %v102
  %1891 = vmatpush1.msra.mxu0 %v101
  %1892 = vmatprep.subr.mxu0 %v94
  %1893 = vmatpush1.msra.mxu0 %v93
  %1894 = vmatprep.subr.mxu0 %v342
  %1895 = vmatpush2.msra.mxu0 %v341
  %1896 = vmatprep.subr.mxu0 %v334
  %1897 = vmatpush2.msra.mxu0 %v333
  %1898 = vmatprep.subr.mxu0 %v326
  %1899 = vmatpush2.msra.mxu0 %v325
  %1900 = vmatprep.subr.mxu0 %v318
  %1901 = vmatpush2.msra.mxu0 %v317
  %1902 = vmatprep.subr.mxu0 %v310
  %1903 = vmatpush2.msra.mxu0 %v309
  %1904 = vmatprep.subr.mxu0 %v302
  %1905 = vmatpush2.msra.mxu0 %v301
  %1906 = vmatprep.subr.mxu0 %v294
  %1907 = vmatpush2.msra.mxu0 %v293
  %1908 = vmatprep.subr.mxu0 %v286
  %1909 = vmatpush2.msra.mxu0 %v285
  %1910 = vmatprep.subr.mxu0 %v278
  %1911 = vmatpush2.msra.mxu0 %v277
  %1912 = vmatprep.subr.mxu0 %v270
  %1913 = vmatpush2.msra.mxu0 %v269
  %1914 = vmatprep.subr.mxu0 %v262
  %1915 = vmatpush2.msra.mxu0 %v261
  %1916 = vmatprep.subr.mxu0 %v254
  %1917 = vmatpush2.msra.mxu0 %v253
  %1918 = vmatprep.subr.mxu0 %v246
  %1919 = vmatpush2.msra.mxu0 %v245
  %1920 = vmatprep.subr.mxu0 %v238
  %1921 = vmatpush2.msra.mxu0 %v237
  %1922 = vmatprep.subr.mxu0 %v230
  %1923 = vmatpush2.msra.mxu0 %v229
  %1924 = vmatprep.subr.mxu0 %v222
  %1925 = vmatpush2.msra.mxu0 %v221
  %1926 = vmatprep.mubr.f32.mxu0 %v1691
  %1927 = vmatmul.mubr.f32.gmra.mxu0 %v1690
  %v1928 = vpop.f32.mrf.mxu0
  %v1929 = vadd.f32 0.0, %v1928
  %v1930 = vpop.f32.mrf.mxu0
  %v1931 = vadd.f32 0.0, %v1930
  %1932 = vdwg.mxu0
  %1933 = vmatprep.subr.mxu0 %v216
  %1934 = vmatpush1.msra.mxu0 %v215
  %1935 = vmatprep.subr.mxu0 %v208
  %1936 = vmatpush1.msra.mxu0 %v207
  %1937 = vmatprep.subr.mxu0 %v200
  %1938 = vmatpush1.msra.mxu0 %v199
  %1939 = vmatprep.subr.mxu0 %v192
  %1940 = vmatpush1.msra.mxu0 %v191
  %1941 = vmatprep.subr.mxu0 %v184
  %1942 = vmatpush1.msra.mxu0 %v183
  %1943 = vmatprep.subr.mxu0 %v176
  %1944 = vmatpush1.msra.mxu0 %v175
  %1945 = vmatprep.subr.mxu0 %v168
  %1946 = vmatpush1.msra.mxu0 %v167
  %1947 = vmatprep.subr.mxu0 %v160
  %1948 = vmatpush1.msra.mxu0 %v159
  %1949 = vmatprep.subr.mxu0 %v152
  %1950 = vmatpush1.msra.mxu0 %v151
  %1951 = vmatprep.subr.mxu0 %v144
  %1952 = vmatpush1.msra.mxu0 %v143
  %1953 = vmatprep.subr.mxu0 %v136
  %1954 = vmatpush1.msra.mxu0 %v135
  %1955 = vmatprep.subr.mxu0 %v128
  %1956 = vmatpush1.msra.mxu0 %v127
  %1957 = vmatprep.subr.mxu0 %v120
  %1958 = vmatpush1.msra.mxu0 %v119
  %1959 = vmatprep.subr.mxu0 %v112
  %1960 = vmatpush1.msra.mxu0 %v111
  %1961 = vmatprep.subr.mxu0 %v104
  %1962 = vmatpush1.msra.mxu0 %v103
  %1963 = vmatprep.subr.mxu0 %v96
  %1964 = vmatpush1.msra.mxu0 %v95
  %1965 = vmatprep.subr.mxu0 %v344
  %1966 = vmatpush2.msra.mxu0 %v343
  %1967 = vmatprep.subr.mxu0 %v336
  %1968 = vmatpush2.msra.mxu0 %v335
  %1969 = vmatprep.subr.mxu0 %v328
  %1970 = vmatpush2.msra.mxu0 %v327
  %1971 = vmatprep.subr.mxu0 %v320
  %1972 = vmatpush2.msra.mxu0 %v319
  %1973 = vmatprep.subr.mxu0 %v312
  %1974 = vmatpush2.msra.mxu0 %v311
  %1975 = vmatprep.subr.mxu0 %v304
  %1976 = vmatpush2.msra.mxu0 %v303
  %1977 = vmatprep.subr.mxu0 %v296
  %1978 = vmatpush2.msra.mxu0 %v295
  %1979 = vmatprep.subr.mxu0 %v288
  %1980 = vmatpush2.msra.mxu0 %v287
  %1981 = vmatprep.subr.mxu0 %v280
  %1982 = vmatpush2.msra.mxu0 %v279
  %1983 = vmatprep.subr.mxu0 %v272
  %1984 = vmatpush2.msra.mxu0 %v271
  %1985 = vmatprep.subr.mxu0 %v264
  %1986 = vmatpush2.msra.mxu0 %v263
  %1987 = vmatprep.subr.mxu0 %v256
  %1988 = vmatpush2.msra.mxu0 %v255
  %1989 = vmatprep.subr.mxu0 %v248
  %1990 = vmatpush2.msra.mxu0 %v247
  %1991 = vmatprep.subr.mxu0 %v240
  %1992 = vmatpush2.msra.mxu0 %v239
  %1993 = vmatprep.subr.mxu0 %v232
  %1994 = vmatpush2.msra.mxu0 %v231
  %1995 = vmatprep.subr.mxu0 %v224
  %1996 = vmatpush2.msra.mxu0 %v223
  %1997 = vmatprep.mubr.f32.mxu0 %v1691
  %1998 = vmatmul.mubr.f32.gmra.mxu0 %v1690
  %v1999 = vpop.f32.mrf.mxu0
  %v2000 = vadd.f32 0.0, %v1999
  %v2001 = vpop.f32.mrf.mxu0
  %v2002 = vadd.f32 0.0, %v2001
  %2003 = vdwg.mxu0
  %2004 = vmatprep.subr.mxu0 %v218
  %2005 = vmatpush1.msra.mxu0 %v217
  %2006 = vmatprep.subr.mxu0 %v210
  %2007 = vmatpush1.msra.mxu0 %v209
  %2008 = vmatprep.subr.mxu0 %v202
  %2009 = vmatpush1.msra.mxu0 %v201
  %2010 = vmatprep.subr.mxu0 %v194
  %2011 = vmatpush1.msra.mxu0 %v193
  %2012 = vmatprep.subr.mxu0 %v186
  %2013 = vmatpush1.msra.mxu0 %v185
  %2014 = vmatprep.subr.mxu0 %v178
  %2015 = vmatpush1.msra.mxu0 %v177
  %2016 = vmatprep.subr.mxu0 %v170
  %2017 = vmatpush1.msra.mxu0 %v169
  %2018 = vmatprep.subr.mxu0 %v162
  %2019 = vmatpush1.msra.mxu0 %v161
  %2020 = vmatprep.subr.mxu0 %v154
  %2021 = vmatpush1.msra.mxu0 %v153
  %2022 = vmatprep.subr.mxu0 %v146
  %2023 = vmatpush1.msra.mxu0 %v145
  %2024 = vmatprep.subr.mxu0 %v138
  %2025 = vmatpush1.msra.mxu0 %v137
  %2026 = vmatprep.subr.mxu0 %v130
  %2027 = vmatpush1.msra.mxu0 %v129
  %2028 = vmatprep.subr.mxu0 %v122
  %2029 = vmatpush1.msra.mxu0 %v121
  %2030 = vmatprep.subr.mxu0 %v114
  %2031 = vmatpush1.msra.mxu0 %v113
  %2032 = vmatprep.subr.mxu0 %v106
  %2033 = vmatpush1.msra.mxu0 %v105
  %2034 = vmatprep.subr.mxu0 %v98
  %2035 = vmatpush1.msra.mxu0 %v97
  %2036 = vmatprep.subr.mxu0 %v346
  %2037 = vmatpush2.msra.mxu0 %v345
  %2038 = vmatprep.subr.mxu0 %v338
  %2039 = vmatpush2.msra.mxu0 %v337
  %2040 = vmatprep.subr.mxu0 %v330
  %2041 = vmatpush2.msra.mxu0 %v329
  %2042 = vmatprep.subr.mxu0 %v322
  %2043 = vmatpush2.msra.mxu0 %v321
  %2044 = vmatprep.subr.mxu0 %v314
  %2045 = vmatpush2.msra.mxu0 %v313
  %2046 = vmatprep.subr.mxu0 %v306
  %2047 = vmatpush2.msra.mxu0 %v305
  %2048 = vmatprep.subr.mxu0 %v298
  %2049 = vmatpush2.msra.mxu0 %v297
  %2050 = vmatprep.subr.mxu0 %v290
  %2051 = vmatpush2.msra.mxu0 %v289
  %2052 = vmatprep.subr.mxu0 %v282
  %2053 = vmatpush2.msra.mxu0 %v281
  %2054 = vmatprep.subr.mxu0 %v274
  %2055 = vmatpush2.msra.mxu0 %v273
  %2056 = vmatprep.subr.mxu0 %v266
  %2057 = vmatpush2.msra.mxu0 %v265
  %2058 = vmatprep.subr.mxu0 %v258
  %2059 = vmatpush2.msra.mxu0 %v257
  %2060 = vmatprep.subr.mxu0 %v250
  %2061 = vmatpush2.msra.mxu0 %v249
  %2062 = vmatprep.subr.mxu0 %v242
  %2063 = vmatpush2.msra.mxu0 %v241
  %2064 = vmatprep.subr.mxu0 %v234
  %2065 = vmatpush2.msra.mxu0 %v233
  %2066 = vmatprep.subr.mxu0 %v226
  %2067 = vmatpush2.msra.mxu0 %v225
  %2068 = vmatprep.mubr.f32.mxu0 %v1691
  %2069 = vmatmul.mubr.f32.gmra.mxu0 %v1690
  %v2070 = vpop.f32.mrf.mxu0
  %v2071 = vadd.f32 0.0, %v2070
  %v2072 = vpop.f32.mrf.mxu0
  %v2073 = vadd.f32 0.0, %v2072
  %2074 = vdwg.mxu0
  %v2075 = vld [vmem:[%s20] sm:$0xff]
  %v2076 = vld [vmem:[%s20 + $0x8] sm:$0xff]
  %v2077 = vld [vmem:[%s20 + $0x10] sm:$0xff]
  %v2078 = vld [vmem:[%s20 + $0x18] sm:$0xff]
  %vm2079 = vcmask 130048
  %v2081 = vsel %vm2079, %v2075, 0
  %v2084 = vsel %vm2079, %v2076, 0
  %v2087 = vsel %vm2079, %v2077, 0
  %v2090 = vsel %vm2079, %v2078, 0
  %2092 = vmatprep.subr.mxu0 0.0
  %2093 = vmatpush1.msra.mxu0 0.0
  %2094 = vmatprep.subr.mxu0 0.0
  %2095 = vmatpush1.msra.mxu0 0.0
  %2096 = vmatprep.subr.mxu0 0.0
  %2097 = vmatpush1.msra.mxu0 0.0
  %2098 = vmatprep.subr.mxu0 0.0
  %2099 = vmatpush1.msra.mxu0 0.0
  %2100 = vmatprep.subr.mxu0 0.0
  %2101 = vmatpush1.msra.mxu0 0.0
  %2102 = vmatprep.subr.mxu0 0.0
  %2103 = vmatpush1.msra.mxu0 0.0
  %2104 = vmatprep.subr.mxu0 0.0
  %2105 = vmatpush1.msra.mxu0 0.0
  %2106 = vmatprep.subr.mxu0 0.0
  %2107 = vmatpush1.msra.mxu0 0.0
  %2108 = vmatprep.subr.mxu0 0.0
  %2109 = vmatpush1.msra.mxu0 0.0
  %2110 = vmatprep.subr.mxu0 0.0
  %2111 = vmatpush1.msra.mxu0 0.0
  %2112 = vmatprep.subr.mxu0 0.0
  %2113 = vmatpush1.msra.mxu0 0.0
  %2114 = vmatprep.subr.mxu0 0.0
  %2115 = vmatpush1.msra.mxu0 0.0
  %2116 = vmatprep.subr.mxu0 0.0
  %2117 = vmatpush1.msra.mxu0 0.0
  %2118 = vmatprep.subr.mxu0 0.0
  %2119 = vmatpush1.msra.mxu0 0.0
  %2120 = vmatprep.subr.mxu0 %v83
  %2121 = vmatpush1.msra.mxu0 %v82
  %2122 = vmatprep.subr.mxu0 %v1860
  %2123 = vmatpush1.msra.mxu0 %v1858
  %2124 = vmatprep.subr.mxu0 0.0
  %2125 = vmatpush2.msra.mxu0 0.0
  %2126 = vmatprep.subr.mxu0 0.0
  %2127 = vmatpush2.msra.mxu0 0.0
  %2128 = vmatprep.subr.mxu0 0.0
  %2129 = vmatpush2.msra.mxu0 0.0
  %2130 = vmatprep.subr.mxu0 0.0
  %2131 = vmatpush2.msra.mxu0 0.0
  %2132 = vmatprep.subr.mxu0 0.0
  %2133 = vmatpush2.msra.mxu0 0.0
  %2134 = vmatprep.subr.mxu0 0.0
  %2135 = vmatpush2.msra.mxu0 0.0
  %2136 = vmatprep.subr.mxu0 0.0
  %2137 = vmatpush2.msra.mxu0 0.0
  %2138 = vmatprep.subr.mxu0 0.0
  %2139 = vmatpush2.msra.mxu0 0.0
  %2140 = vmatprep.subr.mxu0 0.0
  %2141 = vmatpush2.msra.mxu0 0.0
  %2142 = vmatprep.subr.mxu0 0.0
  %2143 = vmatpush2.msra.mxu0 0.0
  %2144 = vmatprep.subr.mxu0 0.0
  %2145 = vmatpush2.msra.mxu0 0.0
  %2146 = vmatprep.subr.mxu0 0.0
  %2147 = vmatpush2.msra.mxu0 0.0
  %2148 = vmatprep.subr.mxu0 0.0
  %2149 = vmatpush2.msra.mxu0 0.0
  %2150 = vmatprep.subr.mxu0 0.0
  %2151 = vmatpush2.msra.mxu0 0.0
  %2152 = vmatprep.subr.mxu0 0.0
  %2153 = vmatpush2.msra.mxu0 0.0
  %2154 = vmatprep.subr.mxu0 0.0
  %2155 = vmatpush2.msra.mxu0 0.0
  %2156 = vmatprep.mubr.f32.mxu0 0.0
  %2157 = vmatmul.mubr.f32.gmra.mxu0 %v2081
  %v2158 = vpop.f32.mrf.mxu0
  %v2159 = vadd.f32 0.0, %v2158
  %v2160 = vpop.f32.mrf.mxu0
  %v2161 = vadd.f32 0.0, %v2160
  %2162 = vmatprep.mubr.f32.mxu0 0.0
  %2163 = vmatmul.mubr.f32.gmra.mxu0 %v2084
  %v2164 = vpop.f32.mrf.mxu0
  %v2165 = vadd.f32 0.0, %v2164
  %v2166 = vpop.f32.mrf.mxu0
  %v2167 = vadd.f32 0.0, %v2166
  %2168 = vmatprep.mubr.f32.mxu0 0.0
  %2169 = vmatmul.mubr.f32.gmra.mxu0 %v2087
  %v2170 = vpop.f32.mrf.mxu0
  %v2171 = vadd.f32 0.0, %v2170
  %v2172 = vpop.f32.mrf.mxu0
  %v2173 = vadd.f32 0.0, %v2172
  %2174 = vmatprep.mubr.f32.mxu0 0.0
  %2175 = vmatmul.mubr.f32.gmra.mxu0 %v2090
  %v2176 = vpop.f32.mrf.mxu0
  %v2177 = vadd.f32 0.0, %v2176
  %v2178 = vpop.f32.mrf.mxu0
  %v2179 = vadd.f32 0.0, %v2178
  %2180 = vdwg.mxu0
  %2181 = vmatprep.subr.mxu0 0.0
  %2182 = vmatpush1.msra.mxu0 0.0
  %2183 = vmatprep.subr.mxu0 0.0
  %2184 = vmatpush1.msra.mxu0 0.0
  %2185 = vmatprep.subr.mxu0 0.0
  %2186 = vmatpush1.msra.mxu0 0.0
  %2187 = vmatprep.subr.mxu0 0.0
  %2188 = vmatpush1.msra.mxu0 0.0
  %2189 = vmatprep.subr.mxu0 0.0
  %2190 = vmatpush1.msra.mxu0 0.0
  %2191 = vmatprep.subr.mxu0 0.0
  %2192 = vmatpush1.msra.mxu0 0.0
  %2193 = vmatprep.subr.mxu0 0.0
  %2194 = vmatpush1.msra.mxu0 0.0
  %2195 = vmatprep.subr.mxu0 0.0
  %2196 = vmatpush1.msra.mxu0 0.0
  %2197 = vmatprep.subr.mxu0 0.0
  %2198 = vmatpush1.msra.mxu0 0.0
  %2199 = vmatprep.subr.mxu0 0.0
  %2200 = vmatpush1.msra.mxu0 0.0
  %2201 = vmatprep.subr.mxu0 0.0
  %2202 = vmatpush1.msra.mxu0 0.0
  %2203 = vmatprep.subr.mxu0 0.0
  %2204 = vmatpush1.msra.mxu0 0.0
  %2205 = vmatprep.subr.mxu0 0.0
  %2206 = vmatpush1.msra.mxu0 0.0
  %2207 = vmatprep.subr.mxu0 0.0
  %2208 = vmatpush1.msra.mxu0 0.0
  %2209 = vmatprep.subr.mxu0 %v85
  %2210 = vmatpush1.msra.mxu0 %v84
  %2211 = vmatprep.subr.mxu0 %v1931
  %2212 = vmatpush1.msra.mxu0 %v1929
  %2213 = vmatprep.subr.mxu0 0.0
  %2214 = vmatpush2.msra.mxu0 0.0
  %2215 = vmatprep.subr.mxu0 0.0
  %2216 = vmatpush2.msra.mxu0 0.0
  %2217 = vmatprep.subr.mxu0 0.0
  %2218 = vmatpush2.msra.mxu0 0.0
  %2219 = vmatprep.subr.mxu0 0.0
  %2220 = vmatpush2.msra.mxu0 0.0
  %2221 = vmatprep.subr.mxu0 0.0
  %2222 = vmatpush2.msra.mxu0 0.0
  %2223 = vmatprep.subr.mxu0 0.0
  %2224 = vmatpush2.msra.mxu0 0.0
  %2225 = vmatprep.subr.mxu0 0.0
  %2226 = vmatpush2.msra.mxu0 0.0
  %2227 = vmatprep.subr.mxu0 0.0
  %2228 = vmatpush2.msra.mxu0 0.0
  %2229 = vmatprep.subr.mxu0 0.0
  %2230 = vmatpush2.msra.mxu0 0.0
  %2231 = vmatprep.subr.mxu0 0.0
  %2232 = vmatpush2.msra.mxu0 0.0
  %2233 = vmatprep.subr.mxu0 0.0
  %2234 = vmatpush2.msra.mxu0 0.0
  %2235 = vmatprep.subr.mxu0 0.0
  %2236 = vmatpush2.msra.mxu0 0.0
  %2237 = vmatprep.subr.mxu0 0.0
  %2238 = vmatpush2.msra.mxu0 0.0
  %2239 = vmatprep.subr.mxu0 0.0
  %2240 = vmatpush2.msra.mxu0 0.0
  %2241 = vmatprep.subr.mxu0 0.0
  %2242 = vmatpush2.msra.mxu0 0.0
  %2243 = vmatprep.subr.mxu0 0.0
  %2244 = vmatpush2.msra.mxu0 0.0
  %2245 = vmatprep.mubr.f32.mxu0 0.0
  %2246 = vmatmul.mubr.f32.gmra.mxu0 %v2081
  %v2247 = vpop.f32.mrf.mxu0
  %v2248 = vadd.f32 0.0, %v2247
  %v2249 = vpop.f32.mrf.mxu0
  %v2250 = vadd.f32 0.0, %v2249
  %2251 = vmatprep.mubr.f32.mxu0 0.0
  %2252 = vmatmul.mubr.f32.gmra.mxu0 %v2084
  %v2253 = vpop.f32.mrf.mxu0
  %v2254 = vadd.f32 0.0, %v2253
  %v2255 = vpop.f32.mrf.mxu0
  %v2256 = vadd.f32 0.0, %v2255
  %2257 = vmatprep.mubr.f32.mxu0 0.0
  %2258 = vmatmul.mubr.f32.gmra.mxu0 %v2087
  %v2259 = vpop.f32.mrf.mxu0
  %v2260 = vadd.f32 0.0, %v2259
  %v2261 = vpop.f32.mrf.mxu0
  %v2262 = vadd.f32 0.0, %v2261
  %2263 = vmatprep.mubr.f32.mxu0 0.0
  %2264 = vmatmul.mubr.f32.gmra.mxu0 %v2090
  %v2265 = vpop.f32.mrf.mxu0
  %v2266 = vadd.f32 0.0, %v2265
  %v2267 = vpop.f32.mrf.mxu0
  %v2268 = vadd.f32 0.0, %v2267
  %2269 = vdwg.mxu0
  %2270 = vmatprep.subr.mxu0 0.0
  %2271 = vmatpush1.msra.mxu0 0.0
  %2272 = vmatprep.subr.mxu0 0.0
  %2273 = vmatpush1.msra.mxu0 0.0
  %2274 = vmatprep.subr.mxu0 0.0
  %2275 = vmatpush1.msra.mxu0 0.0
  %2276 = vmatprep.subr.mxu0 0.0
  %2277 = vmatpush1.msra.mxu0 0.0
  %2278 = vmatprep.subr.mxu0 0.0
  %2279 = vmatpush1.msra.mxu0 0.0
  %2280 = vmatprep.subr.mxu0 0.0
  %2281 = vmatpush1.msra.mxu0 0.0
  %2282 = vmatprep.subr.mxu0 0.0
  %2283 = vmatpush1.msra.mxu0 0.0
  %2284 = vmatprep.subr.mxu0 0.0
  %2285 = vmatpush1.msra.mxu0 0.0
  %2286 = vmatprep.subr.mxu0 0.0
  %2287 = vmatpush1.msra.mxu0 0.0
  %2288 = vmatprep.subr.mxu0 0.0
  %2289 = vmatpush1.msra.mxu0 0.0
  %2290 = vmatprep.subr.mxu0 0.0
  %2291 = vmatpush1.msra.mxu0 0.0
  %2292 = vmatprep.subr.mxu0 0.0
  %2293 = vmatpush1.msra.mxu0 0.0
  %2294 = vmatprep.subr.mxu0 0.0
  %2295 = vmatpush1.msra.mxu0 0.0
  %2296 = vmatprep.subr.mxu0 0.0
  %2297 = vmatpush1.msra.mxu0 0.0
  %2298 = vmatprep.subr.mxu0 %v87
  %2299 = vmatpush1.msra.mxu0 %v86
  %2300 = vmatprep.subr.mxu0 %v2002
  %2301 = vmatpush1.msra.mxu0 %v2000
  %2302 = vmatprep.subr.mxu0 0.0
  %2303 = vmatpush2.msra.mxu0 0.0
  %2304 = vmatprep.subr.mxu0 0.0
  %2305 = vmatpush2.msra.mxu0 0.0
  %2306 = vmatprep.subr.mxu0 0.0
  %2307 = vmatpush2.msra.mxu0 0.0
  %2308 = vmatprep.subr.mxu0 0.0
  %2309 = vmatpush2.msra.mxu0 0.0
  %2310 = vmatprep.subr.mxu0 0.0
  %2311 = vmatpush2.msra.mxu0 0.0
  %2312 = vmatprep.subr.mxu0 0.0
  %2313 = vmatpush2.msra.mxu0 0.0
  %2314 = vmatprep.subr.mxu0 0.0
  %2315 = vmatpush2.msra.mxu0 0.0
  %2316 = vmatprep.subr.mxu0 0.0
  %2317 = vmatpush2.msra.mxu0 0.0
  %2318 = vmatprep.subr.mxu0 0.0
  %2319 = vmatpush2.msra.mxu0 0.0
  %2320 = vmatprep.subr.mxu0 0.0
  %2321 = vmatpush2.msra.mxu0 0.0
  %2322 = vmatprep.subr.mxu0 0.0
  %2323 = vmatpush2.msra.mxu0 0.0
  %2324 = vmatprep.subr.mxu0 0.0
  %2325 = vmatpush2.msra.mxu0 0.0
  %2326 = vmatprep.subr.mxu0 0.0
  %2327 = vmatpush2.msra.mxu0 0.0
  %2328 = vmatprep.subr.mxu0 0.0
  %2329 = vmatpush2.msra.mxu0 0.0
  %2330 = vmatprep.subr.mxu0 0.0
  %2331 = vmatpush2.msra.mxu0 0.0
  %2332 = vmatprep.subr.mxu0 0.0
  %2333 = vmatpush2.msra.mxu0 0.0
  %2334 = vmatprep.mubr.f32.mxu0 0.0
  %2335 = vmatmul.mubr.f32.gmra.mxu0 %v2081
  %v2336 = vpop.f32.mrf.mxu0
  %v2337 = vadd.f32 0.0, %v2336
  %v2338 = vpop.f32.mrf.mxu0
  %v2339 = vadd.f32 0.0, %v2338
  %2340 = vmatprep.mubr.f32.mxu0 0.0
  %2341 = vmatmul.mubr.f32.gmra.mxu0 %v2084
  %v2342 = vpop.f32.mrf.mxu0
  %v2343 = vadd.f32 0.0, %v2342
  %v2344 = vpop.f32.mrf.mxu0
  %v2345 = vadd.f32 0.0, %v2344
  %2346 = vmatprep.mubr.f32.mxu0 0.0
  %2347 = vmatmul.mubr.f32.gmra.mxu0 %v2087
  %v2348 = vpop.f32.mrf.mxu0
  %v2349 = vadd.f32 0.0, %v2348
  %v2350 = vpop.f32.mrf.mxu0
  %v2351 = vadd.f32 0.0, %v2350
  %2352 = vmatprep.mubr.f32.mxu0 0.0
  %2353 = vmatmul.mubr.f32.gmra.mxu0 %v2090
  %v2354 = vpop.f32.mrf.mxu0
  %v2355 = vadd.f32 0.0, %v2354
  %v2356 = vpop.f32.mrf.mxu0
  %v2357 = vadd.f32 0.0, %v2356
  %2358 = vdwg.mxu0
  %2359 = vmatprep.subr.mxu0 0.0
  %2360 = vmatpush1.msra.mxu0 0.0
  %2361 = vmatprep.subr.mxu0 0.0
  %2362 = vmatpush1.msra.mxu0 0.0
  %2363 = vmatprep.subr.mxu0 0.0
  %2364 = vmatpush1.msra.mxu0 0.0
  %2365 = vmatprep.subr.mxu0 0.0
  %2366 = vmatpush1.msra.mxu0 0.0
  %2367 = vmatprep.subr.mxu0 0.0
  %2368 = vmatpush1.msra.mxu0 0.0
  %2369 = vmatprep.subr.mxu0 0.0
  %2370 = vmatpush1.msra.mxu0 0.0
  %2371 = vmatprep.subr.mxu0 0.0
  %2372 = vmatpush1.msra.mxu0 0.0
  %2373 = vmatprep.subr.mxu0 0.0
  %2374 = vmatpush1.msra.mxu0 0.0
  %2375 = vmatprep.subr.mxu0 0.0
  %2376 = vmatpush1.msra.mxu0 0.0
  %2377 = vmatprep.subr.mxu0 0.0
  %2378 = vmatpush1.msra.mxu0 0.0
  %2379 = vmatprep.subr.mxu0 0.0
  %2380 = vmatpush1.msra.mxu0 0.0
  %2381 = vmatprep.subr.mxu0 0.0
  %2382 = vmatpush1.msra.mxu0 0.0
  %2383 = vmatprep.subr.mxu0 0.0
  %2384 = vmatpush1.msra.mxu0 0.0
  %2385 = vmatprep.subr.mxu0 0.0
  %2386 = vmatpush1.msra.mxu0 0.0
  %2387 = vmatprep.subr.mxu0 %v89
  %2388 = vmatpush1.msra.mxu0 %v88
  %2389 = vmatprep.subr.mxu0 %v2073
  %2390 = vmatpush1.msra.mxu0 %v2071
  %2391 = vmatprep.subr.mxu0 0.0
  %2392 = vmatpush2.msra.mxu0 0.0
  %2393 = vmatprep.subr.mxu0 0.0
  %2394 = vmatpush2.msra.mxu0 0.0
  %2395 = vmatprep.subr.mxu0 0.0
  %2396 = vmatpush2.msra.mxu0 0.0
  %2397 = vmatprep.subr.mxu0 0.0
  %2398 = vmatpush2.msra.mxu0 0.0
  %2399 = vmatprep.subr.mxu0 0.0
  %2400 = vmatpush2.msra.mxu0 0.0
  %2401 = vmatprep.subr.mxu0 0.0
  %2402 = vmatpush2.msra.mxu0 0.0
  %2403 = vmatprep.subr.mxu0 0.0
  %2404 = vmatpush2.msra.mxu0 0.0
  %2405 = vmatprep.subr.mxu0 0.0
  %2406 = vmatpush2.msra.mxu0 0.0
  %2407 = vmatprep.subr.mxu0 0.0
  %2408 = vmatpush2.msra.mxu0 0.0
  %2409 = vmatprep.subr.mxu0 0.0
  %2410 = vmatpush2.msra.mxu0 0.0
  %2411 = vmatprep.subr.mxu0 0.0
  %2412 = vmatpush2.msra.mxu0 0.0
  %2413 = vmatprep.subr.mxu0 0.0
  %2414 = vmatpush2.msra.mxu0 0.0
  %2415 = vmatprep.subr.mxu0 0.0
  %2416 = vmatpush2.msra.mxu0 0.0
  %2417 = vmatprep.subr.mxu0 0.0
  %2418 = vmatpush2.msra.mxu0 0.0
  %2419 = vmatprep.subr.mxu0 0.0
  %2420 = vmatpush2.msra.mxu0 0.0
  %2421 = vmatprep.subr.mxu0 0.0
  %2422 = vmatpush2.msra.mxu0 0.0
  %2423 = vmatprep.mubr.f32.mxu0 0.0
  %2424 = vmatmul.mubr.f32.gmra.mxu0 %v2081
  %v2425 = vpop.f32.mrf.mxu0
  %v2426 = vadd.f32 0.0, %v2425
  %v2427 = vpop.f32.mrf.mxu0
  %v2428 = vadd.f32 0.0, %v2427
  %2429 = vmatprep.mubr.f32.mxu0 0.0
  %2430 = vmatmul.mubr.f32.gmra.mxu0 %v2084
  %v2431 = vpop.f32.mrf.mxu0
  %v2432 = vadd.f32 0.0, %v2431
  %v2433 = vpop.f32.mrf.mxu0
  %v2434 = vadd.f32 0.0, %v2433
  %2435 = vmatprep.mubr.f32.mxu0 0.0
  %2436 = vmatmul.mubr.f32.gmra.mxu0 %v2087
  %v2437 = vpop.f32.mrf.mxu0
  %v2438 = vadd.f32 0.0, %v2437
  %v2439 = vpop.f32.mrf.mxu0
  %v2440 = vadd.f32 0.0, %v2439
  %2441 = vmatprep.mubr.f32.mxu0 0.0
  %2442 = vmatmul.mubr.f32.gmra.mxu0 %v2090
  %v2443 = vpop.f32.mrf.mxu0
  %v2444 = vadd.f32 0.0, %v2443
  %v2445 = vpop.f32.mrf.mxu0
  %v2446 = vadd.f32 0.0, %v2445
  %2447 = vdwg.mxu0
  %v2448 = vld [vmem:[%s21] sm:$0xff]
  %v2449 = vld [vmem:[%s21 + $0x8] sm:$0xff]
  %v2450 = vld [vmem:[%s21 + $0x10] sm:$0xff]
  %v2451 = vld [vmem:[%s21 + $0x18] sm:$0xff]
  %v2452 = vld [vmem:[%s22] sm:$0xff]
  %v2453 = vld [vmem:[%s22 + $0x8] sm:$0xff]
  %v2454 = vld [vmem:[%s22 + $0x10] sm:$0xff]
  %v2455 = vld [vmem:[%s22 + $0x18] sm:$0xff]
  %2457 = vset.pattern.permute.xlu0 0
  %2458 = vperm.xlu0 %2457, %v2452
  %v2459 = vpop.permute.xlu0 %2458
  %2462 = vset.pattern.permute.xlu0 0
  %2463 = vperm.xlu0 %2462, %v2453
  %v2464 = vpop.permute.xlu0 %2463
  %2467 = vset.pattern.permute.xlu0 0
  %2468 = vperm.xlu0 %2467, %v2454
  %v2469 = vpop.permute.xlu0 %2468
  %2472 = vset.pattern.permute.xlu0 0
  %2473 = vperm.xlu0 %2472, %v2455
  %v2474 = vpop.permute.xlu0 %2473
  %v2477 = vsel %vm355, %v2448, 0
  %v2480 = vsel %vm355, %v2449, 0
  %v2483 = vsel %vm355, %v2450, 0
  %v2486 = vsel %vm355, %v2451, 0
  %2488 = vmatprep.subr.mxu0 0.0
  %2489 = vmatpush1.msra.mxu0 0.0
  %2490 = vmatprep.subr.mxu0 0.0
  %2491 = vmatpush1.msra.mxu0 0.0
  %2492 = vmatprep.subr.mxu0 0.0
  %2493 = vmatpush1.msra.mxu0 0.0
  %2494 = vmatprep.subr.mxu0 0.0
  %2495 = vmatpush1.msra.mxu0 0.0
  %2496 = vmatprep.subr.mxu0 0.0
  %2497 = vmatpush1.msra.mxu0 0.0
  %2498 = vmatprep.subr.mxu0 0.0
  %2499 = vmatpush1.msra.mxu0 0.0
  %2500 = vmatprep.subr.mxu0 0.0
  %2501 = vmatpush1.msra.mxu0 0.0
  %2502 = vmatprep.subr.mxu0 0.0
  %2503 = vmatpush1.msra.mxu0 0.0
  %2504 = vmatprep.subr.mxu0 0.0
  %2505 = vmatpush1.msra.mxu0 0.0
  %2506 = vmatprep.subr.mxu0 0.0
  %2507 = vmatpush1.msra.mxu0 0.0
  %2508 = vmatprep.subr.mxu0 0.0
  %2509 = vmatpush1.msra.mxu0 0.0
  %2510 = vmatprep.subr.mxu0 0.0
  %2511 = vmatpush1.msra.mxu0 0.0
  %2512 = vmatprep.subr.mxu0 0.0
  %2513 = vmatpush1.msra.mxu0 0.0
  %2514 = vmatprep.subr.mxu0 0.0
  %2515 = vmatpush1.msra.mxu0 0.0
  %2516 = vmatprep.subr.mxu0 0.0
  %2517 = vmatpush1.msra.mxu0 0.0
  %2518 = vmatprep.subr.mxu0 %v1689
  %2519 = vmatpush1.msra.mxu0 %v1586
  %2520 = vmatprep.subr.mxu0 0.0
  %2521 = vmatpush2.msra.mxu0 0.0
  %2522 = vmatprep.subr.mxu0 0.0
  %2523 = vmatpush2.msra.mxu0 0.0
  %2524 = vmatprep.subr.mxu0 0.0
  %2525 = vmatpush2.msra.mxu0 0.0
  %2526 = vmatprep.subr.mxu0 0.0
  %2527 = vmatpush2.msra.mxu0 0.0
  %2528 = vmatprep.subr.mxu0 0.0
  %2529 = vmatpush2.msra.mxu0 0.0
  %2530 = vmatprep.subr.mxu0 0.0
  %2531 = vmatpush2.msra.mxu0 0.0
  %2532 = vmatprep.subr.mxu0 0.0
  %2533 = vmatpush2.msra.mxu0 0.0
  %2534 = vmatprep.subr.mxu0 0.0
  %2535 = vmatpush2.msra.mxu0 0.0
  %2536 = vmatprep.subr.mxu0 0.0
  %2537 = vmatpush2.msra.mxu0 0.0
  %2538 = vmatprep.subr.mxu0 0.0
  %2539 = vmatpush2.msra.mxu0 0.0
  %2540 = vmatprep.subr.mxu0 0.0
  %2541 = vmatpush2.msra.mxu0 0.0
  %2542 = vmatprep.subr.mxu0 0.0
  %2543 = vmatpush2.msra.mxu0 0.0
  %2544 = vmatprep.subr.mxu0 0.0
  %2545 = vmatpush2.msra.mxu0 0.0
  %2546 = vmatprep.subr.mxu0 0.0
  %2547 = vmatpush2.msra.mxu0 0.0
  %2548 = vmatprep.subr.mxu0 0.0
  %2549 = vmatpush2.msra.mxu0 0.0
  %2550 = vmatprep.subr.mxu0 0.0
  %2551 = vmatpush2.msra.mxu0 0.0
  %2552 = vmatprep.mubr.f32.mxu0 0.0
  %2553 = vmatmul.mubr.f32.gmra.mxu0 %v2477
  %v2554 = vpop.f32.mrf.mxu0
  %v2555 = vadd.f32 %v2459, %v2554
  %v2556 = vpop.f32.mrf.mxu0
  %v2557 = vadd.f32 %v2459, %v2556
  %2558 = vmatprep.mubr.f32.mxu0 0.0
  %2559 = vmatmul.mubr.f32.gmra.mxu0 %v2480
  %v2560 = vpop.f32.mrf.mxu0
  %v2561 = vadd.f32 %v2464, %v2560
  %v2562 = vpop.f32.mrf.mxu0
  %v2563 = vadd.f32 %v2464, %v2562
  %2564 = vmatprep.mubr.f32.mxu0 0.0
  %2565 = vmatmul.mubr.f32.gmra.mxu0 %v2483
  %v2566 = vpop.f32.mrf.mxu0
  %v2567 = vadd.f32 %v2469, %v2566
  %v2568 = vpop.f32.mrf.mxu0
  %v2569 = vadd.f32 %v2469, %v2568
  %2570 = vmatprep.mubr.f32.mxu0 0.0
  %2571 = vmatmul.mubr.f32.gmra.mxu0 %v2486
  %v2572 = vpop.f32.mrf.mxu0
  %v2573 = vadd.f32 %v2474, %v2572
  %v2574 = vpop.f32.mrf.mxu0
  %v2575 = vadd.f32 %v2474, %v2574
  %2576 = vdwg.mxu0
  %v2577 = vmul.f32 %v1781, %v2555
  %v2578 = vmul.f32 %v1783, %v2557
  %v2579 = vmul.f32 %v1787, %v2561
  %v2580 = vmul.f32 %v1789, %v2563
  %v2581 = vrot.slane %v2577, 4
  %v2582 = vadd.f32 %v2577, %v2581
  %v2583 = vrot.slane %v2582, 2
  %v2584 = vadd.f32 %v2582, %v2583
  %v2585 = vrot.slane %v2584, 1
  %v2586 = vadd.f32 %v2584, %v2585
  %v2587 = vrot.slane %v2578, 4
  %v2588 = vadd.f32 %v2578, %v2587
  %v2589 = vrot.slane %v2588, 2
  %v2590 = vadd.f32 %v2588, %v2589
  %v2591 = vrot.slane %v2590, 1
  %v2592 = vadd.f32 %v2590, %v2591
  %v2593 = vrot.slane %v2579, 4
  %v2594 = vadd.f32 %v2579, %v2593
  %v2595 = vrot.slane %v2594, 2
  %v2596 = vadd.f32 %v2594, %v2595
  %v2597 = vrot.slane %v2596, 1
  %v2598 = vadd.f32 %v2596, %v2597
  %v2599 = vrot.slane %v2580, 4
  %v2600 = vadd.f32 %v2580, %v2599
  %v2601 = vrot.slane %v2600, 2
  %v2602 = vadd.f32 %v2600, %v2601
  %v2603 = vrot.slane %v2602, 1
  %v2604 = vadd.f32 %v2602, %v2603
  %vm2605 = vcmask 1040384
  %v2606 = vsel %vm2605, %v2586, %v2598
  %v2607 = vsel %vm2605, %v2592, %v2604
  %v2608 = vmul.f32 %v1781, %v2159
  %v2609 = vmul.f32 %v1783, %v2161
  %v2610 = vmul.f32 %v1787, %v2165
  %v2611 = vmul.f32 %v1789, %v2167
  %v2612 = vrot.slane %v2608, 4
  %v2613 = vadd.f32 %v2608, %v2612
  %v2614 = vrot.slane %v2613, 2
  %v2615 = vadd.f32 %v2613, %v2614
  %v2616 = vrot.slane %v2615, 1
  %v2617 = vadd.f32 %v2615, %v2616
  %v2618 = vrot.slane %v2609, 4
  %v2619 = vadd.f32 %v2609, %v2618
  %v2620 = vrot.slane %v2619, 2
  %v2621 = vadd.f32 %v2619, %v2620
  %v2622 = vrot.slane %v2621, 1
  %v2623 = vadd.f32 %v2621, %v2622
  %v2624 = vrot.slane %v2610, 4
  %v2625 = vadd.f32 %v2610, %v2624
  %v2626 = vrot.slane %v2625, 2
  %v2627 = vadd.f32 %v2625, %v2626
  %v2628 = vrot.slane %v2627, 1
  %v2629 = vadd.f32 %v2627, %v2628
  %v2630 = vrot.slane %v2611, 4
  %v2631 = vadd.f32 %v2611, %v2630
  %v2632 = vrot.slane %v2631, 2
  %v2633 = vadd.f32 %v2631, %v2632
  %v2634 = vrot.slane %v2633, 1
  %v2635 = vadd.f32 %v2633, %v2634
  %v2636 = vsel %vm2605, %v2617, %v2629
  %v2637 = vsel %vm2605, %v2623, %v2635
  %v2638 = vadd.f32 %v2636, %v2606
  %v2639 = vadd.f32 %v2637, %v2607
  %v2640 = vmul.f32 %v2638, 0.35355338
  %v2641 = vmul.f32 %v2639, 0.35355338
  %v2643 = vlaneseq
  %v2644 = vshrl.u32 %v2643, 7
  %v2645 = vsub.s32 0, %v2644
  %v2646 = vrot.slane %v1693, %v2645
  %v2647 = vlaneseq
  %v2648 = vshrl.u32 %v2647, 7
  %v2649 = vsub.s32 4, %v2648
  %v2650 = vrot.slane %v1693, %v2649
  %v2653 = vlaneseq
  %v2654 = vshrl.u32 %v2653, 7
  %v2655 = vsub.s32 0, %v2654
  %v2656 = vrot.slane %v2646, %v2655
  %v2657 = vlaneseq
  %v2658 = vshrl.u32 %v2657, 7
  %v2659 = vsub.s32 0, %v2658
  %v2660 = vrot.slane %v2650, %v2659
  %v2661 = vadd.f32 %v2640, %v2656
  %v2662 = vadd.f32 %v2641, %v2660
  %v2663 = vmul.f32 %v1781, %v2248
  %v2664 = vmul.f32 %v1783, %v2250
  %v2665 = vmul.f32 %v1787, %v2254
  %v2666 = vmul.f32 %v1789, %v2256
  %v2667 = vrot.slane %v2663, 4
  %v2668 = vadd.f32 %v2663, %v2667
  %v2669 = vrot.slane %v2668, 2
  %v2670 = vadd.f32 %v2668, %v2669
  %v2671 = vrot.slane %v2670, 1
  %v2672 = vadd.f32 %v2670, %v2671
  %v2673 = vrot.slane %v2664, 4
  %v2674 = vadd.f32 %v2664, %v2673
  %v2675 = vrot.slane %v2674, 2
  %v2676 = vadd.f32 %v2674, %v2675
  %v2677 = vrot.slane %v2676, 1
  %v2678 = vadd.f32 %v2676, %v2677
  %v2679 = vrot.slane %v2665, 4
  %v2680 = vadd.f32 %v2665, %v2679
  %v2681 = vrot.slane %v2680, 2
  %v2682 = vadd.f32 %v2680, %v2681
  %v2683 = vrot.slane %v2682, 1
  %v2684 = vadd.f32 %v2682, %v2683
  %v2685 = vrot.slane %v2666, 4
  %v2686 = vadd.f32 %v2666, %v2685
  %v2687 = vrot.slane %v2686, 2
  %v2688 = vadd.f32 %v2686, %v2687
  %v2689 = vrot.slane %v2688, 1
  %v2690 = vadd.f32 %v2688, %v2689
  %v2691 = vsel %vm2605, %v2672, %v2684
  %v2692 = vsel %vm2605, %v2678, %v2690
  %v2693 = vadd.f32 %v2691, %v2606
  %v2694 = vadd.f32 %v2692, %v2607
  %v2695 = vmul.f32 %v2693, 0.35355338
  %v2696 = vmul.f32 %v2694, 0.35355338
  %v2697 = vlaneseq
  %v2698 = vshrl.u32 %v2697, 7
  %v2699 = vsub.s32 1, %v2698
  %v2700 = vrot.slane %v1693, %v2699
  %v2701 = vlaneseq
  %v2702 = vshrl.u32 %v2701, 7
  %v2703 = vsub.s32 5, %v2702
  %v2704 = vrot.slane %v1693, %v2703
  %v2707 = vlaneseq
  %v2708 = vshrl.u32 %v2707, 7
  %v2709 = vsub.s32 1, %v2708
  %v2710 = vrot.slane %v2700, %v2709
  %v2711 = vlaneseq
  %v2712 = vshrl.u32 %v2711, 7
  %v2713 = vsub.s32 1, %v2712
  %v2714 = vrot.slane %v2704, %v2713
  %v2715 = vadd.f32 %v2695, %v2710
  %v2716 = vadd.f32 %v2696, %v2714
  %v2717 = vmul.f32 %v1781, %v2337
  %v2718 = vmul.f32 %v1783, %v2339
  %v2719 = vmul.f32 %v1787, %v2343
  %v2720 = vmul.f32 %v1789, %v2345
  %v2721 = vrot.slane %v2717, 4
  %v2722 = vadd.f32 %v2717, %v2721
  %v2723 = vrot.slane %v2722, 2
  %v2724 = vadd.f32 %v2722, %v2723
  %v2725 = vrot.slane %v2724, 1
  %v2726 = vadd.f32 %v2724, %v2725
  %v2727 = vrot.slane %v2718, 4
  %v2728 = vadd.f32 %v2718, %v2727
  %v2729 = vrot.slane %v2728, 2
  %v2730 = vadd.f32 %v2728, %v2729
  %v2731 = vrot.slane %v2730, 1
  %v2732 = vadd.f32 %v2730, %v2731
  %v2733 = vrot.slane %v2719, 4
  %v2734 = vadd.f32 %v2719, %v2733
  %v2735 = vrot.slane %v2734, 2
  %v2736 = vadd.f32 %v2734, %v2735
  %v2737 = vrot.slane %v2736, 1
  %v2738 = vadd.f32 %v2736, %v2737
  %v2739 = vrot.slane %v2720, 4
  %v2740 = vadd.f32 %v2720, %v2739
  %v2741 = vrot.slane %v2740, 2
  %v2742 = vadd.f32 %v2740, %v2741
  %v2743 = vrot.slane %v2742, 1
  %v2744 = vadd.f32 %v2742, %v2743
  %v2745 = vsel %vm2605, %v2726, %v2738
  %v2746 = vsel %vm2605, %v2732, %v2744
  %v2747 = vadd.f32 %v2745, %v2606
  %v2748 = vadd.f32 %v2746, %v2607
  %v2749 = vmul.f32 %v2747, 0.35355338
  %v2750 = vmul.f32 %v2748, 0.35355338
  %v2751 = vlaneseq
  %v2752 = vshrl.u32 %v2751, 7
  %v2753 = vsub.s32 2, %v2752
  %v2754 = vrot.slane %v1693, %v2753
  %v2755 = vlaneseq
  %v2756 = vshrl.u32 %v2755, 7
  %v2757 = vsub.s32 6, %v2756
  %v2758 = vrot.slane %v1693, %v2757
  %v2761 = vlaneseq
  %v2762 = vshrl.u32 %v2761, 7
  %v2763 = vsub.s32 2, %v2762
  %v2764 = vrot.slane %v2754, %v2763
  %v2765 = vlaneseq
  %v2766 = vshrl.u32 %v2765, 7
  %v2767 = vsub.s32 2, %v2766
  %v2768 = vrot.slane %v2758, %v2767
  %v2769 = vadd.f32 %v2749, %v2764
  %v2770 = vadd.f32 %v2750, %v2768
  %v2771 = vmul.f32 %v1781, %v2426
  %v2772 = vmul.f32 %v1783, %v2428
  %v2773 = vmul.f32 %v1787, %v2432
  %v2774 = vmul.f32 %v1789, %v2434
  %v2775 = vrot.slane %v2771, 4
  %v2776 = vadd.f32 %v2771, %v2775
  %v2777 = vrot.slane %v2776, 2
  %v2778 = vadd.f32 %v2776, %v2777
  %v2779 = vrot.slane %v2778, 1
  %v2780 = vadd.f32 %v2778, %v2779
  %v2781 = vrot.slane %v2772, 4
  %v2782 = vadd.f32 %v2772, %v2781
  %v2783 = vrot.slane %v2782, 2
  %v2784 = vadd.f32 %v2782, %v2783
  %v2785 = vrot.slane %v2784, 1
  %v2786 = vadd.f32 %v2784, %v2785
  %v2787 = vrot.slane %v2773, 4
  %v2788 = vadd.f32 %v2773, %v2787
  %v2789 = vrot.slane %v2788, 2
  %v2790 = vadd.f32 %v2788, %v2789
  %v2791 = vrot.slane %v2790, 1
  %v2792 = vadd.f32 %v2790, %v2791
  %v2793 = vrot.slane %v2774, 4
  %v2794 = vadd.f32 %v2774, %v2793
  %v2795 = vrot.slane %v2794, 2
  %v2796 = vadd.f32 %v2794, %v2795
  %v2797 = vrot.slane %v2796, 1
  %v2798 = vadd.f32 %v2796, %v2797
  %v2799 = vsel %vm2605, %v2780, %v2792
  %v2800 = vsel %vm2605, %v2786, %v2798
  %v2801 = vadd.f32 %v2799, %v2606
  %v2802 = vadd.f32 %v2800, %v2607
  %v2803 = vmul.f32 %v2801, 0.35355338
  %v2804 = vmul.f32 %v2802, 0.35355338
  %v2805 = vlaneseq
  %v2806 = vshrl.u32 %v2805, 7
  %v2807 = vsub.s32 3, %v2806
  %v2808 = vrot.slane %v1693, %v2807
  %v2809 = vlaneseq
  %v2810 = vshrl.u32 %v2809, 7
  %v2811 = vsub.s32 7, %v2810
  %v2812 = vrot.slane %v1693, %v2811
  %v2815 = vlaneseq
  %v2816 = vshrl.u32 %v2815, 7
  %v2817 = vsub.s32 3, %v2816
  %v2818 = vrot.slane %v2808, %v2817
  %v2819 = vlaneseq
  %v2820 = vshrl.u32 %v2819, 7
  %v2821 = vsub.s32 3, %v2820
  %v2822 = vrot.slane %v2812, %v2821
  %v2823 = vadd.f32 %v2803, %v2818
  %v2824 = vadd.f32 %v2804, %v2822
  %v2825 = vmax.f32 %v2661, %v2715
  %v2826 = vmax.f32 %v2662, %v2716
  %v2827 = vmax.f32 %v2825, %v2769
  %v2828 = vmax.f32 %v2826, %v2770
  %v2829 = vmax.f32 %v2827, %v2823
  %v2830 = vmax.f32 %v2828, %v2824
  %v2831 = vsub.f32 %v2661, %v2829
  %v2832 = vsub.f32 %v2662, %v2830
  %v2833 = vmul.f32 %v2831, 1.442695
  %v2834 = vpow.pop %v2833
  %v2835 = vmul.f32 %v2832, 1.442695
  %v2836 = vpow.pop %v2835
  %v2837 = vsub.f32 %v2715, %v2829
  %v2838 = vsub.f32 %v2716, %v2830
  %v2839 = vmul.f32 %v2837, 1.442695
  %v2840 = vpow.pop %v2839
  %v2841 = vmul.f32 %v2838, 1.442695
  %v2842 = vpow.pop %v2841
  %v2843 = vsub.f32 %v2769, %v2829
  %v2844 = vsub.f32 %v2770, %v2830
  %v2845 = vmul.f32 %v2843, 1.442695
  %v2846 = vpow.pop %v2845
  %v2847 = vmul.f32 %v2844, 1.442695
  %v2848 = vpow.pop %v2847
  %v2849 = vsub.f32 %v2823, %v2829
  %v2850 = vsub.f32 %v2824, %v2830
  %v2851 = vmul.f32 %v2849, 1.442695
  %v2852 = vpow.pop %v2851
  %v2853 = vmul.f32 %v2850, 1.442695
  %v2854 = vpow.pop %v2853
  %v2855 = vadd.f32 %v2834, %v2840
  %v2856 = vadd.f32 %v2836, %v2842
  %v2857 = vadd.f32 %v2855, %v2846
  %v2858 = vadd.f32 %v2856, %v2848
  %v2859 = vadd.f32 %v2857, %v2852
  %v2860 = vadd.f32 %v2858, %v2854
  %v2861 = vrcp.pop %v2859
  %v2862 = vmul.f32 1.0, %v2861
  %v2863 = vrcp.pop %v2860
  %v2864 = vmul.f32 1.0, %v2863
  %v2865 = vmul.f32 %v2834, %v2862
  %v2866 = vmul.f32 %v2836, %v2864
  %v2869 = vcombine.low %v2865, %v2866
  %v2871 = vunpack.c.l.s4 1966171168
  %v2872 = vunpack.c.0.s8 %v2871
  %v2873 = vlaneseq
  %v2874 = vshrl.u32 %v2873, 7
  %v2875 = vsub.s32 %v2872, %v2874
  %v2876 = vrot.slane %v2869, %v2875
  %v2877 = vcombine.high %v2876, %v2876
  %v2879 = vunpack.c.l.s4 1966171168
  %v2880 = vunpack.c.0.s8 %v2879
  %v2881 = vlaneseq
  %v2882 = vshrl.u32 %v2881, 7
  %v2883 = vsub.s32 %v2880, %v2882
  %v2884 = vrot.slane %v2876, %v2883
  %v2886 = vunpack.c.l.s4 1966171168
  %v2887 = vunpack.c.0.s8 %v2886
  %v2888 = vlaneseq
  %v2889 = vshrl.u32 %v2888, 7
  %v2890 = vsub.s32 %v2887, %v2889
  %v2891 = vrot.slane %v2877, %v2890
  %v2892 = vlaneseq
  %v2893 = vshrl.u32 %v2892, 7
  %v2894 = vsub.s32 0, %v2893
  %v2895 = vrot.slane %v2884, %v2894
  %v2896 = vlaneseq
  %v2897 = vshrl.u32 %v2896, 7
  %v2898 = vsub.s32 1, %v2897
  %v2899 = vrot.slane %v2884, %v2898
  %v2900 = vlaneseq
  %v2901 = vshrl.u32 %v2900, 7
  %v2902 = vsub.s32 0, %v2901
  %v2903 = vrot.slane %v2891, %v2902
  %v2904 = vlaneseq
  %v2905 = vshrl.u32 %v2904, 7
  %v2906 = vsub.s32 1, %v2905
  %v2907 = vrot.slane %v2891, %v2906
  %v2912 = vmul.f32 %v2895, %v2171
  %v2913 = vmul.f32 %v2899, %v2173
  %v2914 = vmul.f32 %v2903, %v2177
  %v2915 = vmul.f32 %v2907, %v2179
  %v2916 = vadd.f32 %v2567, %v2912
  %v2917 = vadd.f32 %v2569, %v2913
  %v2918 = vadd.f32 %v2573, %v2914
  %v2919 = vadd.f32 %v2575, %v2915
  %v2920 = vmul.f32 %v2840, %v2862
  %v2921 = vmul.f32 %v2842, %v2864
  %v2924 = vcombine.low %v2920, %v2921
  %v2926 = vunpack.c.l.s4 1966171168
  %v2927 = vunpack.c.0.s8 %v2926
  %v2928 = vlaneseq
  %v2929 = vshrl.u32 %v2928, 7
  %v2930 = vsub.s32 %v2927, %v2929
  %v2931 = vrot.slane %v2924, %v2930
  %v2932 = vcombine.high %v2931, %v2931
  %v2934 = vunpack.c.l.s4 1966171168
  %v2935 = vunpack.c.0.s8 %v2934
  %v2936 = vlaneseq
  %v2937 = vshrl.u32 %v2936, 7
  %v2938 = vsub.s32 %v2935, %v2937
  %v2939 = vrot.slane %v2931, %v2938
  %v2941 = vunpack.c.l.s4 1966171168
  %v2942 = vunpack.c.0.s8 %v2941
  %v2943 = vlaneseq
  %v2944 = vshrl.u32 %v2943, 7
  %v2945 = vsub.s32 %v2942, %v2944
  %v2946 = vrot.slane %v2932, %v2945
  %v2947 = vlaneseq
  %v2948 = vshrl.u32 %v2947, 7
  %v2949 = vsub.s32 0, %v2948
  %v2950 = vrot.slane %v2939, %v2949
  %v2951 = vlaneseq
  %v2952 = vshrl.u32 %v2951, 7
  %v2953 = vsub.s32 1, %v2952
  %v2954 = vrot.slane %v2939, %v2953
  %v2955 = vlaneseq
  %v2956 = vshrl.u32 %v2955, 7
  %v2957 = vsub.s32 0, %v2956
  %v2958 = vrot.slane %v2946, %v2957
  %v2959 = vlaneseq
  %v2960 = vshrl.u32 %v2959, 7
  %v2961 = vsub.s32 1, %v2960
  %v2962 = vrot.slane %v2946, %v2961
  %v2967 = vmul.f32 %v2950, %v2260
  %v2968 = vmul.f32 %v2954, %v2262
  %v2969 = vmul.f32 %v2958, %v2266
  %v2970 = vmul.f32 %v2962, %v2268
  %v2971 = vadd.f32 %v2916, %v2967
  %v2972 = vadd.f32 %v2917, %v2968
  %v2973 = vadd.f32 %v2918, %v2969
  %v2974 = vadd.f32 %v2919, %v2970
  %v2975 = vmul.f32 %v2846, %v2862
  %v2976 = vmul.f32 %v2848, %v2864
  %v2979 = vcombine.low %v2975, %v2976
  %v2981 = vunpack.c.l.s4 1966171168
  %v2982 = vunpack.c.0.s8 %v2981
  %v2983 = vlaneseq
  %v2984 = vshrl.u32 %v2983, 7
  %v2985 = vsub.s32 %v2982, %v2984
  %v2986 = vrot.slane %v2979, %v2985
  %v2987 = vcombine.high %v2986, %v2986
  %v2989 = vunpack.c.l.s4 1966171168
  %v2990 = vunpack.c.0.s8 %v2989
  %v2991 = vlaneseq
  %v2992 = vshrl.u32 %v2991, 7
  %v2993 = vsub.s32 %v2990, %v2992
  %v2994 = vrot.slane %v2986, %v2993
  %v2996 = vunpack.c.l.s4 1966171168
  %v2997 = vunpack.c.0.s8 %v2996
  %v2998 = vlaneseq
  %v2999 = vshrl.u32 %v2998, 7
  %v3000 = vsub.s32 %v2997, %v2999
  %v3001 = vrot.slane %v2987, %v3000
  %v3002 = vlaneseq
  %v3003 = vshrl.u32 %v3002, 7
  %v3004 = vsub.s32 0, %v3003
  %v3005 = vrot.slane %v2994, %v3004
  %v3006 = vlaneseq
  %v3007 = vshrl.u32 %v3006, 7
  %v3008 = vsub.s32 1, %v3007
  %v3009 = vrot.slane %v2994, %v3008
  %v3010 = vlaneseq
  %v3011 = vshrl.u32 %v3010, 7
  %v3012 = vsub.s32 0, %v3011
  %v3013 = vrot.slane %v3001, %v3012
  %v3014 = vlaneseq
  %v3015 = vshrl.u32 %v3014, 7
  %v3016 = vsub.s32 1, %v3015
  %v3017 = vrot.slane %v3001, %v3016
  %v3022 = vmul.f32 %v3005, %v2349
  %v3023 = vmul.f32 %v3009, %v2351
  %v3024 = vmul.f32 %v3013, %v2355
  %v3025 = vmul.f32 %v3017, %v2357
  %v3026 = vadd.f32 %v2971, %v3022
  %v3027 = vadd.f32 %v2972, %v3023
  %v3028 = vadd.f32 %v2973, %v3024
  %v3029 = vadd.f32 %v2974, %v3025
  %v3030 = vmul.f32 %v2852, %v2862
  %v3031 = vmul.f32 %v2854, %v2864
  %v3034 = vcombine.low %v3030, %v3031
  %v3036 = vunpack.c.l.s4 1966171168
  %v3037 = vunpack.c.0.s8 %v3036
  %v3038 = vlaneseq
  %v3039 = vshrl.u32 %v3038, 7
  %v3040 = vsub.s32 %v3037, %v3039
  %v3041 = vrot.slane %v3034, %v3040
  %v3042 = vcombine.high %v3041, %v3041
  %v3044 = vunpack.c.l.s4 1966171168
  %v3045 = vunpack.c.0.s8 %v3044
  %v3046 = vlaneseq
  %v3047 = vshrl.u32 %v3046, 7
  %v3048 = vsub.s32 %v3045, %v3047
  %v3049 = vrot.slane %v3041, %v3048
  %v3051 = vunpack.c.l.s4 1966171168
  %v3052 = vunpack.c.0.s8 %v3051
  %v3053 = vlaneseq
  %v3054 = vshrl.u32 %v3053, 7
  %v3055 = vsub.s32 %v3052, %v3054
  %v3056 = vrot.slane %v3042, %v3055
  %v3057 = vlaneseq
  %v3058 = vshrl.u32 %v3057, 7
  %v3059 = vsub.s32 0, %v3058
  %v3060 = vrot.slane %v3049, %v3059
  %v3061 = vlaneseq
  %v3062 = vshrl.u32 %v3061, 7
  %v3063 = vsub.s32 1, %v3062
  %v3064 = vrot.slane %v3049, %v3063
  %v3065 = vlaneseq
  %v3066 = vshrl.u32 %v3065, 7
  %v3067 = vsub.s32 0, %v3066
  %v3068 = vrot.slane %v3056, %v3067
  %v3069 = vlaneseq
  %v3070 = vshrl.u32 %v3069, 7
  %v3071 = vsub.s32 1, %v3070
  %v3072 = vrot.slane %v3056, %v3071
  %v3077 = vmul.f32 %v3060, %v2438
  %v3078 = vmul.f32 %v3064, %v2440
  %v3079 = vmul.f32 %v3068, %v2444
  %v3080 = vmul.f32 %v3072, %v2446
  %v3081 = vadd.f32 %v3026, %v3077
  %v3082 = vadd.f32 %v3027, %v3078
  %v3083 = vadd.f32 %v3028, %v3079
  %v3084 = vadd.f32 %v3029, %v3080
  %v3085 = vld [vmem:[%s23] sm:$0xff]
  %v3086 = vld [vmem:[%s24] sm:$0xff]
  %3088 = vset.pattern.permute.xlu0 0
  %3089 = vperm.xlu0 %3088, %v3086
  %v3090 = vpop.permute.xlu0 %3089
  %v3093 = vsel %vm2079, %v3085, 0
  %3095 = vmatprep.subr.mxu0 0.0
  %3096 = vmatpush1.msra.mxu0 0.0
  %3097 = vmatprep.subr.mxu0 0.0
  %3098 = vmatpush1.msra.mxu0 0.0
  %3099 = vmatprep.subr.mxu0 0.0
  %3100 = vmatpush1.msra.mxu0 0.0
  %3101 = vmatprep.subr.mxu0 0.0
  %3102 = vmatpush1.msra.mxu0 0.0
  %3103 = vmatprep.subr.mxu0 0.0
  %3104 = vmatpush1.msra.mxu0 0.0
  %3105 = vmatprep.subr.mxu0 0.0
  %3106 = vmatpush1.msra.mxu0 0.0
  %3107 = vmatprep.subr.mxu0 0.0
  %3108 = vmatpush1.msra.mxu0 0.0
  %3109 = vmatprep.subr.mxu0 0.0
  %3110 = vmatpush1.msra.mxu0 0.0
  %3111 = vmatprep.subr.mxu0 0.0
  %3112 = vmatpush1.msra.mxu0 0.0
  %3113 = vmatprep.subr.mxu0 0.0
  %3114 = vmatpush1.msra.mxu0 0.0
  %3115 = vmatprep.subr.mxu0 0.0
  %3116 = vmatpush1.msra.mxu0 0.0
  %3117 = vmatprep.subr.mxu0 0.0
  %3118 = vmatpush1.msra.mxu0 0.0
  %3119 = vmatprep.subr.mxu0 0.0
  %3120 = vmatpush1.msra.mxu0 0.0
  %3121 = vmatprep.subr.mxu0 0.0
  %3122 = vmatpush1.msra.mxu0 0.0
  %3123 = vmatprep.subr.mxu0 %v3084
  %3124 = vmatpush1.msra.mxu0 %v3083
  %3125 = vmatprep.subr.mxu0 %v3082
  %3126 = vmatpush1.msra.mxu0 %v3081
  %3127 = vmatprep.subr.mxu0 0.0
  %3128 = vmatpush2.msra.mxu0 0.0
  %3129 = vmatprep.subr.mxu0 0.0
  %3130 = vmatpush2.msra.mxu0 0.0
  %3131 = vmatprep.subr.mxu0 0.0
  %3132 = vmatpush2.msra.mxu0 0.0
  %3133 = vmatprep.subr.mxu0 0.0
  %3134 = vmatpush2.msra.mxu0 0.0
  %3135 = vmatprep.subr.mxu0 0.0
  %3136 = vmatpush2.msra.mxu0 0.0
  %3137 = vmatprep.subr.mxu0 0.0
  %3138 = vmatpush2.msra.mxu0 0.0
  %3139 = vmatprep.subr.mxu0 0.0
  %3140 = vmatpush2.msra.mxu0 0.0
  %3141 = vmatprep.subr.mxu0 0.0
  %3142 = vmatpush2.msra.mxu0 0.0
  %3143 = vmatprep.subr.mxu0 0.0
  %3144 = vmatpush2.msra.mxu0 0.0
  %3145 = vmatprep.subr.mxu0 0.0
  %3146 = vmatpush2.msra.mxu0 0.0
  %3147 = vmatprep.subr.mxu0 0.0
  %3148 = vmatpush2.msra.mxu0 0.0
  %3149 = vmatprep.subr.mxu0 0.0
  %3150 = vmatpush2.msra.mxu0 0.0
  %3151 = vmatprep.subr.mxu0 0.0
  %3152 = vmatpush2.msra.mxu0 0.0
  %3153 = vmatprep.subr.mxu0 0.0
  %3154 = vmatpush2.msra.mxu0 0.0
  %3155 = vmatprep.subr.mxu0 0.0
  %3156 = vmatpush2.msra.mxu0 0.0
  %3157 = vmatprep.subr.mxu0 0.0
  %3158 = vmatpush2.msra.mxu0 0.0
  %3159 = vmatprep.mubr.f32.mxu0 0.0
  %3160 = vmatmul.mubr.f32.gmra.mxu0 %v3093
  %v3161 = vpop.f32.mrf.mxu0
  %v3162 = vadd.f32 %v3090, %v3161
  %v3163 = vpop.f32.mrf.mxu0
  %v3164 = vadd.f32 %v3090, %v3163
  %3165 = vdwg.mxu0
  %s3166 = scalar_lea.vmem %s18, 16
  %v3167 = vld [vmem:[%s3166] sm:$0xff]
  %v3168 = vld [vmem:[%s3166 + $0x8] sm:$0xff]
  %s3169 = scalar_lea.vmem %s19, 16
  %v3170 = vld [vmem:[%s3169] sm:$0xff]
  %v3171 = vld [vmem:[%s3169 + $0x8] sm:$0xff]
  %3173 = vset.pattern.permute.xlu0 0
  %3174 = vperm.xlu0 %3173, %v3170
  %v3175 = vpop.permute.xlu0 %3174
  %3178 = vset.pattern.permute.xlu0 0
  %3179 = vperm.xlu0 %3178, %v3171
  %v3180 = vpop.permute.xlu0 %3179
  %v3183 = vsel %vm355, %v3167, 0
  %v3186 = vsel %vm355, %v3168, 0
  %3188 = vmatprep.subr.mxu0 0.0
  %3189 = vmatpush1.msra.mxu0 0.0
  %3190 = vmatprep.subr.mxu0 0.0
  %3191 = vmatpush1.msra.mxu0 0.0
  %3192 = vmatprep.subr.mxu0 0.0
  %3193 = vmatpush1.msra.mxu0 0.0
  %3194 = vmatprep.subr.mxu0 0.0
  %3195 = vmatpush1.msra.mxu0 0.0
  %3196 = vmatprep.subr.mxu0 0.0
  %3197 = vmatpush1.msra.mxu0 0.0
  %3198 = vmatprep.subr.mxu0 0.0
  %3199 = vmatpush1.msra.mxu0 0.0
  %3200 = vmatprep.subr.mxu0 0.0
  %3201 = vmatpush1.msra.mxu0 0.0
  %3202 = vmatprep.subr.mxu0 0.0
  %3203 = vmatpush1.msra.mxu0 0.0
  %3204 = vmatprep.subr.mxu0 0.0
  %3205 = vmatpush1.msra.mxu0 0.0
  %3206 = vmatprep.subr.mxu0 0.0
  %3207 = vmatpush1.msra.mxu0 0.0
  %3208 = vmatprep.subr.mxu0 0.0
  %3209 = vmatpush1.msra.mxu0 0.0
  %3210 = vmatprep.subr.mxu0 0.0
  %3211 = vmatpush1.msra.mxu0 0.0
  %3212 = vmatprep.subr.mxu0 0.0
  %3213 = vmatpush1.msra.mxu0 0.0
  %3214 = vmatprep.subr.mxu0 0.0
  %3215 = vmatpush1.msra.mxu0 0.0
  %3216 = vmatprep.subr.mxu0 0.0
  %3217 = vmatpush1.msra.mxu0 0.0
  %3218 = vmatprep.subr.mxu0 %v3164
  %3219 = vmatpush1.msra.mxu0 %v3162
  %3220 = vmatprep.subr.mxu0 0.0
  %3221 = vmatpush2.msra.mxu0 0.0
  %3222 = vmatprep.subr.mxu0 0.0
  %3223 = vmatpush2.msra.mxu0 0.0
  %3224 = vmatprep.subr.mxu0 0.0
  %3225 = vmatpush2.msra.mxu0 0.0
  %3226 = vmatprep.subr.mxu0 0.0
  %3227 = vmatpush2.msra.mxu0 0.0
  %3228 = vmatprep.subr.mxu0 0.0
  %3229 = vmatpush2.msra.mxu0 0.0
  %3230 = vmatprep.subr.mxu0 0.0
  %3231 = vmatpush2.msra.mxu0 0.0
  %3232 = vmatprep.subr.mxu0 0.0
  %3233 = vmatpush2.msra.mxu0 0.0
  %3234 = vmatprep.subr.mxu0 0.0
  %3235 = vmatpush2.msra.mxu0 0.0
  %3236 = vmatprep.subr.mxu0 0.0
  %3237 = vmatpush2.msra.mxu0 0.0
  %3238 = vmatprep.subr.mxu0 0.0
  %3239 = vmatpush2.msra.mxu0 0.0
  %3240 = vmatprep.subr.mxu0 0.0
  %3241 = vmatpush2.msra.mxu0 0.0
  %3242 = vmatprep.subr.mxu0 0.0
  %3243 = vmatpush2.msra.mxu0 0.0
  %3244 = vmatprep.subr.mxu0 0.0
  %3245 = vmatpush2.msra.mxu0 0.0
  %3246 = vmatprep.subr.mxu0 0.0
  %3247 = vmatpush2.msra.mxu0 0.0
  %3248 = vmatprep.subr.mxu0 0.0
  %3249 = vmatpush2.msra.mxu0 0.0
  %3250 = vmatprep.subr.mxu0 0.0
  %3251 = vmatpush2.msra.mxu0 0.0
  %3252 = vmatprep.mubr.f32.mxu0 0.0
  %3253 = vmatmul.mubr.f32.gmra.mxu0 %v3183
  %v3254 = vpop.f32.mrf.mxu0
  %v3255 = vadd.f32 %v3175, %v3254
  %v3256 = vpop.f32.mrf.mxu0
  %v3257 = vadd.f32 %v3175, %v3256
  %3258 = vmatprep.mubr.f32.mxu0 0.0
  %3259 = vmatmul.mubr.f32.gmra.mxu0 %v3186
  %v3260 = vpop.f32.mrf.mxu0
  %v3261 = vadd.f32 %v3180, %v3260
  %v3262 = vpop.f32.mrf.mxu0
  %v3263 = vadd.f32 %v3180, %v3262
  %3264 = vdwg.mxu0
  %3265 = vmatprep.subr.mxu0 %v212
  %3266 = vmatpush1.msra.mxu0 %v211
  %3267 = vmatprep.subr.mxu0 %v204
  %3268 = vmatpush1.msra.mxu0 %v203
  %3269 = vmatprep.subr.mxu0 %v196
  %3270 = vmatpush1.msra.mxu0 %v195
  %3271 = vmatprep.subr.mxu0 %v188
  %3272 = vmatpush1.msra.mxu0 %v187
  %3273 = vmatprep.subr.mxu0 %v180
  %3274 = vmatpush1.msra.mxu0 %v179
  %3275 = vmatprep.subr.mxu0 %v172
  %3276 = vmatpush1.msra.mxu0 %v171
  %3277 = vmatprep.subr.mxu0 %v164
  %3278 = vmatpush1.msra.mxu0 %v163
  %3279 = vmatprep.subr.mxu0 %v156
  %3280 = vmatpush1.msra.mxu0 %v155
  %3281 = vmatprep.subr.mxu0 %v148
  %3282 = vmatpush1.msra.mxu0 %v147
  %3283 = vmatprep.subr.mxu0 %v140
  %3284 = vmatpush1.msra.mxu0 %v139
  %3285 = vmatprep.subr.mxu0 %v132
  %3286 = vmatpush1.msra.mxu0 %v131
  %3287 = vmatprep.subr.mxu0 %v124
  %3288 = vmatpush1.msra.mxu0 %v123
  %3289 = vmatprep.subr.mxu0 %v116
  %3290 = vmatpush1.msra.mxu0 %v115
  %3291 = vmatprep.subr.mxu0 %v108
  %3292 = vmatpush1.msra.mxu0 %v107
  %3293 = vmatprep.subr.mxu0 %v100
  %3294 = vmatpush1.msra.mxu0 %v99
  %3295 = vmatprep.subr.mxu0 %v92
  %3296 = vmatpush1.msra.mxu0 %v91
  %3297 = vmatprep.subr.mxu0 %v340
  %3298 = vmatpush2.msra.mxu0 %v339
  %3299 = vmatprep.subr.mxu0 %v332
  %3300 = vmatpush2.msra.mxu0 %v331
  %3301 = vmatprep.subr.mxu0 %v324
  %3302 = vmatpush2.msra.mxu0 %v323
  %3303 = vmatprep.subr.mxu0 %v316
  %3304 = vmatpush2.msra.mxu0 %v315
  %3305 = vmatprep.subr.mxu0 %v308
  %3306 = vmatpush2.msra.mxu0 %v307
  %3307 = vmatprep.subr.mxu0 %v300
  %3308 = vmatpush2.msra.mxu0 %v299
  %3309 = vmatprep.subr.mxu0 %v292
  %3310 = vmatpush2.msra.mxu0 %v291
  %3311 = vmatprep.subr.mxu0 %v284
  %3312 = vmatpush2.msra.mxu0 %v283
  %3313 = vmatprep.subr.mxu0 %v276
  %3314 = vmatpush2.msra.mxu0 %v275
  %3315 = vmatprep.subr.mxu0 %v268
  %3316 = vmatpush2.msra.mxu0 %v267
  %3317 = vmatprep.subr.mxu0 %v260
  %3318 = vmatpush2.msra.mxu0 %v259
  %3319 = vmatprep.subr.mxu0 %v252
  %3320 = vmatpush2.msra.mxu0 %v251
  %3321 = vmatprep.subr.mxu0 %v244
  %3322 = vmatpush2.msra.mxu0 %v243
  %3323 = vmatprep.subr.mxu0 %v236
  %3324 = vmatpush2.msra.mxu0 %v235
  %3325 = vmatprep.subr.mxu0 %v228
  %3326 = vmatpush2.msra.mxu0 %v227
  %3327 = vmatprep.subr.mxu0 %v220
  %3328 = vmatpush2.msra.mxu0 %v219
  %3329 = vmatprep.mubr.f32.mxu0 %v3164
  %3330 = vmatmul.mubr.f32.gmra.mxu0 %v3162
  %v3331 = vpop.f32.mrf.mxu0
  %v3332 = vadd.f32 0.0, %v3331
  %v3333 = vpop.f32.mrf.mxu0
  %v3334 = vadd.f32 0.0, %v3333
  %3335 = vdwg.mxu0
  %3336 = vmatprep.subr.mxu0 %v214
  %3337 = vmatpush1.msra.mxu0 %v213
  %3338 = vmatprep.subr.mxu0 %v206
  %3339 = vmatpush1.msra.mxu0 %v205
  %3340 = vmatprep.subr.mxu0 %v198
  %3341 = vmatpush1.msra.mxu0 %v197
  %3342 = vmatprep.subr.mxu0 %v190
  %3343 = vmatpush1.msra.mxu0 %v189
  %3344 = vmatprep.subr.mxu0 %v182
  %3345 = vmatpush1.msra.mxu0 %v181
  %3346 = vmatprep.subr.mxu0 %v174
  %3347 = vmatpush1.msra.mxu0 %v173
  %3348 = vmatprep.subr.mxu0 %v166
  %3349 = vmatpush1.msra.mxu0 %v165
  %3350 = vmatprep.subr.mxu0 %v158
  %3351 = vmatpush1.msra.mxu0 %v157
  %3352 = vmatprep.subr.mxu0 %v150
  %3353 = vmatpush1.msra.mxu0 %v149
  %3354 = vmatprep.subr.mxu0 %v142
  %3355 = vmatpush1.msra.mxu0 %v141
  %3356 = vmatprep.subr.mxu0 %v134
  %3357 = vmatpush1.msra.mxu0 %v133
  %3358 = vmatprep.subr.mxu0 %v126
  %3359 = vmatpush1.msra.mxu0 %v125
  %3360 = vmatprep.subr.mxu0 %v118
  %3361 = vmatpush1.msra.mxu0 %v117
  %3362 = vmatprep.subr.mxu0 %v110
  %3363 = vmatpush1.msra.mxu0 %v109
  %3364 = vmatprep.subr.mxu0 %v102
  %3365 = vmatpush1.msra.mxu0 %v101
  %3366 = vmatprep.subr.mxu0 %v94
  %3367 = vmatpush1.msra.mxu0 %v93
  %3368 = vmatprep.subr.mxu0 %v342
  %3369 = vmatpush2.msra.mxu0 %v341
  %3370 = vmatprep.subr.mxu0 %v334
  %3371 = vmatpush2.msra.mxu0 %v333
  %3372 = vmatprep.subr.mxu0 %v326
  %3373 = vmatpush2.msra.mxu0 %v325
  %3374 = vmatprep.subr.mxu0 %v318
  %3375 = vmatpush2.msra.mxu0 %v317
  %3376 = vmatprep.subr.mxu0 %v310
  %3377 = vmatpush2.msra.mxu0 %v309
  %3378 = vmatprep.subr.mxu0 %v302
  %3379 = vmatpush2.msra.mxu0 %v301
  %3380 = vmatprep.subr.mxu0 %v294
  %3381 = vmatpush2.msra.mxu0 %v293
  %3382 = vmatprep.subr.mxu0 %v286
  %3383 = vmatpush2.msra.mxu0 %v285
  %3384 = vmatprep.subr.mxu0 %v278
  %3385 = vmatpush2.msra.mxu0 %v277
  %3386 = vmatprep.subr.mxu0 %v270
  %3387 = vmatpush2.msra.mxu0 %v269
  %3388 = vmatprep.subr.mxu0 %v262
  %3389 = vmatpush2.msra.mxu0 %v261
  %3390 = vmatprep.subr.mxu0 %v254
  %3391 = vmatpush2.msra.mxu0 %v253
  %3392 = vmatprep.subr.mxu0 %v246
  %3393 = vmatpush2.msra.mxu0 %v245
  %3394 = vmatprep.subr.mxu0 %v238
  %3395 = vmatpush2.msra.mxu0 %v237
  %3396 = vmatprep.subr.mxu0 %v230
  %3397 = vmatpush2.msra.mxu0 %v229
  %3398 = vmatprep.subr.mxu0 %v222
  %3399 = vmatpush2.msra.mxu0 %v221
  %3400 = vmatprep.mubr.f32.mxu0 %v3164
  %3401 = vmatmul.mubr.f32.gmra.mxu0 %v3162
  %v3402 = vpop.f32.mrf.mxu0
  %v3403 = vadd.f32 0.0, %v3402
  %v3404 = vpop.f32.mrf.mxu0
  %v3405 = vadd.f32 0.0, %v3404
  %3406 = vdwg.mxu0
  %3407 = vmatprep.subr.mxu0 %v216
  %3408 = vmatpush1.msra.mxu0 %v215
  %3409 = vmatprep.subr.mxu0 %v208
  %3410 = vmatpush1.msra.mxu0 %v207
  %3411 = vmatprep.subr.mxu0 %v200
  %3412 = vmatpush1.msra.mxu0 %v199
  %3413 = vmatprep.subr.mxu0 %v192
  %3414 = vmatpush1.msra.mxu0 %v191
  %3415 = vmatprep.subr.mxu0 %v184
  %3416 = vmatpush1.msra.mxu0 %v183
  %3417 = vmatprep.subr.mxu0 %v176
  %3418 = vmatpush1.msra.mxu0 %v175
  %3419 = vmatprep.subr.mxu0 %v168
  %3420 = vmatpush1.msra.mxu0 %v167
  %3421 = vmatprep.subr.mxu0 %v160
  %3422 = vmatpush1.msra.mxu0 %v159
  %3423 = vmatprep.subr.mxu0 %v152
  %3424 = vmatpush1.msra.mxu0 %v151
  %3425 = vmatprep.subr.mxu0 %v144
  %3426 = vmatpush1.msra.mxu0 %v143
  %3427 = vmatprep.subr.mxu0 %v136
  %3428 = vmatpush1.msra.mxu0 %v135
  %3429 = vmatprep.subr.mxu0 %v128
  %3430 = vmatpush1.msra.mxu0 %v127
  %3431 = vmatprep.subr.mxu0 %v120
  %3432 = vmatpush1.msra.mxu0 %v119
  %3433 = vmatprep.subr.mxu0 %v112
  %3434 = vmatpush1.msra.mxu0 %v111
  %3435 = vmatprep.subr.mxu0 %v104
  %3436 = vmatpush1.msra.mxu0 %v103
  %3437 = vmatprep.subr.mxu0 %v96
  %3438 = vmatpush1.msra.mxu0 %v95
  %3439 = vmatprep.subr.mxu0 %v344
  %3440 = vmatpush2.msra.mxu0 %v343
  %3441 = vmatprep.subr.mxu0 %v336
  %3442 = vmatpush2.msra.mxu0 %v335
  %3443 = vmatprep.subr.mxu0 %v328
  %3444 = vmatpush2.msra.mxu0 %v327
  %3445 = vmatprep.subr.mxu0 %v320
  %3446 = vmatpush2.msra.mxu0 %v319
  %3447 = vmatprep.subr.mxu0 %v312
  %3448 = vmatpush2.msra.mxu0 %v311
  %3449 = vmatprep.subr.mxu0 %v304
  %3450 = vmatpush2.msra.mxu0 %v303
  %3451 = vmatprep.subr.mxu0 %v296
  %3452 = vmatpush2.msra.mxu0 %v295
  %3453 = vmatprep.subr.mxu0 %v288
  %3454 = vmatpush2.msra.mxu0 %v287
  %3455 = vmatprep.subr.mxu0 %v280
  %3456 = vmatpush2.msra.mxu0 %v279
  %3457 = vmatprep.subr.mxu0 %v272
  %3458 = vmatpush2.msra.mxu0 %v271
  %3459 = vmatprep.subr.mxu0 %v264
  %3460 = vmatpush2.msra.mxu0 %v263
  %3461 = vmatprep.subr.mxu0 %v256
  %3462 = vmatpush2.msra.mxu0 %v255
  %3463 = vmatprep.subr.mxu0 %v248
  %3464 = vmatpush2.msra.mxu0 %v247
  %3465 = vmatprep.subr.mxu0 %v240
  %3466 = vmatpush2.msra.mxu0 %v239
  %3467 = vmatprep.subr.mxu0 %v232
  %3468 = vmatpush2.msra.mxu0 %v231
  %3469 = vmatprep.subr.mxu0 %v224
  %3470 = vmatpush2.msra.mxu0 %v223
  %3471 = vmatprep.mubr.f32.mxu0 %v3164
  %3472 = vmatmul.mubr.f32.gmra.mxu0 %v3162
  %v3473 = vpop.f32.mrf.mxu0
  %v3474 = vadd.f32 0.0, %v3473
  %v3475 = vpop.f32.mrf.mxu0
  %v3476 = vadd.f32 0.0, %v3475
  %3477 = vdwg.mxu0
  %3478 = vmatprep.subr.mxu0 %v218
  %3479 = vmatpush1.msra.mxu0 %v217
  %3480 = vmatprep.subr.mxu0 %v210
  %3481 = vmatpush1.msra.mxu0 %v209
  %3482 = vmatprep.subr.mxu0 %v202
  %3483 = vmatpush1.msra.mxu0 %v201
  %3484 = vmatprep.subr.mxu0 %v194
  %3485 = vmatpush1.msra.mxu0 %v193
  %3486 = vmatprep.subr.mxu0 %v186
  %3487 = vmatpush1.msra.mxu0 %v185
  %3488 = vmatprep.subr.mxu0 %v178
  %3489 = vmatpush1.msra.mxu0 %v177
  %3490 = vmatprep.subr.mxu0 %v170
  %3491 = vmatpush1.msra.mxu0 %v169
  %3492 = vmatprep.subr.mxu0 %v162
  %3493 = vmatpush1.msra.mxu0 %v161
  %3494 = vmatprep.subr.mxu0 %v154
  %3495 = vmatpush1.msra.mxu0 %v153
  %3496 = vmatprep.subr.mxu0 %v146
  %3497 = vmatpush1.msra.mxu0 %v145
  %3498 = vmatprep.subr.mxu0 %v138
  %3499 = vmatpush1.msra.mxu0 %v137
  %3500 = vmatprep.subr.mxu0 %v130
  %3501 = vmatpush1.msra.mxu0 %v129
  %3502 = vmatprep.subr.mxu0 %v122
  %3503 = vmatpush1.msra.mxu0 %v121
  %3504 = vmatprep.subr.mxu0 %v114
  %3505 = vmatpush1.msra.mxu0 %v113
  %3506 = vmatprep.subr.mxu0 %v106
  %3507 = vmatpush1.msra.mxu0 %v105
  %3508 = vmatprep.subr.mxu0 %v98
  %3509 = vmatpush1.msra.mxu0 %v97
  %3510 = vmatprep.subr.mxu0 %v346
  %3511 = vmatpush2.msra.mxu0 %v345
  %3512 = vmatprep.subr.mxu0 %v338
  %3513 = vmatpush2.msra.mxu0 %v337
  %3514 = vmatprep.subr.mxu0 %v330
  %3515 = vmatpush2.msra.mxu0 %v329
  %3516 = vmatprep.subr.mxu0 %v322
  %3517 = vmatpush2.msra.mxu0 %v321
  %3518 = vmatprep.subr.mxu0 %v314
  %3519 = vmatpush2.msra.mxu0 %v313
  %3520 = vmatprep.subr.mxu0 %v306
  %3521 = vmatpush2.msra.mxu0 %v305
  %3522 = vmatprep.subr.mxu0 %v298
  %3523 = vmatpush2.msra.mxu0 %v297
  %3524 = vmatprep.subr.mxu0 %v290
  %3525 = vmatpush2.msra.mxu0 %v289
  %3526 = vmatprep.subr.mxu0 %v282
  %3527 = vmatpush2.msra.mxu0 %v281
  %3528 = vmatprep.subr.mxu0 %v274
  %3529 = vmatpush2.msra.mxu0 %v273
  %3530 = vmatprep.subr.mxu0 %v266
  %3531 = vmatpush2.msra.mxu0 %v265
  %3532 = vmatprep.subr.mxu0 %v258
  %3533 = vmatpush2.msra.mxu0 %v257
  %3534 = vmatprep.subr.mxu0 %v250
  %3535 = vmatpush2.msra.mxu0 %v249
  %3536 = vmatprep.subr.mxu0 %v242
  %3537 = vmatpush2.msra.mxu0 %v241
  %3538 = vmatprep.subr.mxu0 %v234
  %3539 = vmatpush2.msra.mxu0 %v233
  %3540 = vmatprep.subr.mxu0 %v226
  %3541 = vmatpush2.msra.mxu0 %v225
  %3542 = vmatprep.mubr.f32.mxu0 %v3164
  %3543 = vmatmul.mubr.f32.gmra.mxu0 %v3162
  %v3544 = vpop.f32.mrf.mxu0
  %v3545 = vadd.f32 0.0, %v3544
  %v3546 = vpop.f32.mrf.mxu0
  %v3547 = vadd.f32 0.0, %v3546
  %3548 = vdwg.mxu0
  %s3549 = scalar_lea.vmem %s20, 32
  %v3550 = vld [vmem:[%s3549] sm:$0xff]
  %v3551 = vld [vmem:[%s3549 + $0x8] sm:$0xff]
  %v3552 = vld [vmem:[%s3549 + $0x10] sm:$0xff]
  %v3553 = vld [vmem:[%s3549 + $0x18] sm:$0xff]
  %v3555 = vsel %vm2079, %v3550, 0
  %v3558 = vsel %vm2079, %v3551, 0
  %v3561 = vsel %vm2079, %v3552, 0
  %v3564 = vsel %vm2079, %v3553, 0
  %3566 = vmatprep.subr.mxu0 0.0
  %3567 = vmatpush1.msra.mxu0 0.0
  %3568 = vmatprep.subr.mxu0 0.0
  %3569 = vmatpush1.msra.mxu0 0.0
  %3570 = vmatprep.subr.mxu0 0.0
  %3571 = vmatpush1.msra.mxu0 0.0
  %3572 = vmatprep.subr.mxu0 0.0
  %3573 = vmatpush1.msra.mxu0 0.0
  %3574 = vmatprep.subr.mxu0 0.0
  %3575 = vmatpush1.msra.mxu0 0.0
  %3576 = vmatprep.subr.mxu0 0.0
  %3577 = vmatpush1.msra.mxu0 0.0
  %3578 = vmatprep.subr.mxu0 0.0
  %3579 = vmatpush1.msra.mxu0 0.0
  %3580 = vmatprep.subr.mxu0 0.0
  %3581 = vmatpush1.msra.mxu0 0.0
  %3582 = vmatprep.subr.mxu0 0.0
  %3583 = vmatpush1.msra.mxu0 0.0
  %3584 = vmatprep.subr.mxu0 0.0
  %3585 = vmatpush1.msra.mxu0 0.0
  %3586 = vmatprep.subr.mxu0 0.0
  %3587 = vmatpush1.msra.mxu0 0.0
  %3588 = vmatprep.subr.mxu0 0.0
  %3589 = vmatpush1.msra.mxu0 0.0
  %3590 = vmatprep.subr.mxu0 0.0
  %3591 = vmatpush1.msra.mxu0 0.0
  %3592 = vmatprep.subr.mxu0 0.0
  %3593 = vmatpush1.msra.mxu0 0.0
  %3594 = vmatprep.subr.mxu0 %v83
  %3595 = vmatpush1.msra.mxu0 %v82
  %3596 = vmatprep.subr.mxu0 %v3334
  %3597 = vmatpush1.msra.mxu0 %v3332
  %3598 = vmatprep.subr.mxu0 0.0
  %3599 = vmatpush2.msra.mxu0 0.0
  %3600 = vmatprep.subr.mxu0 0.0
  %3601 = vmatpush2.msra.mxu0 0.0
  %3602 = vmatprep.subr.mxu0 0.0
  %3603 = vmatpush2.msra.mxu0 0.0
  %3604 = vmatprep.subr.mxu0 0.0
  %3605 = vmatpush2.msra.mxu0 0.0
  %3606 = vmatprep.subr.mxu0 0.0
  %3607 = vmatpush2.msra.mxu0 0.0
  %3608 = vmatprep.subr.mxu0 0.0
  %3609 = vmatpush2.msra.mxu0 0.0
  %3610 = vmatprep.subr.mxu0 0.0
  %3611 = vmatpush2.msra.mxu0 0.0
  %3612 = vmatprep.subr.mxu0 0.0
  %3613 = vmatpush2.msra.mxu0 0.0
  %3614 = vmatprep.subr.mxu0 0.0
  %3615 = vmatpush2.msra.mxu0 0.0
  %3616 = vmatprep.subr.mxu0 0.0
  %3617 = vmatpush2.msra.mxu0 0.0
  %3618 = vmatprep.subr.mxu0 0.0
  %3619 = vmatpush2.msra.mxu0 0.0
  %3620 = vmatprep.subr.mxu0 0.0
  %3621 = vmatpush2.msra.mxu0 0.0
  %3622 = vmatprep.subr.mxu0 0.0
  %3623 = vmatpush2.msra.mxu0 0.0
  %3624 = vmatprep.subr.mxu0 0.0
  %3625 = vmatpush2.msra.mxu0 0.0
  %3626 = vmatprep.subr.mxu0 0.0
  %3627 = vmatpush2.msra.mxu0 0.0
  %3628 = vmatprep.subr.mxu0 0.0
  %3629 = vmatpush2.msra.mxu0 0.0
  %3630 = vmatprep.mubr.f32.mxu0 0.0
  %3631 = vmatmul.mubr.f32.gmra.mxu0 %v3555
  %v3632 = vpop.f32.mrf.mxu0
  %v3633 = vadd.f32 0.0, %v3632
  %v3634 = vpop.f32.mrf.mxu0
  %v3635 = vadd.f32 0.0, %v3634
  %3636 = vmatprep.mubr.f32.mxu0 0.0
  %3637 = vmatmul.mubr.f32.gmra.mxu0 %v3558
  %v3638 = vpop.f32.mrf.mxu0
  %v3639 = vadd.f32 0.0, %v3638
  %v3640 = vpop.f32.mrf.mxu0
  %v3641 = vadd.f32 0.0, %v3640
  %3642 = vmatprep.mubr.f32.mxu0 0.0
  %3643 = vmatmul.mubr.f32.gmra.mxu0 %v3561
  %v3644 = vpop.f32.mrf.mxu0
  %v3645 = vadd.f32 0.0, %v3644
  %v3646 = vpop.f32.mrf.mxu0
  %v3647 = vadd.f32 0.0, %v3646
  %3648 = vmatprep.mubr.f32.mxu0 0.0
  %3649 = vmatmul.mubr.f32.gmra.mxu0 %v3564
  %v3650 = vpop.f32.mrf.mxu0
  %v3651 = vadd.f32 0.0, %v3650
  %v3652 = vpop.f32.mrf.mxu0
  %v3653 = vadd.f32 0.0, %v3652
  %3654 = vdwg.mxu0
  %3655 = vmatprep.subr.mxu0 0.0
  %3656 = vmatpush1.msra.mxu0 0.0
  %3657 = vmatprep.subr.mxu0 0.0
  %3658 = vmatpush1.msra.mxu0 0.0
  %3659 = vmatprep.subr.mxu0 0.0
  %3660 = vmatpush1.msra.mxu0 0.0
  %3661 = vmatprep.subr.mxu0 0.0
  %3662 = vmatpush1.msra.mxu0 0.0
  %3663 = vmatprep.subr.mxu0 0.0
  %3664 = vmatpush1.msra.mxu0 0.0
  %3665 = vmatprep.subr.mxu0 0.0
  %3666 = vmatpush1.msra.mxu0 0.0
  %3667 = vmatprep.subr.mxu0 0.0
  %3668 = vmatpush1.msra.mxu0 0.0
  %3669 = vmatprep.subr.mxu0 0.0
  %3670 = vmatpush1.msra.mxu0 0.0
  %3671 = vmatprep.subr.mxu0 0.0
  %3672 = vmatpush1.msra.mxu0 0.0
  %3673 = vmatprep.subr.mxu0 0.0
  %3674 = vmatpush1.msra.mxu0 0.0
  %3675 = vmatprep.subr.mxu0 0.0
  %3676 = vmatpush1.msra.mxu0 0.0
  %3677 = vmatprep.subr.mxu0 0.0
  %3678 = vmatpush1.msra.mxu0 0.0
  %3679 = vmatprep.subr.mxu0 0.0
  %3680 = vmatpush1.msra.mxu0 0.0
  %3681 = vmatprep.subr.mxu0 0.0
  %3682 = vmatpush1.msra.mxu0 0.0
  %3683 = vmatprep.subr.mxu0 %v85
  %3684 = vmatpush1.msra.mxu0 %v84
  %3685 = vmatprep.subr.mxu0 %v3405
  %3686 = vmatpush1.msra.mxu0 %v3403
  %3687 = vmatprep.subr.mxu0 0.0
  %3688 = vmatpush2.msra.mxu0 0.0
  %3689 = vmatprep.subr.mxu0 0.0
  %3690 = vmatpush2.msra.mxu0 0.0
  %3691 = vmatprep.subr.mxu0 0.0
  %3692 = vmatpush2.msra.mxu0 0.0
  %3693 = vmatprep.subr.mxu0 0.0
  %3694 = vmatpush2.msra.mxu0 0.0
  %3695 = vmatprep.subr.mxu0 0.0
  %3696 = vmatpush2.msra.mxu0 0.0
  %3697 = vmatprep.subr.mxu0 0.0
  %3698 = vmatpush2.msra.mxu0 0.0
  %3699 = vmatprep.subr.mxu0 0.0
  %3700 = vmatpush2.msra.mxu0 0.0
  %3701 = vmatprep.subr.mxu0 0.0
  %3702 = vmatpush2.msra.mxu0 0.0
  %3703 = vmatprep.subr.mxu0 0.0
  %3704 = vmatpush2.msra.mxu0 0.0
  %3705 = vmatprep.subr.mxu0 0.0
  %3706 = vmatpush2.msra.mxu0 0.0
  %3707 = vmatprep.subr.mxu0 0.0
  %3708 = vmatpush2.msra.mxu0 0.0
  %3709 = vmatprep.subr.mxu0 0.0
  %3710 = vmatpush2.msra.mxu0 0.0
  %3711 = vmatprep.subr.mxu0 0.0
  %3712 = vmatpush2.msra.mxu0 0.0
  %3713 = vmatprep.subr.mxu0 0.0
  %3714 = vmatpush2.msra.mxu0 0.0
  %3715 = vmatprep.subr.mxu0 0.0
  %3716 = vmatpush2.msra.mxu0 0.0
  %3717 = vmatprep.subr.mxu0 0.0
  %3718 = vmatpush2.msra.mxu0 0.0
  %3719 = vmatprep.mubr.f32.mxu0 0.0
  %3720 = vmatmul.mubr.f32.gmra.mxu0 %v3555
  %v3721 = vpop.f32.mrf.mxu0
  %v3722 = vadd.f32 0.0, %v3721
  %v3723 = vpop.f32.mrf.mxu0
  %v3724 = vadd.f32 0.0, %v3723
  %3725 = vmatprep.mubr.f32.mxu0 0.0
  %3726 = vmatmul.mubr.f32.gmra.mxu0 %v3558
  %v3727 = vpop.f32.mrf.mxu0
  %v3728 = vadd.f32 0.0, %v3727
  %v3729 = vpop.f32.mrf.mxu0
  %v3730 = vadd.f32 0.0, %v3729
  %3731 = vmatprep.mubr.f32.mxu0 0.0
  %3732 = vmatmul.mubr.f32.gmra.mxu0 %v3561
  %v3733 = vpop.f32.mrf.mxu0
  %v3734 = vadd.f32 0.0, %v3733
  %v3735 = vpop.f32.mrf.mxu0
  %v3736 = vadd.f32 0.0, %v3735
  %3737 = vmatprep.mubr.f32.mxu0 0.0
  %3738 = vmatmul.mubr.f32.gmra.mxu0 %v3564
  %v3739 = vpop.f32.mrf.mxu0
  %v3740 = vadd.f32 0.0, %v3739
  %v3741 = vpop.f32.mrf.mxu0
  %v3742 = vadd.f32 0.0, %v3741
  %3743 = vdwg.mxu0
  %3744 = vmatprep.subr.mxu0 0.0
  %3745 = vmatpush1.msra.mxu0 0.0
  %3746 = vmatprep.subr.mxu0 0.0
  %3747 = vmatpush1.msra.mxu0 0.0
  %3748 = vmatprep.subr.mxu0 0.0
  %3749 = vmatpush1.msra.mxu0 0.0
  %3750 = vmatprep.subr.mxu0 0.0
  %3751 = vmatpush1.msra.mxu0 0.0
  %3752 = vmatprep.subr.mxu0 0.0
  %3753 = vmatpush1.msra.mxu0 0.0
  %3754 = vmatprep.subr.mxu0 0.0
  %3755 = vmatpush1.msra.mxu0 0.0
  %3756 = vmatprep.subr.mxu0 0.0
  %3757 = vmatpush1.msra.mxu0 0.0
  %3758 = vmatprep.subr.mxu0 0.0
  %3759 = vmatpush1.msra.mxu0 0.0
  %3760 = vmatprep.subr.mxu0 0.0
  %3761 = vmatpush1.msra.mxu0 0.0
  %3762 = vmatprep.subr.mxu0 0.0
  %3763 = vmatpush1.msra.mxu0 0.0
  %3764 = vmatprep.subr.mxu0 0.0
  %3765 = vmatpush1.msra.mxu0 0.0
  %3766 = vmatprep.subr.mxu0 0.0
  %3767 = vmatpush1.msra.mxu0 0.0
  %3768 = vmatprep.subr.mxu0 0.0
  %3769 = vmatpush1.msra.mxu0 0.0
  %3770 = vmatprep.subr.mxu0 0.0
  %3771 = vmatpush1.msra.mxu0 0.0
  %3772 = vmatprep.subr.mxu0 %v87
  %3773 = vmatpush1.msra.mxu0 %v86
  %3774 = vmatprep.subr.mxu0 %v3476
  %3775 = vmatpush1.msra.mxu0 %v3474
  %3776 = vmatprep.subr.mxu0 0.0
  %3777 = vmatpush2.msra.mxu0 0.0
  %3778 = vmatprep.subr.mxu0 0.0
  %3779 = vmatpush2.msra.mxu0 0.0
  %3780 = vmatprep.subr.mxu0 0.0
  %3781 = vmatpush2.msra.mxu0 0.0
  %3782 = vmatprep.subr.mxu0 0.0
  %3783 = vmatpush2.msra.mxu0 0.0
  %3784 = vmatprep.subr.mxu0 0.0
  %3785 = vmatpush2.msra.mxu0 0.0
  %3786 = vmatprep.subr.mxu0 0.0
  %3787 = vmatpush2.msra.mxu0 0.0
  %3788 = vmatprep.subr.mxu0 0.0
  %3789 = vmatpush2.msra.mxu0 0.0
  %3790 = vmatprep.subr.mxu0 0.0
  %3791 = vmatpush2.msra.mxu0 0.0
  %3792 = vmatprep.subr.mxu0 0.0
  %3793 = vmatpush2.msra.mxu0 0.0
  %3794 = vmatprep.subr.mxu0 0.0
  %3795 = vmatpush2.msra.mxu0 0.0
  %3796 = vmatprep.subr.mxu0 0.0
  %3797 = vmatpush2.msra.mxu0 0.0
  %3798 = vmatprep.subr.mxu0 0.0
  %3799 = vmatpush2.msra.mxu0 0.0
  %3800 = vmatprep.subr.mxu0 0.0
  %3801 = vmatpush2.msra.mxu0 0.0
  %3802 = vmatprep.subr.mxu0 0.0
  %3803 = vmatpush2.msra.mxu0 0.0
  %3804 = vmatprep.subr.mxu0 0.0
  %3805 = vmatpush2.msra.mxu0 0.0
  %3806 = vmatprep.subr.mxu0 0.0
  %3807 = vmatpush2.msra.mxu0 0.0
  %3808 = vmatprep.mubr.f32.mxu0 0.0
  %3809 = vmatmul.mubr.f32.gmra.mxu0 %v3555
  %v3810 = vpop.f32.mrf.mxu0
  %v3811 = vadd.f32 0.0, %v3810
  %v3812 = vpop.f32.mrf.mxu0
  %v3813 = vadd.f32 0.0, %v3812
  %3814 = vmatprep.mubr.f32.mxu0 0.0
  %3815 = vmatmul.mubr.f32.gmra.mxu0 %v3558
  %v3816 = vpop.f32.mrf.mxu0
  %v3817 = vadd.f32 0.0, %v3816
  %v3818 = vpop.f32.mrf.mxu0
  %v3819 = vadd.f32 0.0, %v3818
  %3820 = vmatprep.mubr.f32.mxu0 0.0
  %3821 = vmatmul.mubr.f32.gmra.mxu0 %v3561
  %v3822 = vpop.f32.mrf.mxu0
  %v3823 = vadd.f32 0.0, %v3822
  %v3824 = vpop.f32.mrf.mxu0
  %v3825 = vadd.f32 0.0, %v3824
  %3826 = vmatprep.mubr.f32.mxu0 0.0
  %3827 = vmatmul.mubr.f32.gmra.mxu0 %v3564
  %v3828 = vpop.f32.mrf.mxu0
  %v3829 = vadd.f32 0.0, %v3828
  %v3830 = vpop.f32.mrf.mxu0
  %v3831 = vadd.f32 0.0, %v3830
  %3832 = vdwg.mxu0
  %3833 = vmatprep.subr.mxu0 0.0
  %3834 = vmatpush1.msra.mxu0 0.0
  %3835 = vmatprep.subr.mxu0 0.0
  %3836 = vmatpush1.msra.mxu0 0.0
  %3837 = vmatprep.subr.mxu0 0.0
  %3838 = vmatpush1.msra.mxu0 0.0
  %3839 = vmatprep.subr.mxu0 0.0
  %3840 = vmatpush1.msra.mxu0 0.0
  %3841 = vmatprep.subr.mxu0 0.0
  %3842 = vmatpush1.msra.mxu0 0.0
  %3843 = vmatprep.subr.mxu0 0.0
  %3844 = vmatpush1.msra.mxu0 0.0
  %3845 = vmatprep.subr.mxu0 0.0
  %3846 = vmatpush1.msra.mxu0 0.0
  %3847 = vmatprep.subr.mxu0 0.0
  %3848 = vmatpush1.msra.mxu0 0.0
  %3849 = vmatprep.subr.mxu0 0.0
  %3850 = vmatpush1.msra.mxu0 0.0
  %3851 = vmatprep.subr.mxu0 0.0
  %3852 = vmatpush1.msra.mxu0 0.0
  %3853 = vmatprep.subr.mxu0 0.0
  %3854 = vmatpush1.msra.mxu0 0.0
  %3855 = vmatprep.subr.mxu0 0.0
  %3856 = vmatpush1.msra.mxu0 0.0
  %3857 = vmatprep.subr.mxu0 0.0
  %3858 = vmatpush1.msra.mxu0 0.0
  %3859 = vmatprep.subr.mxu0 0.0
  %3860 = vmatpush1.msra.mxu0 0.0
  %3861 = vmatprep.subr.mxu0 %v89
  %3862 = vmatpush1.msra.mxu0 %v88
  %3863 = vmatprep.subr.mxu0 %v3547
  %3864 = vmatpush1.msra.mxu0 %v3545
  %3865 = vmatprep.subr.mxu0 0.0
  %3866 = vmatpush2.msra.mxu0 0.0
  %3867 = vmatprep.subr.mxu0 0.0
  %3868 = vmatpush2.msra.mxu0 0.0
  %3869 = vmatprep.subr.mxu0 0.0
  %3870 = vmatpush2.msra.mxu0 0.0
  %3871 = vmatprep.subr.mxu0 0.0
  %3872 = vmatpush2.msra.mxu0 0.0
  %3873 = vmatprep.subr.mxu0 0.0
  %3874 = vmatpush2.msra.mxu0 0.0
  %3875 = vmatprep.subr.mxu0 0.0
  %3876 = vmatpush2.msra.mxu0 0.0
  %3877 = vmatprep.subr.mxu0 0.0
  %3878 = vmatpush2.msra.mxu0 0.0
  %3879 = vmatprep.subr.mxu0 0.0
  %3880 = vmatpush2.msra.mxu0 0.0
  %3881 = vmatprep.subr.mxu0 0.0
  %3882 = vmatpush2.msra.mxu0 0.0
  %3883 = vmatprep.subr.mxu0 0.0
  %3884 = vmatpush2.msra.mxu0 0.0
  %3885 = vmatprep.subr.mxu0 0.0
  %3886 = vmatpush2.msra.mxu0 0.0
  %3887 = vmatprep.subr.mxu0 0.0
  %3888 = vmatpush2.msra.mxu0 0.0
  %3889 = vmatprep.subr.mxu0 0.0
  %3890 = vmatpush2.msra.mxu0 0.0
  %3891 = vmatprep.subr.mxu0 0.0
  %3892 = vmatpush2.msra.mxu0 0.0
  %3893 = vmatprep.subr.mxu0 0.0
  %3894 = vmatpush2.msra.mxu0 0.0
  %3895 = vmatprep.subr.mxu0 0.0
  %3896 = vmatpush2.msra.mxu0 0.0
  %3897 = vmatprep.mubr.f32.mxu0 0.0
  %3898 = vmatmul.mubr.f32.gmra.mxu0 %v3555
  %v3899 = vpop.f32.mrf.mxu0
  %v3900 = vadd.f32 0.0, %v3899
  %v3901 = vpop.f32.mrf.mxu0
  %v3902 = vadd.f32 0.0, %v3901
  %3903 = vmatprep.mubr.f32.mxu0 0.0
  %3904 = vmatmul.mubr.f32.gmra.mxu0 %v3558
  %v3905 = vpop.f32.mrf.mxu0
  %v3906 = vadd.f32 0.0, %v3905
  %v3907 = vpop.f32.mrf.mxu0
  %v3908 = vadd.f32 0.0, %v3907
  %3909 = vmatprep.mubr.f32.mxu0 0.0
  %3910 = vmatmul.mubr.f32.gmra.mxu0 %v3561
  %v3911 = vpop.f32.mrf.mxu0
  %v3912 = vadd.f32 0.0, %v3911
  %v3913 = vpop.f32.mrf.mxu0
  %v3914 = vadd.f32 0.0, %v3913
  %3915 = vmatprep.mubr.f32.mxu0 0.0
  %3916 = vmatmul.mubr.f32.gmra.mxu0 %v3564
  %v3917 = vpop.f32.mrf.mxu0
  %v3918 = vadd.f32 0.0, %v3917
  %v3919 = vpop.f32.mrf.mxu0
  %v3920 = vadd.f32 0.0, %v3919
  %3921 = vdwg.mxu0
  %s3922 = scalar_lea.vmem %s21, 32
  %v3923 = vld [vmem:[%s3922] sm:$0xff]
  %v3924 = vld [vmem:[%s3922 + $0x8] sm:$0xff]
  %v3925 = vld [vmem:[%s3922 + $0x10] sm:$0xff]
  %v3926 = vld [vmem:[%s3922 + $0x18] sm:$0xff]
  %s3927 = scalar_lea.vmem %s22, 32
  %v3928 = vld [vmem:[%s3927] sm:$0xff]
  %v3929 = vld [vmem:[%s3927 + $0x8] sm:$0xff]
  %v3930 = vld [vmem:[%s3927 + $0x10] sm:$0xff]
  %v3931 = vld [vmem:[%s3927 + $0x18] sm:$0xff]
  %3933 = vset.pattern.permute.xlu0 0
  %3934 = vperm.xlu0 %3933, %v3928
  %v3935 = vpop.permute.xlu0 %3934
  %3938 = vset.pattern.permute.xlu0 0
  %3939 = vperm.xlu0 %3938, %v3929
  %v3940 = vpop.permute.xlu0 %3939
  %3943 = vset.pattern.permute.xlu0 0
  %3944 = vperm.xlu0 %3943, %v3930
  %v3945 = vpop.permute.xlu0 %3944
  %3948 = vset.pattern.permute.xlu0 0
  %3949 = vperm.xlu0 %3948, %v3931
  %v3950 = vpop.permute.xlu0 %3949
  %v3953 = vsel %vm355, %v3923, 0
  %v3956 = vsel %vm355, %v3924, 0
  %v3959 = vsel %vm355, %v3925, 0
  %v3962 = vsel %vm355, %v3926, 0
  %3964 = vmatprep.subr.mxu0 0.0
  %3965 = vmatpush1.msra.mxu0 0.0
  %3966 = vmatprep.subr.mxu0 0.0
  %3967 = vmatpush1.msra.mxu0 0.0
  %3968 = vmatprep.subr.mxu0 0.0
  %3969 = vmatpush1.msra.mxu0 0.0
  %3970 = vmatprep.subr.mxu0 0.0
  %3971 = vmatpush1.msra.mxu0 0.0
  %3972 = vmatprep.subr.mxu0 0.0
  %3973 = vmatpush1.msra.mxu0 0.0
  %3974 = vmatprep.subr.mxu0 0.0
  %3975 = vmatpush1.msra.mxu0 0.0
  %3976 = vmatprep.subr.mxu0 0.0
  %3977 = vmatpush1.msra.mxu0 0.0
  %3978 = vmatprep.subr.mxu0 0.0
  %3979 = vmatpush1.msra.mxu0 0.0
  %3980 = vmatprep.subr.mxu0 0.0
  %3981 = vmatpush1.msra.mxu0 0.0
  %3982 = vmatprep.subr.mxu0 0.0
  %3983 = vmatpush1.msra.mxu0 0.0
  %3984 = vmatprep.subr.mxu0 0.0
  %3985 = vmatpush1.msra.mxu0 0.0
  %3986 = vmatprep.subr.mxu0 0.0
  %3987 = vmatpush1.msra.mxu0 0.0
  %3988 = vmatprep.subr.mxu0 0.0
  %3989 = vmatpush1.msra.mxu0 0.0
  %3990 = vmatprep.subr.mxu0 0.0
  %3991 = vmatpush1.msra.mxu0 0.0
  %3992 = vmatprep.subr.mxu0 0.0
  %3993 = vmatpush1.msra.mxu0 0.0
  %3994 = vmatprep.subr.mxu0 %v1689
  %3995 = vmatpush1.msra.mxu0 %v1586
  %3996 = vmatprep.subr.mxu0 0.0
  %3997 = vmatpush2.msra.mxu0 0.0
  %3998 = vmatprep.subr.mxu0 0.0
  %3999 = vmatpush2.msra.mxu0 0.0
  %4000 = vmatprep.subr.mxu0 0.0
  %4001 = vmatpush2.msra.mxu0 0.0
  %4002 = vmatprep.subr.mxu0 0.0
  %4003 = vmatpush2.msra.mxu0 0.0
  %4004 = vmatprep.subr.mxu0 0.0
  %4005 = vmatpush2.msra.mxu0 0.0
  %4006 = vmatprep.subr.mxu0 0.0
  %4007 = vmatpush2.msra.mxu0 0.0
  %4008 = vmatprep.subr.mxu0 0.0
  %4009 = vmatpush2.msra.mxu0 0.0
  %4010 = vmatprep.subr.mxu0 0.0
  %4011 = vmatpush2.msra.mxu0 0.0
  %4012 = vmatprep.subr.mxu0 0.0
  %4013 = vmatpush2.msra.mxu0 0.0
  %4014 = vmatprep.subr.mxu0 0.0
  %4015 = vmatpush2.msra.mxu0 0.0
  %4016 = vmatprep.subr.mxu0 0.0
  %4017 = vmatpush2.msra.mxu0 0.0
  %4018 = vmatprep.subr.mxu0 0.0
  %4019 = vmatpush2.msra.mxu0 0.0
  %4020 = vmatprep.subr.mxu0 0.0
  %4021 = vmatpush2.msra.mxu0 0.0
  %4022 = vmatprep.subr.mxu0 0.0
  %4023 = vmatpush2.msra.mxu0 0.0
  %4024 = vmatprep.subr.mxu0 0.0
  %4025 = vmatpush2.msra.mxu0 0.0
  %4026 = vmatprep.subr.mxu0 0.0
  %4027 = vmatpush2.msra.mxu0 0.0
  %4028 = vmatprep.mubr.f32.mxu0 0.0
  %4029 = vmatmul.mubr.f32.gmra.mxu0 %v3953
  %v4030 = vpop.f32.mrf.mxu0
  %v4031 = vadd.f32 %v3935, %v4030
  %v4032 = vpop.f32.mrf.mxu0
  %v4033 = vadd.f32 %v3935, %v4032
  %4034 = vmatprep.mubr.f32.mxu0 0.0
  %4035 = vmatmul.mubr.f32.gmra.mxu0 %v3956
  %v4036 = vpop.f32.mrf.mxu0
  %v4037 = vadd.f32 %v3940, %v4036
  %v4038 = vpop.f32.mrf.mxu0
  %v4039 = vadd.f32 %v3940, %v4038
  %4040 = vmatprep.mubr.f32.mxu0 0.0
  %4041 = vmatmul.mubr.f32.gmra.mxu0 %v3959
  %v4042 = vpop.f32.mrf.mxu0
  %v4043 = vadd.f32 %v3945, %v4042
  %v4044 = vpop.f32.mrf.mxu0
  %v4045 = vadd.f32 %v3945, %v4044
  %4046 = vmatprep.mubr.f32.mxu0 0.0
  %4047 = vmatmul.mubr.f32.gmra.mxu0 %v3962
  %v4048 = vpop.f32.mrf.mxu0
  %v4049 = vadd.f32 %v3950, %v4048
  %v4050 = vpop.f32.mrf.mxu0
  %v4051 = vadd.f32 %v3950, %v4050
  %4052 = vdwg.mxu0
  %v4053 = vmul.f32 %v3255, %v4031
  %v4054 = vmul.f32 %v3257, %v4033
  %v4055 = vmul.f32 %v3261, %v4037
  %v4056 = vmul.f32 %v3263, %v4039
  %v4057 = vrot.slane %v4053, 4
  %v4058 = vadd.f32 %v4053, %v4057
  %v4059 = vrot.slane %v4058, 2
  %v4060 = vadd.f32 %v4058, %v4059
  %v4061 = vrot.slane %v4060, 1
  %v4062 = vadd.f32 %v4060, %v4061
  %v4063 = vrot.slane %v4054, 4
  %v4064 = vadd.f32 %v4054, %v4063
  %v4065 = vrot.slane %v4064, 2
  %v4066 = vadd.f32 %v4064, %v4065
  %v4067 = vrot.slane %v4066, 1
  %v4068 = vadd.f32 %v4066, %v4067
  %v4069 = vrot.slane %v4055, 4
  %v4070 = vadd.f32 %v4055, %v4069
  %v4071 = vrot.slane %v4070, 2
  %v4072 = vadd.f32 %v4070, %v4071
  %v4073 = vrot.slane %v4072, 1
  %v4074 = vadd.f32 %v4072, %v4073
  %v4075 = vrot.slane %v4056, 4
  %v4076 = vadd.f32 %v4056, %v4075
  %v4077 = vrot.slane %v4076, 2
  %v4078 = vadd.f32 %v4076, %v4077
  %v4079 = vrot.slane %v4078, 1
  %v4080 = vadd.f32 %v4078, %v4079
  %v4081 = vsel %vm2605, %v4062, %v4074
  %v4082 = vsel %vm2605, %v4068, %v4080
  %v4083 = vmul.f32 %v3255, %v3633
  %v4084 = vmul.f32 %v3257, %v3635
  %v4085 = vmul.f32 %v3261, %v3639
  %v4086 = vmul.f32 %v3263, %v3641
  %v4087 = vrot.slane %v4083, 4
  %v4088 = vadd.f32 %v4083, %v4087
  %v4089 = vrot.slane %v4088, 2
  %v4090 = vadd.f32 %v4088, %v4089
  %v4091 = vrot.slane %v4090, 1
  %v4092 = vadd.f32 %v4090, %v4091
  %v4093 = vrot.slane %v4084, 4
  %v4094 = vadd.f32 %v4084, %v4093
  %v4095 = vrot.slane %v4094, 2
  %v4096 = vadd.f32 %v4094, %v4095
  %v4097 = vrot.slane %v4096, 1
  %v4098 = vadd.f32 %v4096, %v4097
  %v4099 = vrot.slane %v4085, 4
  %v4100 = vadd.f32 %v4085, %v4099
  %v4101 = vrot.slane %v4100, 2
  %v4102 = vadd.f32 %v4100, %v4101
  %v4103 = vrot.slane %v4102, 1
  %v4104 = vadd.f32 %v4102, %v4103
  %v4105 = vrot.slane %v4086, 4
  %v4106 = vadd.f32 %v4086, %v4105
  %v4107 = vrot.slane %v4106, 2
  %v4108 = vadd.f32 %v4106, %v4107
  %v4109 = vrot.slane %v4108, 1
  %v4110 = vadd.f32 %v4108, %v4109
  %v4111 = vsel %vm2605, %v4092, %v4104
  %v4112 = vsel %vm2605, %v4098, %v4110
  %v4113 = vadd.f32 %v4111, %v4081
  %v4114 = vadd.f32 %v4112, %v4082
  %v4115 = vmul.f32 %v4113, 0.35355338
  %v4116 = vmul.f32 %v4114, 0.35355338
  %v4117 = vadd.f32 %v4115, %v2656
  %v4118 = vadd.f32 %v4116, %v2660
  %v4119 = vmul.f32 %v3255, %v3722
  %v4120 = vmul.f32 %v3257, %v3724
  %v4121 = vmul.f32 %v3261, %v3728
  %v4122 = vmul.f32 %v3263, %v3730
  %v4123 = vrot.slane %v4119, 4
  %v4124 = vadd.f32 %v4119, %v4123
  %v4125 = vrot.slane %v4124, 2
  %v4126 = vadd.f32 %v4124, %v4125
  %v4127 = vrot.slane %v4126, 1
  %v4128 = vadd.f32 %v4126, %v4127
  %v4129 = vrot.slane %v4120, 4
  %v4130 = vadd.f32 %v4120, %v4129
  %v4131 = vrot.slane %v4130, 2
  %v4132 = vadd.f32 %v4130, %v4131
  %v4133 = vrot.slane %v4132, 1
  %v4134 = vadd.f32 %v4132, %v4133
  %v4135 = vrot.slane %v4121, 4
  %v4136 = vadd.f32 %v4121, %v4135
  %v4137 = vrot.slane %v4136, 2
  %v4138 = vadd.f32 %v4136, %v4137
  %v4139 = vrot.slane %v4138, 1
  %v4140 = vadd.f32 %v4138, %v4139
  %v4141 = vrot.slane %v4122, 4
  %v4142 = vadd.f32 %v4122, %v4141
  %v4143 = vrot.slane %v4142, 2
  %v4144 = vadd.f32 %v4142, %v4143
  %v4145 = vrot.slane %v4144, 1
  %v4146 = vadd.f32 %v4144, %v4145
  %v4147 = vsel %vm2605, %v4128, %v4140
  %v4148 = vsel %vm2605, %v4134, %v4146
  %v4149 = vadd.f32 %v4147, %v4081
  %v4150 = vadd.f32 %v4148, %v4082
  %v4151 = vmul.f32 %v4149, 0.35355338
  %v4152 = vmul.f32 %v4150, 0.35355338
  %v4153 = vadd.f32 %v4151, %v2710
  %v4154 = vadd.f32 %v4152, %v2714
  %v4155 = vmul.f32 %v3255, %v3811
  %v4156 = vmul.f32 %v3257, %v3813
  %v4157 = vmul.f32 %v3261, %v3817
  %v4158 = vmul.f32 %v3263, %v3819
  %v4159 = vrot.slane %v4155, 4
  %v4160 = vadd.f32 %v4155, %v4159
  %v4161 = vrot.slane %v4160, 2
  %v4162 = vadd.f32 %v4160, %v4161
  %v4163 = vrot.slane %v4162, 1
  %v4164 = vadd.f32 %v4162, %v4163
  %v4165 = vrot.slane %v4156, 4
  %v4166 = vadd.f32 %v4156, %v4165
  %v4167 = vrot.slane %v4166, 2
  %v4168 = vadd.f32 %v4166, %v4167
  %v4169 = vrot.slane %v4168, 1
  %v4170 = vadd.f32 %v4168, %v4169
  %v4171 = vrot.slane %v4157, 4
  %v4172 = vadd.f32 %v4157, %v4171
  %v4173 = vrot.slane %v4172, 2
  %v4174 = vadd.f32 %v4172, %v4173
  %v4175 = vrot.slane %v4174, 1
  %v4176 = vadd.f32 %v4174, %v4175
  %v4177 = vrot.slane %v4158, 4
  %v4178 = vadd.f32 %v4158, %v4177
  %v4179 = vrot.slane %v4178, 2
  %v4180 = vadd.f32 %v4178, %v4179
  %v4181 = vrot.slane %v4180, 1
  %v4182 = vadd.f32 %v4180, %v4181
  %v4183 = vsel %vm2605, %v4164, %v4176
  %v4184 = vsel %vm2605, %v4170, %v4182
  %v4185 = vadd.f32 %v4183, %v4081
  %v4186 = vadd.f32 %v4184, %v4082
  %v4187 = vmul.f32 %v4185, 0.35355338
  %v4188 = vmul.f32 %v4186, 0.35355338
  %v4189 = vadd.f32 %v4187, %v2764
  %v4190 = vadd.f32 %v4188, %v2768
  %v4191 = vmul.f32 %v3255, %v3900
  %v4192 = vmul.f32 %v3257, %v3902
  %v4193 = vmul.f32 %v3261, %v3906
  %v4194 = vmul.f32 %v3263, %v3908
  %v4195 = vrot.slane %v4191, 4
  %v4196 = vadd.f32 %v4191, %v4195
  %v4197 = vrot.slane %v4196, 2
  %v4198 = vadd.f32 %v4196, %v4197
  %v4199 = vrot.slane %v4198, 1
  %v4200 = vadd.f32 %v4198, %v4199
  %v4201 = vrot.slane %v4192, 4
  %v4202 = vadd.f32 %v4192, %v4201
  %v4203 = vrot.slane %v4202, 2
  %v4204 = vadd.f32 %v4202, %v4203
  %v4205 = vrot.slane %v4204, 1
  %v4206 = vadd.f32 %v4204, %v4205
  %v4207 = vrot.slane %v4193, 4
  %v4208 = vadd.f32 %v4193, %v4207
  %v4209 = vrot.slane %v4208, 2
  %v4210 = vadd.f32 %v4208, %v4209
  %v4211 = vrot.slane %v4210, 1
  %v4212 = vadd.f32 %v4210, %v4211
  %v4213 = vrot.slane %v4194, 4
  %v4214 = vadd.f32 %v4194, %v4213
  %v4215 = vrot.slane %v4214, 2
  %v4216 = vadd.f32 %v4214, %v4215
  %v4217 = vrot.slane %v4216, 1
  %v4218 = vadd.f32 %v4216, %v4217
  %v4219 = vsel %vm2605, %v4200, %v4212
  %v4220 = vsel %vm2605, %v4206, %v4218
  %v4221 = vadd.f32 %v4219, %v4081
  %v4222 = vadd.f32 %v4220, %v4082
  %v4223 = vmul.f32 %v4221, 0.35355338
  %v4224 = vmul.f32 %v4222, 0.35355338
  %v4225 = vadd.f32 %v4223, %v2818
  %v4226 = vadd.f32 %v4224, %v2822
  %v4227 = vmax.f32 %v4117, %v4153
  %v4228 = vmax.f32 %v4118, %v4154
  %v4229 = vmax.f32 %v4227, %v4189
  %v4230 = vmax.f32 %v4228, %v4190
  %v4231 = vmax.f32 %v4229, %v4225
  %v4232 = vmax.f32 %v4230, %v4226
  %v4233 = vsub.f32 %v4117, %v4231
  %v4234 = vsub.f32 %v4118, %v4232
  %v4235 = vmul.f32 %v4233, 1.442695
  %v4236 = vpow.pop %v4235
  %v4237 = vmul.f32 %v4234, 1.442695
  %v4238 = vpow.pop %v4237
  %v4239 = vsub.f32 %v4153, %v4231
  %v4240 = vsub.f32 %v4154, %v4232
  %v4241 = vmul.f32 %v4239, 1.442695
  %v4242 = vpow.pop %v4241
  %v4243 = vmul.f32 %v4240, 1.442695
  %v4244 = vpow.pop %v4243
  %v4245 = vsub.f32 %v4189, %v4231
  %v4246 = vsub.f32 %v4190, %v4232
  %v4247 = vmul.f32 %v4245, 1.442695
  %v4248 = vpow.pop %v4247
  %v4249 = vmul.f32 %v4246, 1.442695
  %v4250 = vpow.pop %v4249
  %v4251 = vsub.f32 %v4225, %v4231
  %v4252 = vsub.f32 %v4226, %v4232
  %v4253 = vmul.f32 %v4251, 1.442695
  %v4254 = vpow.pop %v4253
  %v4255 = vmul.f32 %v4252, 1.442695
  %v4256 = vpow.pop %v4255
  %v4257 = vadd.f32 %v4236, %v4242
  %v4258 = vadd.f32 %v4238, %v4244
  %v4259 = vadd.f32 %v4257, %v4248
  %v4260 = vadd.f32 %v4258, %v4250
  %v4261 = vadd.f32 %v4259, %v4254
  %v4262 = vadd.f32 %v4260, %v4256
  %v4263 = vrcp.pop %v4261
  %v4264 = vmul.f32 1.0, %v4263
  %v4265 = vrcp.pop %v4262
  %v4266 = vmul.f32 1.0, %v4265
  %v4267 = vmul.f32 %v4236, %v4264
  %v4268 = vmul.f32 %v4238, %v4266
  %v4271 = vcombine.low %v4267, %v4268
  %v4273 = vunpack.c.l.s4 1966171168
  %v4274 = vunpack.c.0.s8 %v4273
  %v4275 = vlaneseq
  %v4276 = vshrl.u32 %v4275, 7
  %v4277 = vsub.s32 %v4274, %v4276
  %v4278 = vrot.slane %v4271, %v4277
  %v4279 = vcombine.high %v4278, %v4278
  %v4281 = vunpack.c.l.s4 1966171168
  %v4282 = vunpack.c.0.s8 %v4281
  %v4283 = vlaneseq
  %v4284 = vshrl.u32 %v4283, 7
  %v4285 = vsub.s32 %v4282, %v4284
  %v4286 = vrot.slane %v4278, %v4285
  %v4288 = vunpack.c.l.s4 1966171168
  %v4289 = vunpack.c.0.s8 %v4288
  %v4290 = vlaneseq
  %v4291 = vshrl.u32 %v4290, 7
  %v4292 = vsub.s32 %v4289, %v4291
  %v4293 = vrot.slane %v4279, %v4292
  %v4294 = vlaneseq
  %v4295 = vshrl.u32 %v4294, 7
  %v4296 = vsub.s32 0, %v4295
  %v4297 = vrot.slane %v4286, %v4296
  %v4298 = vlaneseq
  %v4299 = vshrl.u32 %v4298, 7
  %v4300 = vsub.s32 1, %v4299
  %v4301 = vrot.slane %v4286, %v4300
  %v4302 = vlaneseq
  %v4303 = vshrl.u32 %v4302, 7
  %v4304 = vsub.s32 0, %v4303
  %v4305 = vrot.slane %v4293, %v4304
  %v4306 = vlaneseq
  %v4307 = vshrl.u32 %v4306, 7
  %v4308 = vsub.s32 1, %v4307
  %v4309 = vrot.slane %v4293, %v4308
  %v4314 = vmul.f32 %v4297, %v3645
  %v4315 = vmul.f32 %v4301, %v3647
  %v4316 = vmul.f32 %v4305, %v3651
  %v4317 = vmul.f32 %v4309, %v3653
  %v4318 = vadd.f32 %v4043, %v4314
  %v4319 = vadd.f32 %v4045, %v4315
  %v4320 = vadd.f32 %v4049, %v4316
  %v4321 = vadd.f32 %v4051, %v4317
  %v4322 = vmul.f32 %v4242, %v4264
  %v4323 = vmul.f32 %v4244, %v4266
  %v4326 = vcombine.low %v4322, %v4323
  %v4328 = vunpack.c.l.s4 1966171168
  %v4329 = vunpack.c.0.s8 %v4328
  %v4330 = vlaneseq
  %v4331 = vshrl.u32 %v4330, 7
  %v4332 = vsub.s32 %v4329, %v4331
  %v4333 = vrot.slane %v4326, %v4332
  %v4334 = vcombine.high %v4333, %v4333
  %v4336 = vunpack.c.l.s4 1966171168
  %v4337 = vunpack.c.0.s8 %v4336
  %v4338 = vlaneseq
  %v4339 = vshrl.u32 %v4338, 7
  %v4340 = vsub.s32 %v4337, %v4339
  %v4341 = vrot.slane %v4333, %v4340
  %v4343 = vunpack.c.l.s4 1966171168
  %v4344 = vunpack.c.0.s8 %v4343
  %v4345 = vlaneseq
  %v4346 = vshrl.u32 %v4345, 7
  %v4347 = vsub.s32 %v4344, %v4346
  %v4348 = vrot.slane %v4334, %v4347
  %v4349 = vlaneseq
  %v4350 = vshrl.u32 %v4349, 7
  %v4351 = vsub.s32 0, %v4350
  %v4352 = vrot.slane %v4341, %v4351
  %v4353 = vlaneseq
  %v4354 = vshrl.u32 %v4353, 7
  %v4355 = vsub.s32 1, %v4354
  %v4356 = vrot.slane %v4341, %v4355
  %v4357 = vlaneseq
  %v4358 = vshrl.u32 %v4357, 7
  %v4359 = vsub.s32 0, %v4358
  %v4360 = vrot.slane %v4348, %v4359
  %v4361 = vlaneseq
  %v4362 = vshrl.u32 %v4361, 7
  %v4363 = vsub.s32 1, %v4362
  %v4364 = vrot.slane %v4348, %v4363
  %v4369 = vmul.f32 %v4352, %v3734
  %v4370 = vmul.f32 %v4356, %v3736
  %v4371 = vmul.f32 %v4360, %v3740
  %v4372 = vmul.f32 %v4364, %v3742
  %v4373 = vadd.f32 %v4318, %v4369
  %v4374 = vadd.f32 %v4319, %v4370
  %v4375 = vadd.f32 %v4320, %v4371
  %v4376 = vadd.f32 %v4321, %v4372
  %v4377 = vmul.f32 %v4248, %v4264
  %v4378 = vmul.f32 %v4250, %v4266
  %v4381 = vcombine.low %v4377, %v4378
  %v4383 = vunpack.c.l.s4 1966171168
  %v4384 = vunpack.c.0.s8 %v4383
  %v4385 = vlaneseq
  %v4386 = vshrl.u32 %v4385, 7
  %v4387 = vsub.s32 %v4384, %v4386
  %v4388 = vrot.slane %v4381, %v4387
  %v4389 = vcombine.high %v4388, %v4388
  %v4391 = vunpack.c.l.s4 1966171168
  %v4392 = vunpack.c.0.s8 %v4391
  %v4393 = vlaneseq
  %v4394 = vshrl.u32 %v4393, 7
  %v4395 = vsub.s32 %v4392, %v4394
  %v4396 = vrot.slane %v4388, %v4395
  %v4398 = vunpack.c.l.s4 1966171168
  %v4399 = vunpack.c.0.s8 %v4398
  %v4400 = vlaneseq
  %v4401 = vshrl.u32 %v4400, 7
  %v4402 = vsub.s32 %v4399, %v4401
  %v4403 = vrot.slane %v4389, %v4402
  %v4404 = vlaneseq
  %v4405 = vshrl.u32 %v4404, 7
  %v4406 = vsub.s32 0, %v4405
  %v4407 = vrot.slane %v4396, %v4406
  %v4408 = vlaneseq
  %v4409 = vshrl.u32 %v4408, 7
  %v4410 = vsub.s32 1, %v4409
  %v4411 = vrot.slane %v4396, %v4410
  %v4412 = vlaneseq
  %v4413 = vshrl.u32 %v4412, 7
  %v4414 = vsub.s32 0, %v4413
  %v4415 = vrot.slane %v4403, %v4414
  %v4416 = vlaneseq
  %v4417 = vshrl.u32 %v4416, 7
  %v4418 = vsub.s32 1, %v4417
  %v4419 = vrot.slane %v4403, %v4418
  %v4424 = vmul.f32 %v4407, %v3823
  %v4425 = vmul.f32 %v4411, %v3825
  %v4426 = vmul.f32 %v4415, %v3829
  %v4427 = vmul.f32 %v4419, %v3831
  %v4428 = vadd.f32 %v4373, %v4424
  %v4429 = vadd.f32 %v4374, %v4425
  %v4430 = vadd.f32 %v4375, %v4426
  %v4431 = vadd.f32 %v4376, %v4427
  %v4432 = vmul.f32 %v4254, %v4264
  %v4433 = vmul.f32 %v4256, %v4266
  %v4436 = vcombine.low %v4432, %v4433
  %v4438 = vunpack.c.l.s4 1966171168
  %v4439 = vunpack.c.0.s8 %v4438
  %v4440 = vlaneseq
  %v4441 = vshrl.u32 %v4440, 7
  %v4442 = vsub.s32 %v4439, %v4441
  %v4443 = vrot.slane %v4436, %v4442
  %v4444 = vcombine.high %v4443, %v4443
  %v4446 = vunpack.c.l.s4 1966171168
  %v4447 = vunpack.c.0.s8 %v4446
  %v4448 = vlaneseq
  %v4449 = vshrl.u32 %v4448, 7
  %v4450 = vsub.s32 %v4447, %v4449
  %v4451 = vrot.slane %v4443, %v4450
  %v4453 = vunpack.c.l.s4 1966171168
  %v4454 = vunpack.c.0.s8 %v4453
  %v4455 = vlaneseq
  %v4456 = vshrl.u32 %v4455, 7
  %v4457 = vsub.s32 %v4454, %v4456
  %v4458 = vrot.slane %v4444, %v4457
  %v4459 = vlaneseq
  %v4460 = vshrl.u32 %v4459, 7
  %v4461 = vsub.s32 0, %v4460
  %v4462 = vrot.slane %v4451, %v4461
  %v4463 = vlaneseq
  %v4464 = vshrl.u32 %v4463, 7
  %v4465 = vsub.s32 1, %v4464
  %v4466 = vrot.slane %v4451, %v4465
  %v4467 = vlaneseq
  %v4468 = vshrl.u32 %v4467, 7
  %v4469 = vsub.s32 0, %v4468
  %v4470 = vrot.slane %v4458, %v4469
  %v4471 = vlaneseq
  %v4472 = vshrl.u32 %v4471, 7
  %v4473 = vsub.s32 1, %v4472
  %v4474 = vrot.slane %v4458, %v4473
  %v4479 = vmul.f32 %v4462, %v3912
  %v4480 = vmul.f32 %v4466, %v3914
  %v4481 = vmul.f32 %v4470, %v3918
  %v4482 = vmul.f32 %v4474, %v3920
  %v4483 = vadd.f32 %v4428, %v4479
  %v4484 = vadd.f32 %v4429, %v4480
  %v4485 = vadd.f32 %v4430, %v4481
  %v4486 = vadd.f32 %v4431, %v4482
  %s4487 = scalar_lea.vmem %s23, 8
  %v4488 = vld [vmem:[%s4487] sm:$0xff]
  %s4489 = scalar_lea.vmem %s24, 8
  %v4490 = vld [vmem:[%s4489] sm:$0xff]
  %4492 = vset.pattern.permute.xlu0 0
  %4493 = vperm.xlu0 %4492, %v4490
  %v4494 = vpop.permute.xlu0 %4493
  %v4497 = vsel %vm2079, %v4488, 0
  %4499 = vmatprep.subr.mxu0 0.0
  %4500 = vmatpush1.msra.mxu0 0.0
  %4501 = vmatprep.subr.mxu0 0.0
  %4502 = vmatpush1.msra.mxu0 0.0
  %4503 = vmatprep.subr.mxu0 0.0
  %4504 = vmatpush1.msra.mxu0 0.0
  %4505 = vmatprep.subr.mxu0 0.0
  %4506 = vmatpush1.msra.mxu0 0.0
  %4507 = vmatprep.subr.mxu0 0.0
  %4508 = vmatpush1.msra.mxu0 0.0
  %4509 = vmatprep.subr.mxu0 0.0
  %4510 = vmatpush1.msra.mxu0 0.0
  %4511 = vmatprep.subr.mxu0 0.0
  %4512 = vmatpush1.msra.mxu0 0.0
  %4513 = vmatprep.subr.mxu0 0.0
  %4514 = vmatpush1.msra.mxu0 0.0
  %4515 = vmatprep.subr.mxu0 0.0
  %4516 = vmatpush1.msra.mxu0 0.0
  %4517 = vmatprep.subr.mxu0 0.0
  %4518 = vmatpush1.msra.mxu0 0.0
  %4519 = vmatprep.subr.mxu0 0.0
  %4520 = vmatpush1.msra.mxu0 0.0
  %4521 = vmatprep.subr.mxu0 0.0
  %4522 = vmatpush1.msra.mxu0 0.0
  %4523 = vmatprep.subr.mxu0 0.0
  %4524 = vmatpush1.msra.mxu0 0.0
  %4525 = vmatprep.subr.mxu0 0.0
  %4526 = vmatpush1.msra.mxu0 0.0
  %4527 = vmatprep.subr.mxu0 %v4486
  %4528 = vmatpush1.msra.mxu0 %v4485
  %4529 = vmatprep.subr.mxu0 %v4484
  %4530 = vmatpush1.msra.mxu0 %v4483
  %4531 = vmatprep.subr.mxu0 0.0
  %4532 = vmatpush2.msra.mxu0 0.0
  %4533 = vmatprep.subr.mxu0 0.0
  %4534 = vmatpush2.msra.mxu0 0.0
  %4535 = vmatprep.subr.mxu0 0.0
  %4536 = vmatpush2.msra.mxu0 0.0
  %4537 = vmatprep.subr.mxu0 0.0
  %4538 = vmatpush2.msra.mxu0 0.0
  %4539 = vmatprep.subr.mxu0 0.0
  %4540 = vmatpush2.msra.mxu0 0.0
  %4541 = vmatprep.subr.mxu0 0.0
  %4542 = vmatpush2.msra.mxu0 0.0
  %4543 = vmatprep.subr.mxu0 0.0
  %4544 = vmatpush2.msra.mxu0 0.0
  %4545 = vmatprep.subr.mxu0 0.0
  %4546 = vmatpush2.msra.mxu0 0.0
  %4547 = vmatprep.subr.mxu0 0.0
  %4548 = vmatpush2.msra.mxu0 0.0
  %4549 = vmatprep.subr.mxu0 0.0
  %4550 = vmatpush2.msra.mxu0 0.0
  %4551 = vmatprep.subr.mxu0 0.0
  %4552 = vmatpush2.msra.mxu0 0.0
  %4553 = vmatprep.subr.mxu0 0.0
  %4554 = vmatpush2.msra.mxu0 0.0
  %4555 = vmatprep.subr.mxu0 0.0
  %4556 = vmatpush2.msra.mxu0 0.0
  %4557 = vmatprep.subr.mxu0 0.0
  %4558 = vmatpush2.msra.mxu0 0.0
  %4559 = vmatprep.subr.mxu0 0.0
  %4560 = vmatpush2.msra.mxu0 0.0
  %4561 = vmatprep.subr.mxu0 0.0
  %4562 = vmatpush2.msra.mxu0 0.0
  %4563 = vmatprep.mubr.f32.mxu0 0.0
  %4564 = vmatmul.mubr.f32.gmra.mxu0 %v4497
  %v4565 = vpop.f32.mrf.mxu0
  %v4566 = vadd.f32 %v4494, %v4565
  %v4567 = vpop.f32.mrf.mxu0
  %v4568 = vadd.f32 %v4494, %v4567
  %4569 = vdwg.mxu0
  %4570 = vst [vmem:[%s25] sm:$0xff] %v4566
  %4571 = vst [vmem:[%s25 + $0x8] sm:$0xff] %v4568
  // Predicated region
  $region102: #{tgn_forward_pallas.1} parent=0 // pred_check
    _
  $region103: #{tgn_forward_pallas.1} parent=0 // pred_check_branch
    %4573 = sbr.rel (0) target = $region105
  $region104: #{tgn_forward_pallas.1} parent=0 // pred_region
    _
  $region105: #{tgn_forward_pallas.1} parent=0 // pred_fallthru
    _
  // Predicated region
  $region106: #{tgn_forward_pallas.1} parent=0 // pred_check
    _
  $region107: #{tgn_forward_pallas.1} parent=0 // pred_check_branch
    %4575 = sbr.rel (0) target = $region109
  $region108: #{tgn_forward_pallas.1} parent=0 // pred_region
    _
  $region109: #{tgn_forward_pallas.1} parent=0 // pred_fallthru
    _

</llo_original>
